<compile_context>
chip_gen: v7x
topology: tpu7x:2x2x1
jax: 0.10.0
libtpu: 0.0.40
codegen_flags: <defaults>
</compile_context>

<pallas_src>
import functools

import jax
import jax.numpy as jnp
from jax import lax
from jax.experimental import pallas as pl
from jax.experimental.pallas import tpu as pltpu

# ---- model hyper-parameters (small, consistent with the module __init__) ----
VOCAB_SIZE = 100
MODEL_DIM = 32
NUM_LAYERS = 2
HEADS = 4
NUM_CLASSES = 5
BATCH = 2
SEQ = 8
FF_DIM = 4 * MODEL_DIM
LN_EPS = 1e-5

_MISC_W = 128   # lane width of the packed bias/LN/classifier slab (also padded logit width)

# rows of the packed per-layer slab (8 rows per layer inside `misc`)
_R_BQKV, _R_BO, _R_B1, _R_B2, _R_LN1G, _R_LN1B, _R_LN2G, _R_LN2B = range(8)


def _layer_norm(x, gamma, beta):
    mu = jnp.mean(x, axis=-1, keepdims=True)
    var = jnp.mean(jnp.square(x - mu), axis=-1, keepdims=True)
    return (x - mu) * lax.rsqrt(var + LN_EPS) * gamma + beta


def fused_forward_kernel(
    tokens_ref,   # [B*S, 1] int32 token ids (VMEM)
    maskb_ref,    # [B, S]   f32 additive key-padding bias (0 valid / -1e9 pad)
    emb_ref,      # [V, D]   embedding table
    wcat_ref,     # [L, D, 3D+D+FF]  Wq|Wk|Wv|Wo|W1 packed (scale folded into Wq)
    w2_ref,       # [L, FF, D]
    misc_ref,     # [L*8 + D + 1 (padded to x8), 128] biases/LN params + Wc + bc
    out_ref,      # [B, 128] padded logits
    *, batch, seq, heads,
):
    v, d = emb_ref.shape
    num_layers = wcat_ref.shape[0]
    ff = w2_ref.shape[1]
    bs = batch * seq
    hd = d // heads

    # ---- embedding lookup as one one-hot matmul on the (otherwise idle) MXU ----
    tok = tokens_ref[...]                                              # [BS, 1] int32
    one_hot = (lax.broadcasted_iota(jnp.int32, (bs, v), 1) == tok).astype(jnp.float32)
    x = jnp.dot(one_hot, emb_ref[...], preferred_element_type=jnp.float32)   # [BS, D]

    maskb = maskb_ref[...]                                             # [B, S]
    misc = misc_ref[...]                                               # [rows, 128]

    # ---- transformer layers (static unroll; everything VMEM resident) ----
    for l in range(num_layers):
        wcat = wcat_ref[l]                                             # [D, 3D+D+FF]
        wqkv = wcat[:, :3 * d]
        wo = wcat[:, 3 * d:4 * d]
        w1 = wcat[:, 4 * d:4 * d + ff]
        w2 = w2_ref[l]                                                 # [FF, D]

        slab = misc[l * 8:(l + 1) * 8, :]                              # [8, 128]
        bqkv = slab[_R_BQKV:_R_BQKV + 1, :3 * d]
        bo   = slab[_R_BO:_R_BO + 1, :d]
        b1   = slab[_R_B1:_R_B1 + 1, :ff]
        b2   = slab[_R_B2:_R_B2 + 1, :d]
        ln1g = slab[_R_LN1G:_R_LN1G + 1, :d]
        ln1b = slab[_R_LN1B:_R_LN1B + 1, :d]
        ln2g = slab[_R_LN2G:_R_LN2G + 1, :d]
        ln2b = slab[_R_LN2B:_R_LN2B + 1, :d]

        # fused QKV projection for the whole batch: one [BS,D] @ [D,3D] MXU push
        qkv = jnp.dot(x, wqkv, preferred_element_type=jnp.float32) + bqkv     # [BS, 3D]

        # head-batched attention per batch row (B=2, static unroll); Q-scale already folded
        ctx_rows = []
        for b in range(batch):
            rows = slice(b * seq, (b + 1) * seq)
            qb = qkv[rows, :d].reshape(seq, heads, hd)
            kb = qkv[rows, d:2 * d].reshape(seq, heads, hd)
            vb = qkv[rows, 2 * d:].reshape(seq, heads, hd)
            sc = jnp.einsum("qhd,khd->hqk", qb, kb,
                            preferred_element_type=jnp.float32)              # [H, S, S]
            sc = sc + maskb[b:b + 1, :].reshape(1, 1, seq)
            m = jnp.max(sc, axis=-1, keepdims=True)
            p = jnp.exp(sc - m)
            p = p * pl.reciprocal(jnp.sum(p, axis=-1, keepdims=True), approx=True)
            ctx = jnp.einsum("hqk,khd->qhd", p, vb,
                             preferred_element_type=jnp.float32)              # [S, H, hd]
            ctx_rows.append(ctx.reshape(seq, d))
        attn = jnp.concatenate(ctx_rows, axis=0)                              # [BS, D]
        attn = jnp.dot(attn, wo, preferred_element_type=jnp.float32) + bo

        # residual + LayerNorm (post-norm)
        h1 = _layer_norm(x + attn, ln1g, ln1b)

        # feed-forward: ReLU(h1 @ W1 + b1) @ W2 + b2
        hidden = jnp.maximum(jnp.dot(h1, w1, preferred_element_type=jnp.float32) + b1, 0.0)
        ffo = jnp.dot(hidden, w2, preferred_element_type=jnp.float32) + b2

        x = _layer_norm(h1 + ffo, ln2g, ln2b)

    # ---- AdaptiveAvgPool1d(1) over sequence + Linear classifier ----
    # NOTE: divides by S (padded positions included), matching PyTorch AdaptiveAvgPool1d.
    pooled = jnp.concatenate(
        [jnp.sum(x[b * seq:(b + 1) * seq, :], axis=0, keepdims=True) for b in range(batch)],
        axis=0) * (1.0 / seq)                                                 # [B, D]
    wc = misc[num_layers * 8:num_layers * 8 + d, :]                           # [D, 128]
    bc = misc[num_layers * 8 + d:num_layers * 8 + d + 1, :]                   # [1, 128]
    out_ref[...] = jnp.dot(pooled, wc, preferred_element_type=jnp.float32) + bc


@jax.jit
def forward(params, tokens, mask):
    B, S = tokens.shape
    C = NUM_CLASSES

    # additive key-padding bias: 0 for valid, -1e9 for pad
    mask_bias = (mask.astype(jnp.float32) - 1.0) * 1e9
    tok_col = tokens.reshape(B * S, 1).astype(jnp.int32)

    vmem = pl.BlockSpec(memory_space=pltpu.MemorySpace.VMEM)
    out = pl.pallas_call(
        functools.partial(fused_forward_kernel, batch=B, seq=S, heads=HEADS),
        out_shape=jax.ShapeDtypeStruct((B, _MISC_W), jnp.float32),
        in_specs=[vmem] * 6,
        out_specs=vmem,
    )(tok_col, mask_bias, params["emb"], params["wcat"], params["w2"], params["misc"])
    return out[:, :C]                                   # strip lane padding -> [B, C]


def init_params(key):
    def dense(k, shape, scale=0.02):
        return (scale * jax.random.normal(k, shape)).astype(jnp.float32)

    d, ff, c = MODEL_DIM, FF_DIM, NUM_CLASSES
    hd = d // HEADS
    qscale = 1.0 / (hd ** 0.5)

    keys = jax.random.split(key, 3 + NUM_LAYERS)

    def pad_lanes(v, width=_MISC_W):
        return jnp.pad(v, ((0, 0), (0, width - v.shape[1])))

    ones_d = jnp.ones((1, d), jnp.float32)
    zeros_d = jnp.zeros((1, d), jnp.float32)

    wcat_l, w2_l, misc_rows = [], [], []
    for l in range(NUM_LAYERS):
        lk = jax.random.split(keys[3 + l], 10)
        wq = dense(lk[0], (d, d)) * qscale               # fold 1/sqrt(head_dim) into Q proj
        wk, wv = dense(lk[1], (d, d)), dense(lk[2], (d, d))
        wo = dense(lk[3], (d, d))
        w1 = dense(lk[4], (d, ff))
        wcat_l.append(jnp.concatenate([wq, wk, wv, wo, w1], axis=1))   # [D, 3D+D+FF]
        w2_l.append(dense(lk[5], (ff, d)))

        bqkv = dense(lk[6], (1, 3 * d))
        bqkv = bqkv.at[:, :d].multiply(qscale)           # fold scale into Q bias too
        bo = dense(lk[7], (1, d))
        b1 = dense(lk[8], (1, ff))
        b2 = dense(lk[9], (1, d))
        misc_rows += [pad_lanes(bqkv), pad_lanes(bo), pad_lanes(b1), pad_lanes(b2),
                      pad_lanes(ones_d), pad_lanes(zeros_d), pad_lanes(ones_d), pad_lanes(zeros_d)]

    wc = dense(keys[1], (d, c))
    bc = dense(keys[2], (1, c))
    misc_rows += [pad_lanes(wc), pad_lanes(bc)]
    misc = jnp.concatenate(misc_rows, axis=0)            # [L*8 + D + 1, 128]
    sub_pad = -misc.shape[0] % 8
    if sub_pad:
        misc = jnp.pad(misc, ((0, sub_pad), (0, 0)))

    return {
        "emb": dense(keys[0], (VOCAB_SIZE, MODEL_DIM), scale=1.0),
        "wcat": jnp.stack(wcat_l),   # [L, D, 3D+D+FF]
        "w2": jnp.stack(w2_l),       # [L, FF, D]
        "misc": misc,                # [rows, 128]
    }


if __name__ == "__main__":
    key = jax.random.PRNGKey(0)
    pk, tk = jax.random.split(key)
    params = init_params(pk)

    tokens = jax.random.randint(tk, (BATCH, SEQ), 0, VOCAB_SIZE, dtype=jnp.int32)
    # first example fully valid; second example has the last 3 positions padded
    mask = jnp.ones((BATCH, SEQ), jnp.float32)
    mask = mask.at[1, SEQ - 3:].set(0.0)

    logits = forward(params, tokens, mask)
    jax.block_until_ready(logits)
    assert logits.shape == (BATCH, NUM_CLASSES)
    print("KERNEL_OK")
</pallas_src>

<mosaic_0001>
module attributes {stable_mosaic.version = 11 : i64} {
  func.func @fused_forward_kernel(%arg0: memref<16x1xi32, #tpu.memory_space<vmem>>, %arg1: memref<2x8xf32, #tpu.memory_space<vmem>>, %arg2: memref<100x32xf32, #tpu.memory_space<vmem>>, %arg3: memref<2x32x256xf32, #tpu.memory_space<vmem>>, %arg4: memref<2x128x32xf32, #tpu.memory_space<vmem>>, %arg5: memref<56x128xf32, #tpu.memory_space<vmem>>, %arg6: memref<2x128xf32, #tpu.memory_space<vmem>>) attributes {dimension_semantics = [], scalar_prefetch = 0 : i64, scratch_operands = 0 : i64, tpu.core_type = #tpu.core_type<tc>} {
    %c0 = arith.constant 0 : index
    %c0_0 = arith.constant 0 : index
    %0 = vector.load %arg0[%c0, %c0_0] : memref<16x1xi32, #tpu.memory_space<vmem>>, vector<16x1xi32>
    %1 = tpu.iota {dimensions = array<i32: 1>} : vector<16x100xi32>
    %2 = vector.broadcast %0 : vector<16x1xi32> to vector<16x100xi32>
    %3 = arith.cmpi eq, %1, %2 : vector<16x100xi32>
    %4 = arith.extui %3 : vector<16x100xi1> to vector<16x100xi32>
    %5 = arith.sitofp %4 : vector<16x100xi32> to vector<16x100xf32>
    %c0_1 = arith.constant 0 : index
    %c0_2 = arith.constant 0 : index
    %6 = vector.load %arg2[%c0_1, %c0_2] : memref<100x32xf32, #tpu.memory_space<vmem>>, vector<100x32xf32>
    %cst = arith.constant dense<0.000000e+00> : vector<16x32xf32>
    %7 = tpu.matmul %5, %6, %cst {dimension_numbers = #tpu.dot_dimension_numbers<[1], [0], [0], [1], [0, 0, 1, 1], [], []>} : vector<16x100xf32>, vector<100x32xf32>, vector<16x32xf32> -> vector<16x32xf32>
    %c0_3 = arith.constant 0 : index
    %c0_4 = arith.constant 0 : index
    %8 = vector.load %arg1[%c0_3, %c0_4] : memref<2x8xf32, #tpu.memory_space<vmem>>, vector<2x8xf32>
    %c0_5 = arith.constant 0 : index
    %c0_6 = arith.constant 0 : index
    %9 = vector.load %arg5[%c0_5, %c0_6] : memref<56x128xf32, #tpu.memory_space<vmem>>, vector<56x128xf32>
    %c0_7 = arith.constant 0 : index
    %c0_8 = arith.constant 0 : index
    %c0_9 = arith.constant 0 : index
    %10 = vector.load %arg3[%c0_7, %c0_8, %c0_9] : memref<2x32x256xf32, #tpu.memory_space<vmem>>, vector<1x32x256xf32>
    %11 = vector.shape_cast %10 : vector<1x32x256xf32> to vector<32x256xf32>
    %12 = vector.extract_strided_slice %11 {offsets = [0, 0], sizes = [32, 96], strides = [1, 1]} : vector<32x256xf32> to vector<32x96xf32>
    %13 = vector.extract_strided_slice %11 {offsets = [0, 96], sizes = [32, 32], strides = [1, 1]} : vector<32x256xf32> to vector<32x32xf32>
    %14 = vector.extract_strided_slice %11 {offsets = [0, 128], sizes = [32, 128], strides = [1, 1]} : vector<32x256xf32> to vector<32x128xf32>
    %c0_10 = arith.constant 0 : index
    %c0_11 = arith.constant 0 : index
    %c0_12 = arith.constant 0 : index
    %15 = vector.load %arg4[%c0_10, %c0_11, %c0_12] : memref<2x128x32xf32, #tpu.memory_space<vmem>>, vector<1x128x32xf32>
    %16 = vector.shape_cast %15 : vector<1x128x32xf32> to vector<128x32xf32>
    %17 = vector.extract_strided_slice %9 {offsets = [0, 0], sizes = [8, 128], strides = [1, 1]} : vector<56x128xf32> to vector<8x128xf32>
    %18 = vector.extract_strided_slice %17 {offsets = [0, 0], sizes = [1, 96], strides = [1, 1]} : vector<8x128xf32> to vector<1x96xf32>
    %19 = vector.extract_strided_slice %17 {offsets = [1, 0], sizes = [1, 32], strides = [1, 1]} : vector<8x128xf32> to vector<1x32xf32>
    %20 = vector.extract_strided_slice %17 {offsets = [2, 0], sizes = [1, 128], strides = [1, 1]} : vector<8x128xf32> to vector<1x128xf32>
    %21 = vector.extract_strided_slice %17 {offsets = [3, 0], sizes = [1, 32], strides = [1, 1]} : vector<8x128xf32> to vector<1x32xf32>
    %22 = vector.extract_strided_slice %17 {offsets = [4, 0], sizes = [1, 32], strides = [1, 1]} : vector<8x128xf32> to vector<1x32xf32>
    %23 = vector.extract_strided_slice %17 {offsets = [5, 0], sizes = [1, 32], strides = [1, 1]} : vector<8x128xf32> to vector<1x32xf32>
    %24 = vector.extract_strided_slice %17 {offsets = [6, 0], sizes = [1, 32], strides = [1, 1]} : vector<8x128xf32> to vector<1x32xf32>
    %25 = vector.extract_strided_slice %17 {offsets = [7, 0], sizes = [1, 32], strides = [1, 1]} : vector<8x128xf32> to vector<1x32xf32>
    %cst_13 = arith.constant dense<0.000000e+00> : vector<16x96xf32>
    %26 = tpu.matmul %7, %12, %cst_13 {dimension_numbers = #tpu.dot_dimension_numbers<[1], [0], [0], [1], [0, 0, 1, 1], [], []>} : vector<16x32xf32>, vector<32x96xf32>, vector<16x96xf32> -> vector<16x96xf32>
    %27 = vector.broadcast %18 : vector<1x96xf32> to vector<16x96xf32>
    %28 = arith.addf %26, %27 : vector<16x96xf32>
    %29 = vector.extract_strided_slice %28 {offsets = [0, 0], sizes = [8, 32], strides = [1, 1]} : vector<16x96xf32> to vector<8x32xf32>
    %30 = vector.shape_cast %29 : vector<8x32xf32> to vector<8x4x8xf32>
    %31 = vector.extract_strided_slice %28 {offsets = [0, 32], sizes = [8, 32], strides = [1, 1]} : vector<16x96xf32> to vector<8x32xf32>
    %32 = vector.shape_cast %31 : vector<8x32xf32> to vector<8x4x8xf32>
    %33 = vector.extract_strided_slice %28 {offsets = [0, 64], sizes = [8, 32], strides = [1, 1]} : vector<16x96xf32> to vector<8x32xf32>
    %34 = vector.shape_cast %33 : vector<8x32xf32> to vector<8x4x8xf32>
    "tpu.trace_start"() <{level = 10 : i32, message = "qhd,khd->hqk"}> : () -> ()
    %cst_14 = arith.constant dense<0.000000e+00> : vector<4x8x8xf32>
    %35 = tpu.matmul %30, %32, %cst_14 {dimension_numbers = #tpu.dot_dimension_numbers<[2], [2], [0], [0], [0, 1, 0, 0, 1, 0], [1], [1]>} : vector<8x4x8xf32>, vector<8x4x8xf32>, vector<4x8x8xf32> -> vector<4x8x8xf32>
    "tpu.trace_stop"() : () -> ()
    %36 = vector.extract_strided_slice %8 {offsets = [0, 0], sizes = [1, 8], strides = [1, 1]} : vector<2x8xf32> to vector<1x8xf32>
    %37 = vector.shape_cast %36 : vector<1x8xf32> to vector<1x1x8xf32>
    %38 = vector.broadcast %37 : vector<1x1x8xf32> to vector<4x8x8xf32>
    %39 = arith.addf %35, %38 : vector<4x8x8xf32>
    %cst_15 = arith.constant dense<0xFF800000> : vector<4x8xf32>
    %40 = vector.multi_reduction <maximumf>, %39, %cst_15 [2] : vector<4x8x8xf32> to vector<4x8xf32>
    %41 = vector.shape_cast %40 : vector<4x8xf32> to vector<4x8x1xf32>
    %42 = vector.broadcast %41 : vector<4x8x1xf32> to vector<4x8x8xf32>
    %43 = arith.subf %39, %42 : vector<4x8x8xf32>
    %44 = math.exp %43 : vector<4x8x8xf32>
    %cst_16 = arith.constant dense<0.000000e+00> : vector<4x8xf32>
    %45 = vector.multi_reduction <add>, %44, %cst_16 [2] : vector<4x8x8xf32> to vector<4x8xf32>
    %46 = vector.shape_cast %45 : vector<4x8xf32> to vector<4x8x1xf32>
    %47 = tpu.reciprocal %46 {approx = true} : vector<4x8x1xf32> -> vector<4x8x1xf32>
    %48 = vector.broadcast %47 : vector<4x8x1xf32> to vector<4x8x8xf32>
    %49 = arith.mulf %44, %48 : vector<4x8x8xf32>
    "tpu.trace_start"() <{level = 10 : i32, message = "hqk,khd->qhd"}> : () -> ()
    %cst_17 = arith.constant dense<0.000000e+00> : vector<4x8x8xf32>
    %50 = tpu.matmul %34, %49, %cst_17 {dimension_numbers = #tpu.dot_dimension_numbers<[0], [2], [2], [1], [0, 1, 0, 2, 1, 1], [1], [0]>} : vector<8x4x8xf32>, vector<4x8x8xf32>, vector<4x8x8xf32> -> vector<4x8x8xf32>
    %51 = tpu.transpose %50, [2, 0, 1] : vector<4x8x8xf32> -> vector<8x4x8xf32>
    "tpu.trace_stop"() : () -> ()
    %52 = vector.shape_cast %51 : vector<8x4x8xf32> to vector<8x32xf32>
    %53 = vector.extract_strided_slice %28 {offsets = [8, 0], sizes = [8, 32], strides = [1, 1]} : vector<16x96xf32> to vector<8x32xf32>
    %54 = vector.shape_cast %53 : vector<8x32xf32> to vector<8x4x8xf32>
    %55 = vector.extract_strided_slice %28 {offsets = [8, 32], sizes = [8, 32], strides = [1, 1]} : vector<16x96xf32> to vector<8x32xf32>
    %56 = vector.shape_cast %55 : vector<8x32xf32> to vector<8x4x8xf32>
    %57 = vector.extract_strided_slice %28 {offsets = [8, 64], sizes = [8, 32], strides = [1, 1]} : vector<16x96xf32> to vector<8x32xf32>
    %58 = vector.shape_cast %57 : vector<8x32xf32> to vector<8x4x8xf32>
    "tpu.trace_start"() <{level = 10 : i32, message = "qhd,khd->hqk"}> : () -> ()
    %cst_18 = arith.constant dense<0.000000e+00> : vector<4x8x8xf32>
    %59 = tpu.matmul %54, %56, %cst_18 {dimension_numbers = #tpu.dot_dimension_numbers<[2], [2], [0], [0], [0, 1, 0, 0, 1, 0], [1], [1]>} : vector<8x4x8xf32>, vector<8x4x8xf32>, vector<4x8x8xf32> -> vector<4x8x8xf32>
    "tpu.trace_stop"() : () -> ()
    %60 = vector.extract_strided_slice %8 {offsets = [1, 0], sizes = [1, 8], strides = [1, 1]} : vector<2x8xf32> to vector<1x8xf32>
    %61 = vector.shape_cast %60 : vector<1x8xf32> to vector<1x1x8xf32>
    %62 = vector.broadcast %61 : vector<1x1x8xf32> to vector<4x8x8xf32>
    %63 = arith.addf %59, %62 : vector<4x8x8xf32>
    %cst_19 = arith.constant dense<0xFF800000> : vector<4x8xf32>
    %64 = vector.multi_reduction <maximumf>, %63, %cst_19 [2] : vector<4x8x8xf32> to vector<4x8xf32>
    %65 = vector.shape_cast %64 : vector<4x8xf32> to vector<4x8x1xf32>
    %66 = vector.broadcast %65 : vector<4x8x1xf32> to vector<4x8x8xf32>
    %67 = arith.subf %63, %66 : vector<4x8x8xf32>
    %68 = math.exp %67 : vector<4x8x8xf32>
    %cst_20 = arith.constant dense<0.000000e+00> : vector<4x8xf32>
    %69 = vector.multi_reduction <add>, %68, %cst_20 [2] : vector<4x8x8xf32> to vector<4x8xf32>
    %70 = vector.shape_cast %69 : vector<4x8xf32> to vector<4x8x1xf32>
    %71 = tpu.reciprocal %70 {approx = true} : vector<4x8x1xf32> -> vector<4x8x1xf32>
    %72 = vector.broadcast %71 : vector<4x8x1xf32> to vector<4x8x8xf32>
    %73 = arith.mulf %68, %72 : vector<4x8x8xf32>
    "tpu.trace_start"() <{level = 10 : i32, message = "hqk,khd->qhd"}> : () -> ()
    %cst_21 = arith.constant dense<0.000000e+00> : vector<4x8x8xf32>
    %74 = tpu.matmul %58, %73, %cst_21 {dimension_numbers = #tpu.dot_dimension_numbers<[0], [2], [2], [1], [0, 1, 0, 2, 1, 1], [1], [0]>} : vector<8x4x8xf32>, vector<4x8x8xf32>, vector<4x8x8xf32> -> vector<4x8x8xf32>
    %75 = tpu.transpose %74, [2, 0, 1] : vector<4x8x8xf32> -> vector<8x4x8xf32>
    "tpu.trace_stop"() : () -> ()
    %76 = vector.shape_cast %75 : vector<8x4x8xf32> to vector<8x32xf32>
    %77 = tpu.concatenate %52, %76 in 0 : vector<8x32xf32>, vector<8x32xf32> -> vector<16x32xf32>
    %cst_22 = arith.constant dense<0.000000e+00> : vector<16x32xf32>
    %78 = tpu.matmul %77, %13, %cst_22 {dimension_numbers = #tpu.dot_dimension_numbers<[1], [0], [0], [1], [0, 0, 1, 1], [], []>} : vector<16x32xf32>, vector<32x32xf32>, vector<16x32xf32> -> vector<16x32xf32>
    %79 = vector.broadcast %19 : vector<1x32xf32> to vector<16x32xf32>
    %80 = arith.addf %78, %79 : vector<16x32xf32>
    %81 = arith.addf %7, %80 : vector<16x32xf32>
    %cst_23 = arith.constant dense<0.000000e+00> : vector<16xf32>
    %82 = vector.multi_reduction <add>, %81, %cst_23 [1] : vector<16x32xf32> to vector<16xf32>
    %83 = vector.shape_cast %82 : vector<16xf32> to vector<16x1xf32>
    %cst_24 = arith.constant 3.200000e+01 : f32
    %84 = vector.broadcast %cst_24 : f32 to vector<16x1xf32>
    %85 = arith.divf %83, %84 : vector<16x1xf32>
    %86 = vector.broadcast %85 : vector<16x1xf32> to vector<16x32xf32>
    %87 = arith.subf %81, %86 : vector<16x32xf32>
    %88 = arith.mulf %87, %87 : vector<16x32xf32>
    %cst_25 = arith.constant dense<0.000000e+00> : vector<16xf32>
    %89 = vector.multi_reduction <add>, %88, %cst_25 [1] : vector<16x32xf32> to vector<16xf32>
    %90 = vector.shape_cast %89 : vector<16xf32> to vector<16x1xf32>
    %cst_26 = arith.constant 3.200000e+01 : f32
    %91 = vector.broadcast %cst_26 : f32 to vector<16x1xf32>
    %92 = arith.divf %90, %91 : vector<16x1xf32>
    %93 = vector.broadcast %85 : vector<16x1xf32> to vector<16x32xf32>
    %94 = arith.subf %81, %93 : vector<16x32xf32>
    %cst_27 = arith.constant 9.99999974E-6 : f32
    %95 = vector.broadcast %cst_27 : f32 to vector<16x1xf32>
    %96 = arith.addf %92, %95 : vector<16x1xf32>
    %97 = math.rsqrt %96 : vector<16x1xf32>
    %98 = vector.broadcast %97 : vector<16x1xf32> to vector<16x32xf32>
    %99 = arith.mulf %94, %98 : vector<16x32xf32>
    %100 = vector.broadcast %22 : vector<1x32xf32> to vector<16x32xf32>
    %101 = arith.mulf %99, %100 : vector<16x32xf32>
    %102 = vector.broadcast %23 : vector<1x32xf32> to vector<16x32xf32>
    %103 = arith.addf %101, %102 : vector<16x32xf32>
    %cst_28 = arith.constant dense<0.000000e+00> : vector<16x128xf32>
    %104 = tpu.matmul %103, %14, %cst_28 {dimension_numbers = #tpu.dot_dimension_numbers<[1], [0], [0], [1], [0, 0, 1, 1], [], []>} : vector<16x32xf32>, vector<32x128xf32>, vector<16x128xf32> -> vector<16x128xf32>
    %105 = vector.broadcast %20 : vector<1x128xf32> to vector<16x128xf32>
    %106 = arith.addf %104, %105 : vector<16x128xf32>
    %cst_29 = arith.constant 0.000000e+00 : f32
    %107 = vector.broadcast %cst_29 : f32 to vector<16x128xf32>
    %108 = arith.maximumf %106, %107 : vector<16x128xf32>
    %cst_30 = arith.constant dense<0.000000e+00> : vector<16x32xf32>
    %109 = tpu.matmul %108, %16, %cst_30 {dimension_numbers = #tpu.dot_dimension_numbers<[1], [0], [0], [1], [0, 0, 1, 1], [], []>} : vector<16x128xf32>, vector<128x32xf32>, vector<16x32xf32> -> vector<16x32xf32>
    %110 = vector.broadcast %21 : vector<1x32xf32> to vector<16x32xf32>
    %111 = arith.addf %109, %110 : vector<16x32xf32>
    %112 = arith.addf %103, %111 : vector<16x32xf32>
    %cst_31 = arith.constant dense<0.000000e+00> : vector<16xf32>
    %113 = vector.multi_reduction <add>, %112, %cst_31 [1] : vector<16x32xf32> to vector<16xf32>
    %114 = vector.shape_cast %113 : vector<16xf32> to vector<16x1xf32>
    %cst_32 = arith.constant 3.200000e+01 : f32
    %115 = vector.broadcast %cst_32 : f32 to vector<16x1xf32>
    %116 = arith.divf %114, %115 : vector<16x1xf32>
    %117 = vector.broadcast %116 : vector<16x1xf32> to vector<16x32xf32>
    %118 = arith.subf %112, %117 : vector<16x32xf32>
    %119 = arith.mulf %118, %118 : vector<16x32xf32>
    %cst_33 = arith.constant dense<0.000000e+00> : vector<16xf32>
    %120 = vector.multi_reduction <add>, %119, %cst_33 [1] : vector<16x32xf32> to vector<16xf32>
    %121 = vector.shape_cast %120 : vector<16xf32> to vector<16x1xf32>
    %cst_34 = arith.constant 3.200000e+01 : f32
    %122 = vector.broadcast %cst_34 : f32 to vector<16x1xf32>
    %123 = arith.divf %121, %122 : vector<16x1xf32>
    %124 = vector.broadcast %116 : vector<16x1xf32> to vector<16x32xf32>
    %125 = arith.subf %112, %124 : vector<16x32xf32>
    %cst_35 = arith.constant 9.99999974E-6 : f32
    %126 = vector.broadcast %cst_35 : f32 to vector<16x1xf32>
    %127 = arith.addf %123, %126 : vector<16x1xf32>
    %128 = math.rsqrt %127 : vector<16x1xf32>
    %129 = vector.broadcast %128 : vector<16x1xf32> to vector<16x32xf32>
    %130 = arith.mulf %125, %129 : vector<16x32xf32>
    %131 = vector.broadcast %24 : vector<1x32xf32> to vector<16x32xf32>
    %132 = arith.mulf %130, %131 : vector<16x32xf32>
    %133 = vector.broadcast %25 : vector<1x32xf32> to vector<16x32xf32>
    %134 = arith.addf %132, %133 : vector<16x32xf32>
    %c1 = arith.constant 1 : index
    %c0_36 = arith.constant 0 : index
    %c0_37 = arith.constant 0 : index
    %135 = vector.load %arg3[%c1, %c0_36, %c0_37] : memref<2x32x256xf32, #tpu.memory_space<vmem>>, vector<1x32x256xf32>
    %136 = vector.shape_cast %135 : vector<1x32x256xf32> to vector<32x256xf32>
    %137 = vector.extract_strided_slice %136 {offsets = [0, 0], sizes = [32, 96], strides = [1, 1]} : vector<32x256xf32> to vector<32x96xf32>
    %138 = vector.extract_strided_slice %136 {offsets = [0, 96], sizes = [32, 32], strides = [1, 1]} : vector<32x256xf32> to vector<32x32xf32>
    %139 = vector.extract_strided_slice %136 {offsets = [0, 128], sizes = [32, 128], strides = [1, 1]} : vector<32x256xf32> to vector<32x128xf32>
    %c1_38 = arith.constant 1 : index
    %c0_39 = arith.constant 0 : index
    %c0_40 = arith.constant 0 : index
    %140 = vector.load %arg4[%c1_38, %c0_39, %c0_40] : memref<2x128x32xf32, #tpu.memory_space<vmem>>, vector<1x128x32xf32>
    %141 = vector.shape_cast %140 : vector<1x128x32xf32> to vector<128x32xf32>
    %142 = vector.extract_strided_slice %9 {offsets = [8, 0], sizes = [8, 128], strides = [1, 1]} : vector<56x128xf32> to vector<8x128xf32>
    %143 = vector.extract_strided_slice %142 {offsets = [0, 0], sizes = [1, 96], strides = [1, 1]} : vector<8x128xf32> to vector<1x96xf32>
    %144 = vector.extract_strided_slice %142 {offsets = [1, 0], sizes = [1, 32], strides = [1, 1]} : vector<8x128xf32> to vector<1x32xf32>
    %145 = vector.extract_strided_slice %142 {offsets = [2, 0], sizes = [1, 128], strides = [1, 1]} : vector<8x128xf32> to vector<1x128xf32>
    %146 = vector.extract_strided_slice %142 {offsets = [3, 0], sizes = [1, 32], strides = [1, 1]} : vector<8x128xf32> to vector<1x32xf32>
    %147 = vector.extract_strided_slice %142 {offsets = [4, 0], sizes = [1, 32], strides = [1, 1]} : vector<8x128xf32> to vector<1x32xf32>
    %148 = vector.extract_strided_slice %142 {offsets = [5, 0], sizes = [1, 32], strides = [1, 1]} : vector<8x128xf32> to vector<1x32xf32>
    %149 = vector.extract_strided_slice %142 {offsets = [6, 0], sizes = [1, 32], strides = [1, 1]} : vector<8x128xf32> to vector<1x32xf32>
    %150 = vector.extract_strided_slice %142 {offsets = [7, 0], sizes = [1, 32], strides = [1, 1]} : vector<8x128xf32> to vector<1x32xf32>
    %cst_41 = arith.constant dense<0.000000e+00> : vector<16x96xf32>
    %151 = tpu.matmul %134, %137, %cst_41 {dimension_numbers = #tpu.dot_dimension_numbers<[1], [0], [0], [1], [0, 0, 1, 1], [], []>} : vector<16x32xf32>, vector<32x96xf32>, vector<16x96xf32> -> vector<16x96xf32>
    %152 = vector.broadcast %143 : vector<1x96xf32> to vector<16x96xf32>
    %153 = arith.addf %151, %152 : vector<16x96xf32>
    %154 = vector.extract_strided_slice %153 {offsets = [0, 0], sizes = [8, 32], strides = [1, 1]} : vector<16x96xf32> to vector<8x32xf32>
    %155 = vector.shape_cast %154 : vector<8x32xf32> to vector<8x4x8xf32>
    %156 = vector.extract_strided_slice %153 {offsets = [0, 32], sizes = [8, 32], strides = [1, 1]} : vector<16x96xf32> to vector<8x32xf32>
    %157 = vector.shape_cast %156 : vector<8x32xf32> to vector<8x4x8xf32>
    %158 = vector.extract_strided_slice %153 {offsets = [0, 64], sizes = [8, 32], strides = [1, 1]} : vector<16x96xf32> to vector<8x32xf32>
    %159 = vector.shape_cast %158 : vector<8x32xf32> to vector<8x4x8xf32>
    "tpu.trace_start"() <{level = 10 : i32, message = "qhd,khd->hqk"}> : () -> ()
    %cst_42 = arith.constant dense<0.000000e+00> : vector<4x8x8xf32>
    %160 = tpu.matmul %155, %157, %cst_42 {dimension_numbers = #tpu.dot_dimension_numbers<[2], [2], [0], [0], [0, 1, 0, 0, 1, 0], [1], [1]>} : vector<8x4x8xf32>, vector<8x4x8xf32>, vector<4x8x8xf32> -> vector<4x8x8xf32>
    "tpu.trace_stop"() : () -> ()
    %161 = vector.extract_strided_slice %8 {offsets = [0, 0], sizes = [1, 8], strides = [1, 1]} : vector<2x8xf32> to vector<1x8xf32>
    %162 = vector.shape_cast %161 : vector<1x8xf32> to vector<1x1x8xf32>
    %163 = vector.broadcast %162 : vector<1x1x8xf32> to vector<4x8x8xf32>
    %164 = arith.addf %160, %163 : vector<4x8x8xf32>
    %cst_43 = arith.constant dense<0xFF800000> : vector<4x8xf32>
    %165 = vector.multi_reduction <maximumf>, %164, %cst_43 [2] : vector<4x8x8xf32> to vector<4x8xf32>
    %166 = vector.shape_cast %165 : vector<4x8xf32> to vector<4x8x1xf32>
    %167 = vector.broadcast %166 : vector<4x8x1xf32> to vector<4x8x8xf32>
    %168 = arith.subf %164, %167 : vector<4x8x8xf32>
    %169 = math.exp %168 : vector<4x8x8xf32>
    %cst_44 = arith.constant dense<0.000000e+00> : vector<4x8xf32>
    %170 = vector.multi_reduction <add>, %169, %cst_44 [2] : vector<4x8x8xf32> to vector<4x8xf32>
    %171 = vector.shape_cast %170 : vector<4x8xf32> to vector<4x8x1xf32>
    %172 = tpu.reciprocal %171 {approx = true} : vector<4x8x1xf32> -> vector<4x8x1xf32>
    %173 = vector.broadcast %172 : vector<4x8x1xf32> to vector<4x8x8xf32>
    %174 = arith.mulf %169, %173 : vector<4x8x8xf32>
    "tpu.trace_start"() <{level = 10 : i32, message = "hqk,khd->qhd"}> : () -> ()
    %cst_45 = arith.constant dense<0.000000e+00> : vector<4x8x8xf32>
    %175 = tpu.matmul %159, %174, %cst_45 {dimension_numbers = #tpu.dot_dimension_numbers<[0], [2], [2], [1], [0, 1, 0, 2, 1, 1], [1], [0]>} : vector<8x4x8xf32>, vector<4x8x8xf32>, vector<4x8x8xf32> -> vector<4x8x8xf32>
    %176 = tpu.transpose %175, [2, 0, 1] : vector<4x8x8xf32> -> vector<8x4x8xf32>
    "tpu.trace_stop"() : () -> ()
    %177 = vector.shape_cast %176 : vector<8x4x8xf32> to vector<8x32xf32>
    %178 = vector.extract_strided_slice %153 {offsets = [8, 0], sizes = [8, 32], strides = [1, 1]} : vector<16x96xf32> to vector<8x32xf32>
    %179 = vector.shape_cast %178 : vector<8x32xf32> to vector<8x4x8xf32>
    %180 = vector.extract_strided_slice %153 {offsets = [8, 32], sizes = [8, 32], strides = [1, 1]} : vector<16x96xf32> to vector<8x32xf32>
    %181 = vector.shape_cast %180 : vector<8x32xf32> to vector<8x4x8xf32>
    %182 = vector.extract_strided_slice %153 {offsets = [8, 64], sizes = [8, 32], strides = [1, 1]} : vector<16x96xf32> to vector<8x32xf32>
    %183 = vector.shape_cast %182 : vector<8x32xf32> to vector<8x4x8xf32>
    "tpu.trace_start"() <{level = 10 : i32, message = "qhd,khd->hqk"}> : () -> ()
    %cst_46 = arith.constant dense<0.000000e+00> : vector<4x8x8xf32>
    %184 = tpu.matmul %179, %181, %cst_46 {dimension_numbers = #tpu.dot_dimension_numbers<[2], [2], [0], [0], [0, 1, 0, 0, 1, 0], [1], [1]>} : vector<8x4x8xf32>, vector<8x4x8xf32>, vector<4x8x8xf32> -> vector<4x8x8xf32>
    "tpu.trace_stop"() : () -> ()
    %185 = vector.extract_strided_slice %8 {offsets = [1, 0], sizes = [1, 8], strides = [1, 1]} : vector<2x8xf32> to vector<1x8xf32>
    %186 = vector.shape_cast %185 : vector<1x8xf32> to vector<1x1x8xf32>
    %187 = vector.broadcast %186 : vector<1x1x8xf32> to vector<4x8x8xf32>
    %188 = arith.addf %184, %187 : vector<4x8x8xf32>
    %cst_47 = arith.constant dense<0xFF800000> : vector<4x8xf32>
    %189 = vector.multi_reduction <maximumf>, %188, %cst_47 [2] : vector<4x8x8xf32> to vector<4x8xf32>
    %190 = vector.shape_cast %189 : vector<4x8xf32> to vector<4x8x1xf32>
    %191 = vector.broadcast %190 : vector<4x8x1xf32> to vector<4x8x8xf32>
    %192 = arith.subf %188, %191 : vector<4x8x8xf32>
    %193 = math.exp %192 : vector<4x8x8xf32>
    %cst_48 = arith.constant dense<0.000000e+00> : vector<4x8xf32>
    %194 = vector.multi_reduction <add>, %193, %cst_48 [2] : vector<4x8x8xf32> to vector<4x8xf32>
    %195 = vector.shape_cast %194 : vector<4x8xf32> to vector<4x8x1xf32>
    %196 = tpu.reciprocal %195 {approx = true} : vector<4x8x1xf32> -> vector<4x8x1xf32>
    %197 = vector.broadcast %196 : vector<4x8x1xf32> to vector<4x8x8xf32>
    %198 = arith.mulf %193, %197 : vector<4x8x8xf32>
    "tpu.trace_start"() <{level = 10 : i32, message = "hqk,khd->qhd"}> : () -> ()
    %cst_49 = arith.constant dense<0.000000e+00> : vector<4x8x8xf32>
    %199 = tpu.matmul %183, %198, %cst_49 {dimension_numbers = #tpu.dot_dimension_numbers<[0], [2], [2], [1], [0, 1, 0, 2, 1, 1], [1], [0]>} : vector<8x4x8xf32>, vector<4x8x8xf32>, vector<4x8x8xf32> -> vector<4x8x8xf32>
    %200 = tpu.transpose %199, [2, 0, 1] : vector<4x8x8xf32> -> vector<8x4x8xf32>
    "tpu.trace_stop"() : () -> ()
    %201 = vector.shape_cast %200 : vector<8x4x8xf32> to vector<8x32xf32>
    %202 = tpu.concatenate %177, %201 in 0 : vector<8x32xf32>, vector<8x32xf32> -> vector<16x32xf32>
    %cst_50 = arith.constant dense<0.000000e+00> : vector<16x32xf32>
    %203 = tpu.matmul %202, %138, %cst_50 {dimension_numbers = #tpu.dot_dimension_numbers<[1], [0], [0], [1], [0, 0, 1, 1], [], []>} : vector<16x32xf32>, vector<32x32xf32>, vector<16x32xf32> -> vector<16x32xf32>
    %204 = vector.broadcast %144 : vector<1x32xf32> to vector<16x32xf32>
    %205 = arith.addf %203, %204 : vector<16x32xf32>
    %206 = arith.addf %134, %205 : vector<16x32xf32>
    %cst_51 = arith.constant dense<0.000000e+00> : vector<16xf32>
    %207 = vector.multi_reduction <add>, %206, %cst_51 [1] : vector<16x32xf32> to vector<16xf32>
    %208 = vector.shape_cast %207 : vector<16xf32> to vector<16x1xf32>
    %cst_52 = arith.constant 3.200000e+01 : f32
    %209 = vector.broadcast %cst_52 : f32 to vector<16x1xf32>
    %210 = arith.divf %208, %209 : vector<16x1xf32>
    %211 = vector.broadcast %210 : vector<16x1xf32> to vector<16x32xf32>
    %212 = arith.subf %206, %211 : vector<16x32xf32>
    %213 = arith.mulf %212, %212 : vector<16x32xf32>
    %cst_53 = arith.constant dense<0.000000e+00> : vector<16xf32>
    %214 = vector.multi_reduction <add>, %213, %cst_53 [1] : vector<16x32xf32> to vector<16xf32>
    %215 = vector.shape_cast %214 : vector<16xf32> to vector<16x1xf32>
    %cst_54 = arith.constant 3.200000e+01 : f32
    %216 = vector.broadcast %cst_54 : f32 to vector<16x1xf32>
    %217 = arith.divf %215, %216 : vector<16x1xf32>
    %218 = vector.broadcast %210 : vector<16x1xf32> to vector<16x32xf32>
    %219 = arith.subf %206, %218 : vector<16x32xf32>
    %cst_55 = arith.constant 9.99999974E-6 : f32
    %220 = vector.broadcast %cst_55 : f32 to vector<16x1xf32>
    %221 = arith.addf %217, %220 : vector<16x1xf32>
    %222 = math.rsqrt %221 : vector<16x1xf32>
    %223 = vector.broadcast %222 : vector<16x1xf32> to vector<16x32xf32>
    %224 = arith.mulf %219, %223 : vector<16x32xf32>
    %225 = vector.broadcast %147 : vector<1x32xf32> to vector<16x32xf32>
    %226 = arith.mulf %224, %225 : vector<16x32xf32>
    %227 = vector.broadcast %148 : vector<1x32xf32> to vector<16x32xf32>
    %228 = arith.addf %226, %227 : vector<16x32xf32>
    %cst_56 = arith.constant dense<0.000000e+00> : vector<16x128xf32>
    %229 = tpu.matmul %228, %139, %cst_56 {dimension_numbers = #tpu.dot_dimension_numbers<[1], [0], [0], [1], [0, 0, 1, 1], [], []>} : vector<16x32xf32>, vector<32x128xf32>, vector<16x128xf32> -> vector<16x128xf32>
    %230 = vector.broadcast %145 : vector<1x128xf32> to vector<16x128xf32>
    %231 = arith.addf %229, %230 : vector<16x128xf32>
    %cst_57 = arith.constant 0.000000e+00 : f32
    %232 = vector.broadcast %cst_57 : f32 to vector<16x128xf32>
    %233 = arith.maximumf %231, %232 : vector<16x128xf32>
    %cst_58 = arith.constant dense<0.000000e+00> : vector<16x32xf32>
    %234 = tpu.matmul %233, %141, %cst_58 {dimension_numbers = #tpu.dot_dimension_numbers<[1], [0], [0], [1], [0, 0, 1, 1], [], []>} : vector<16x128xf32>, vector<128x32xf32>, vector<16x32xf32> -> vector<16x32xf32>
    %235 = vector.broadcast %146 : vector<1x32xf32> to vector<16x32xf32>
    %236 = arith.addf %234, %235 : vector<16x32xf32>
    %237 = arith.addf %228, %236 : vector<16x32xf32>
    %cst_59 = arith.constant dense<0.000000e+00> : vector<16xf32>
    %238 = vector.multi_reduction <add>, %237, %cst_59 [1] : vector<16x32xf32> to vector<16xf32>
    %239 = vector.shape_cast %238 : vector<16xf32> to vector<16x1xf32>
    %cst_60 = arith.constant 3.200000e+01 : f32
    %240 = vector.broadcast %cst_60 : f32 to vector<16x1xf32>
    %241 = arith.divf %239, %240 : vector<16x1xf32>
    %242 = vector.broadcast %241 : vector<16x1xf32> to vector<16x32xf32>
    %243 = arith.subf %237, %242 : vector<16x32xf32>
    %244 = arith.mulf %243, %243 : vector<16x32xf32>
    %cst_61 = arith.constant dense<0.000000e+00> : vector<16xf32>
    %245 = vector.multi_reduction <add>, %244, %cst_61 [1] : vector<16x32xf32> to vector<16xf32>
    %246 = vector.shape_cast %245 : vector<16xf32> to vector<16x1xf32>
    %cst_62 = arith.constant 3.200000e+01 : f32
    %247 = vector.broadcast %cst_62 : f32 to vector<16x1xf32>
    %248 = arith.divf %246, %247 : vector<16x1xf32>
    %249 = vector.broadcast %241 : vector<16x1xf32> to vector<16x32xf32>
    %250 = arith.subf %237, %249 : vector<16x32xf32>
    %cst_63 = arith.constant 9.99999974E-6 : f32
    %251 = vector.broadcast %cst_63 : f32 to vector<16x1xf32>
    %252 = arith.addf %248, %251 : vector<16x1xf32>
    %253 = math.rsqrt %252 : vector<16x1xf32>
    %254 = vector.broadcast %253 : vector<16x1xf32> to vector<16x32xf32>
    %255 = arith.mulf %250, %254 : vector<16x32xf32>
    %256 = vector.broadcast %149 : vector<1x32xf32> to vector<16x32xf32>
    %257 = arith.mulf %255, %256 : vector<16x32xf32>
    %258 = vector.broadcast %150 : vector<1x32xf32> to vector<16x32xf32>
    %259 = arith.addf %257, %258 : vector<16x32xf32>
    %260 = vector.extract_strided_slice %259 {offsets = [0, 0], sizes = [8, 32], strides = [1, 1]} : vector<16x32xf32> to vector<8x32xf32>
    %cst_64 = arith.constant dense<0.000000e+00> : vector<32xf32>
    %261 = vector.multi_reduction <add>, %260, %cst_64 [0] : vector<8x32xf32> to vector<32xf32>
    %262 = vector.shape_cast %261 : vector<32xf32> to vector<1x32xf32>
    %263 = vector.extract_strided_slice %259 {offsets = [8, 0], sizes = [8, 32], strides = [1, 1]} : vector<16x32xf32> to vector<8x32xf32>
    %cst_65 = arith.constant dense<0.000000e+00> : vector<32xf32>
    %264 = vector.multi_reduction <add>, %263, %cst_65 [0] : vector<8x32xf32> to vector<32xf32>
    %265 = vector.shape_cast %264 : vector<32xf32> to vector<1x32xf32>
    %266 = tpu.concatenate %262, %265 in 0 : vector<1x32xf32>, vector<1x32xf32> -> vector<2x32xf32>
    %cst_66 = arith.constant 1.250000e-01 : f32
    %267 = vector.broadcast %cst_66 : f32 to vector<2x32xf32>
    %268 = arith.mulf %266, %267 : vector<2x32xf32>
    %269 = vector.extract_strided_slice %9 {offsets = [16, 0], sizes = [32, 128], strides = [1, 1]} : vector<56x128xf32> to vector<32x128xf32>
    %270 = vector.extract_strided_slice %9 {offsets = [48, 0], sizes = [1, 128], strides = [1, 1]} : vector<56x128xf32> to vector<1x128xf32>
    %cst_67 = arith.constant dense<0.000000e+00> : vector<2x128xf32>
    %271 = tpu.matmul %268, %269, %cst_67 {dimension_numbers = #tpu.dot_dimension_numbers<[1], [0], [0], [1], [0, 0, 1, 1], [], []>} : vector<2x32xf32>, vector<32x128xf32>, vector<2x128xf32> -> vector<2x128xf32>
    %272 = vector.broadcast %270 : vector<1x128xf32> to vector<2x128xf32>
    %273 = arith.addf %271, %272 : vector<2x128xf32>
    %c0_68 = arith.constant 0 : index
    %c0_69 = arith.constant 0 : index
    %274 = vector.load %arg6[%c0_68, %c0_69] : memref<2x128xf32, #tpu.memory_space<vmem>>, vector<2x128xf32>
    tpu.vector_store %arg6[%c0_68, %c0_69], %273 {strides = array<i32>} : memref<2x128xf32, #tpu.memory_space<vmem>>, vector<2x128xf32>,
    return
  }
}

</mosaic_0001>

<llo_original>
// kernel: forward.1
$region0: #{forward.1}
  #allocation0 [shape = 'u32[]', space=smem, size = 0x4, offset = 0x4, fixed_abs, tag = 'smem constant byte address 0x4 - core index']
  #allocation1 [shape = 'u32[144,128]{1,0:T(1,128)}', space=vmem, size = 0x12000, scoped, tag = 'internal scratch']
  %s0 = inlined_call_operand.vmem [shape: s32[16,1], index: 0, kind: input, shape index: {}]
  %s1 = inlined_call_operand.vmem [shape: f32[2,8], index: 1, kind: input, shape index: {}]
  %s2 = inlined_call_operand.vmem [shape: f32[100,32], index: 2, kind: input, shape index: {}]
  %s3 = inlined_call_operand.vmem [shape: f32[2,32,256], index: 3, kind: input, shape index: {}]
  %s4 = inlined_call_operand.vmem [shape: f32[2,128,32], index: 4, kind: input, shape index: {}]
  %s5 = inlined_call_operand.vmem [shape: f32[56,128], index: 5, kind: input, shape index: {}]
  %s6 = inlined_call_operand.hbm [shape: f32[2,128], index: 6, kind: output, shape index: {}]
  %s7 = sld [smem:[#allocation0]]
  $region34: #{forward.1} parent=0
    _
  %s9 = ssub.s32 1, %s7
  %s10 = scalar_select 0, %s9, %s7
  $region1: #{forward.1} parent=0
    #allocation2 [shape = 'u8[1024]{0}', space=vmem, size = 0x400, scoped, tag = 'output window, operand 0, single buffered']
    #allocation3 [shape = 's32[1]{0}', space=sflag, size = 0x4, scoped, tag = 'scoped memory for forward.1']
    %11 = vsyncpa [#allocation3], 0
    // Predicated region
    $region2: #{forward.1} parent=1 // pred_check
      _
    $region3: #{forward.1} parent=1 // pred_check_branch
      %13 = sbr.rel (0) target = $region5
    $region4: #{forward.1} parent=1 // pred_region
      _
    $region5: #{forward.1} parent=1 // pred_fallthru
      _
    // Predicated region
    $region6: #{forward.1} parent=1 // pred_check
      _
    $region7: #{forward.1} parent=1 // pred_check_branch
      %15 = sbr.rel (0) target = $region9
    $region8: #{forward.1} parent=1 // pred_region
      _
    $region9: #{forward.1} parent=1 // pred_fallthru
      _
    // Predicated region
    $region10: #{forward.1} parent=1 // pred_check
      _
    $region11: #{forward.1} parent=1 // pred_check_branch
      %17 = sbr.rel (0) target = $region13
    $region12: #{forward.1} parent=1 // pred_region
      _
    $region13: #{forward.1} parent=1 // pred_fallthru
      _
    // Predicated region
    $region14: #{forward.1} parent=1 // pred_check
      _
    $region15: #{forward.1} parent=1 // pred_check_branch
      %19 = sbr.rel (0) target = $region17
    $region16: #{forward.1} parent=1 // pred_region
      _
    $region17: #{forward.1} parent=1 // pred_fallthru
      _
    // Predicated region
    $region18: #{forward.1} parent=1 // pred_check
      _
    $region19: #{forward.1} parent=1 // pred_check_branch
      %21 = sbr.rel (0) target = $region21
    $region20: #{forward.1} parent=1 // pred_region
      _
    $region21: #{forward.1} parent=1 // pred_fallthru
      _
    // Predicated region
    $region22: #{forward.1} parent=1 // pred_check
      _
    $region23: #{forward.1} parent=1 // pred_check_branch
      %23 = sbr.rel (0) target = $region25
    $region24: #{forward.1} parent=1 // pred_region
      _
    $region25: #{forward.1} parent=1 // pred_fallthru
      _
    %v24 = vld [vmem:[%s0] sm:$0xff]
    %v25 = vld [vmem:[%s0 + $0x8] sm:$0xff]
    %v26 = vlaneseq
    %v27 = vand.u32 %v26, 127
    %28 = vset.pattern.permute.xlu0 0
    %29 = vperm.xlu0 %28, %v24
    %v30 = vpop.permute.xlu0 %29
    %31 = vset.pattern.permute.xlu0 0
    %32 = vperm.xlu0 %31, %v25
    %v33 = vpop.permute.xlu0 %32
    %vm34 = vcmp.eq.s32.totalorder %v27, %v30
    %vm35 = vcmp.eq.s32.totalorder %v27, %v33
    %v36 = vsel %vm34, 1, 0
    %v37 = vsel %vm35, 1, 0
    %v38 = vcvt.s32.f32 %v36
    %v39 = vcvt.s32.f32 %v37
    %v40 = vld [vmem:[%s2] sm:$0xff]
    %v41 = vld [vmem:[%s2 + $0x8] sm:$0xff]
    %v42 = vld [vmem:[%s2 + $0x10] sm:$0xff]
    %v43 = vld [vmem:[%s2 + $0x18] sm:$0xff]
    %v44 = vld [vmem:[%s2 + $0x20] sm:$0xff]
    %v45 = vld [vmem:[%s2 + $0x28] sm:$0xff]
    %v46 = vld [vmem:[%s2 + $0x30] sm:$0xff]
    %v47 = vld [vmem:[%s2 + $0x38] sm:$0xff]
    %v48 = vld [vmem:[%s2 + $0x40] sm:$0xff]
    %v49 = vld [vmem:[%s2 + $0x48] sm:$0xff]
    %v50 = vld [vmem:[%s2 + $0x50] sm:$0xff]
    %v51 = vld [vmem:[%s2 + $0x58] sm:$0xff]
    %v52 = vld [vmem:[%s2 + $0x60] sm:$0xf]
    %vm53 = vcmask 818176
    %v55 = vsel %vm53, %v38, 0
    %v58 = vsel %vm53, %v39, 0
    %vm60 = vcmask 1043456
    %v62 = vsel %vm60, %v52, 0
    %64 = vmatprep.subr.mxu0 0.0
    %65 = vmatpush1.msra.mxu0 %v40
    %66 = vmatprep.subr.mxu0 0.0
    %67 = vmatpush1.msra.mxu0 %v41
    %68 = vmatprep.subr.mxu0 0.0
    %69 = vmatpush1.msra.mxu0 %v42
    %70 = vmatprep.subr.mxu0 0.0
    %71 = vmatpush1.msra.mxu0 %v43
    %72 = vmatprep.subr.mxu0 0.0
    %73 = vmatpush1.msra.mxu0 %v44
    %74 = vmatprep.subr.mxu0 0.0
    %75 = vmatpush1.msra.mxu0 %v45
    %76 = vmatprep.subr.mxu0 0.0
    %77 = vmatpush1.msra.mxu0 %v46
    %78 = vmatprep.subr.mxu0 0.0
    %79 = vmatpush1.msra.mxu0 %v47
    %80 = vmatprep.subr.mxu0 0.0
    %81 = vmatpush1.msra.mxu0 %v48
    %82 = vmatprep.subr.mxu0 0.0
    %83 = vmatpush1.msra.mxu0 %v49
    %84 = vmatprep.subr.mxu0 0.0
    %85 = vmatpush1.msra.mxu0 %v50
    %86 = vmatprep.subr.mxu0 0.0
    %87 = vmatpush1.msra.mxu0 %v51
    %88 = vmatprep.subr.mxu0 0.0
    %89 = vmatpush1.msra.mxu0 %v62
    %90 = vmatprep.subr.mxu0 0.0
    %91 = vmatpush1.msra.mxu0 0.0
    %92 = vmatprep.subr.mxu0 0.0
    %93 = vmatpush1.msra.mxu0 0.0
    %94 = vmatprep.subr.mxu0 0.0
    %95 = vmatpush1.msra.mxu0 0.0
    %96 = vmatprep.subr.mxu0 0.0
    %97 = vmatpush1.msra.mxu0 0.0
    %98 = vmatprep.subr.mxu0 0.0
    %99 = vmatpush1.msra.mxu0 0.0
    %100 = vmatprep.subr.mxu0 0.0
    %101 = vmatpush1.msra.mxu0 0.0
    %102 = vmatprep.subr.mxu0 0.0
    %103 = vmatpush1.msra.mxu0 0.0
    %104 = vmatprep.subr.mxu0 0.0
    %105 = vmatpush1.msra.mxu0 0.0
    %106 = vmatprep.subr.mxu0 0.0
    %107 = vmatpush1.msra.mxu0 0.0
    %108 = vmatprep.subr.mxu0 0.0
    %109 = vmatpush1.msra.mxu0 0.0
    %110 = vmatprep.subr.mxu0 0.0
    %111 = vmatpush1.msra.mxu0 0.0
    %112 = vmatprep.subr.mxu0 0.0
    %113 = vmatpush1.msra.mxu0 0.0
    %114 = vmatprep.subr.mxu0 0.0
    %115 = vmatpush1.msra.mxu0 0.0
    %116 = vmatprep.subr.mxu0 0.0
    %117 = vmatpush1.msra.mxu0 0.0
    %118 = vmatprep.subr.mxu0 0.0
    %119 = vmatpush1.msra.mxu0 0.0
    %120 = vmatprep.subr.mxu0 0.0
    %121 = vmatpush1.msra.mxu0 0.0
    %122 = vmatprep.subr.mxu0 0.0
    %123 = vmatpush1.msra.mxu0 0.0
    %124 = vmatprep.subr.mxu0 0.0
    %125 = vmatpush1.msra.mxu0 0.0
    %126 = vmatprep.subr.mxu0 0.0
    %127 = vmatpush1.msra.mxu0 0.0
    %128 = vmatprep.mubr.f32.mxu0 0.0
    %129 = vmatmul.mubr.f32.gmra.mrb[0].mxu0 %v55
    %v130 = vpop.f32.mrb[0].mxu0
    %v131 = vadd.f32 0.0, %v130
    %v132 = vpop.f32.mrb[0].mxu0
    %133 = vmatprep.mubr.f32.mxu0 0.0
    %134 = vmatmul.mubr.f32.gmra.mrb[0].mxu0 %v58
    %v135 = vpop.f32.mrb[0].mxu0
    %v136 = vadd.f32 0.0, %v135
    %v137 = vpop.f32.mrb[0].mxu0
    %138 = vdwg.mxu0
    %v139 = vld [vmem:[%s1] sm:$0x3]
    %v140 = vld [vmem:[%s5] sm:$0xff]
    %v141 = vld [vmem:[%s5 + $0x8] sm:$0xff]
    %v142 = vld [vmem:[%s5 + $0x10] sm:$0xff]
    %v143 = vld [vmem:[%s5 + $0x18] sm:$0xff]
    %v144 = vld [vmem:[%s5 + $0x20] sm:$0xff]
    %v145 = vld [vmem:[%s5 + $0x28] sm:$0xff]
    %v146 = vld [vmem:[%s5 + $0x30] sm:$0xff]
    %v147 = vld [vmem:[%s3] sm:$0xff]
    %v148 = vld [vmem:[%s3 + $0x8] sm:$0xff]
    %v149 = vld [vmem:[%s3 + $0x10] sm:$0xff]
    %v150 = vld [vmem:[%s3 + $0x18] sm:$0xff]
    %v151 = vld [vmem:[%s3 + $0x20] sm:$0xff]
    %v152 = vld [vmem:[%s3 + $0x28] sm:$0xff]
    %v153 = vld [vmem:[%s3 + $0x30] sm:$0xff]
    %v154 = vld [vmem:[%s3 + $0x38] sm:$0xff]
    %v155 = vld [vmem:[%s4] sm:$0xff]
    %v156 = vld [vmem:[%s4 + $0x8] sm:$0xff]
    %v157 = vld [vmem:[%s4 + $0x10] sm:$0xff]
    %v158 = vld [vmem:[%s4 + $0x18] sm:$0xff]
    %v159 = vld [vmem:[%s4 + $0x20] sm:$0xff]
    %v160 = vld [vmem:[%s4 + $0x28] sm:$0xff]
    %v161 = vld [vmem:[%s4 + $0x30] sm:$0xff]
    %v162 = vld [vmem:[%s4 + $0x38] sm:$0xff]
    %v163 = vld [vmem:[%s4 + $0x40] sm:$0xff]
    %v164 = vld [vmem:[%s4 + $0x48] sm:$0xff]
    %v165 = vld [vmem:[%s4 + $0x50] sm:$0xff]
    %v166 = vld [vmem:[%s4 + $0x58] sm:$0xff]
    %v167 = vld [vmem:[%s4 + $0x60] sm:$0xff]
    %v168 = vld [vmem:[%s4 + $0x68] sm:$0xff]
    %v169 = vld [vmem:[%s4 + $0x70] sm:$0xff]
    %v170 = vld [vmem:[%s4 + $0x78] sm:$0xff]
    %v171 = vlaneseq
    %v172 = vshrl.u32 %v171, 7
    %v173 = vsub.s32 0, %v172
    %v174 = vrot.slane %v140, %v173
    %vm175 = vcmask 261120
    %v177 = vsel %vm175, %v131, 0
    %v180 = vsel %vm175, %v136, 0
    %182 = vmatprep.subr.mxu0 0.0
    %183 = vmatpush1.msra.mxu0 %v147
    %184 = vmatprep.subr.mxu0 0.0
    %185 = vmatpush1.msra.mxu0 %v149
    %186 = vmatprep.subr.mxu0 0.0
    %187 = vmatpush1.msra.mxu0 %v151
    %188 = vmatprep.subr.mxu0 0.0
    %189 = vmatpush1.msra.mxu0 %v153
    %190 = vmatprep.subr.mxu0 0.0
    %191 = vmatpush1.msra.mxu0 0.0
    %192 = vmatprep.subr.mxu0 0.0
    %193 = vmatpush1.msra.mxu0 0.0
    %194 = vmatprep.subr.mxu0 0.0
    %195 = vmatpush1.msra.mxu0 0.0
    %196 = vmatprep.subr.mxu0 0.0
    %197 = vmatpush1.msra.mxu0 0.0
    %198 = vmatprep.subr.mxu0 0.0
    %199 = vmatpush1.msra.mxu0 0.0
    %200 = vmatprep.subr.mxu0 0.0
    %201 = vmatpush1.msra.mxu0 0.0
    %202 = vmatprep.subr.mxu0 0.0
    %203 = vmatpush1.msra.mxu0 0.0
    %204 = vmatprep.subr.mxu0 0.0
    %205 = vmatpush1.msra.mxu0 0.0
    %206 = vmatprep.subr.mxu0 0.0
    %207 = vmatpush1.msra.mxu0 0.0
    %208 = vmatprep.subr.mxu0 0.0
    %209 = vmatpush1.msra.mxu0 0.0
    %210 = vmatprep.subr.mxu0 0.0
    %211 = vmatpush1.msra.mxu0 0.0
    %212 = vmatprep.subr.mxu0 0.0
    %213 = vmatpush1.msra.mxu0 0.0
    %214 = vmatprep.subr.mxu0 0.0
    %215 = vmatpush1.msra.mxu0 0.0
    %216 = vmatprep.subr.mxu0 0.0
    %217 = vmatpush1.msra.mxu0 0.0
    %218 = vmatprep.subr.mxu0 0.0
    %219 = vmatpush1.msra.mxu0 0.0
    %220 = vmatprep.subr.mxu0 0.0
    %221 = vmatpush1.msra.mxu0 0.0
    %222 = vmatprep.subr.mxu0 0.0
    %223 = vmatpush1.msra.mxu0 0.0
    %224 = vmatprep.subr.mxu0 0.0
    %225 = vmatpush1.msra.mxu0 0.0
    %226 = vmatprep.subr.mxu0 0.0
    %227 = vmatpush1.msra.mxu0 0.0
    %228 = vmatprep.subr.mxu0 0.0
    %229 = vmatpush1.msra.mxu0 0.0
    %230 = vmatprep.subr.mxu0 0.0
    %231 = vmatpush1.msra.mxu0 0.0
    %232 = vmatprep.subr.mxu0 0.0
    %233 = vmatpush1.msra.mxu0 0.0
    %234 = vmatprep.subr.mxu0 0.0
    %235 = vmatpush1.msra.mxu0 0.0
    %236 = vmatprep.subr.mxu0 0.0
    %237 = vmatpush1.msra.mxu0 0.0
    %238 = vmatprep.subr.mxu0 0.0
    %239 = vmatpush1.msra.mxu0 0.0
    %240 = vmatprep.subr.mxu0 0.0
    %241 = vmatpush1.msra.mxu0 0.0
    %242 = vmatprep.subr.mxu0 0.0
    %243 = vmatpush1.msra.mxu0 0.0
    %244 = vmatprep.subr.mxu0 0.0
    %245 = vmatpush1.msra.mxu0 0.0
    %246 = vmatprep.mubr.f32.mxu0 0.0
    %247 = vmatmul.mubr.f32.gmra.mrb[0].mxu0 %v177
    %v248 = vpop.f32.mrb[0].mxu0
    %v249 = vadd.f32 %v174, %v248
    %v250 = vpop.f32.mrb[0].mxu0
    %251 = vmatprep.mubr.f32.mxu0 0.0
    %252 = vmatmul.mubr.f32.gmra.mrb[0].mxu0 %v180
    %v253 = vpop.f32.mrb[0].mxu0
    %v254 = vadd.f32 %v174, %v253
    %v255 = vpop.f32.mrb[0].mxu0
    %256 = vdwg.mxu0
    %258 = vrot.lane.b32.xlu0 %v249, 120
    %v259 = vpop.permute.xlu0 %258
    %260 = vrot.lane.b32.xlu0 %v249, 112
    %v261 = vpop.permute.xlu0 %260
    %262 = vrot.lane.b32.xlu0 %v249, 104
    %v263 = vpop.permute.xlu0 %262
    %v264 = vlaneseq
    %v265 = vshrl.u32 %v264, 7
    %v266 = vsub.s32 0, %v265
    %v267 = vrot.slane %v139, %v266
    %268 = vrot.lane.b32.xlu0 %v249, 96
    %v269 = vpop.permute.xlu0 %268
    %270 = vrot.lane.b32.xlu0 %v259, 96
    %v271 = vpop.permute.xlu0 %270
    %272 = vrot.lane.b32.xlu0 %v261, 96
    %v273 = vpop.permute.xlu0 %272
    %274 = vrot.lane.b32.xlu0 %v263, 96
    %v275 = vpop.permute.xlu0 %274
    %280 = vxpose.xlu0.b32.start [1/16] %v269, 128
    %281 = vxpose.xlu0.b32.cont [2/16] 0.0, 128
    %282 = vxpose.xlu0.b32.cont [3/16] 0.0, 128
    %283 = vxpose.xlu0.b32.cont [4/16] 0.0, 128
    %284 = vxpose.xlu0.b32.cont [5/16] 0.0, 128
    %285 = vxpose.xlu0.b32.cont [6/16] 0.0, 128
    %286 = vxpose.xlu0.b32.cont [7/16] 0.0, 128
    %287 = vxpose.xlu0.b32.cont [8/16] 0.0, 128
    %288 = vxpose.xlu0.b32.cont [9/16] 0.0, 128
    %289 = vxpose.xlu0.b32.cont [10/16] 0.0, 128
    %290 = vxpose.xlu0.b32.cont [11/16] 0.0, 128
    %291 = vxpose.xlu0.b32.cont [12/16] 0.0, 128
    %292 = vxpose.xlu0.b32.cont [13/16] 0.0, 128
    %293 = vxpose.xlu0.b32.cont [14/16] 0.0, 128
    %294 = vxpose.xlu0.b32.cont [15/16] 0.0, 128
    %295 = vxpose.xlu0.b32.end [16/16] 0.0, 128
    %v296 = vpop.trf.xlu0
    %v297 = vpop.trf.xlu0
    %v298 = vpop.trf.xlu0
    %v299 = vpop.trf.xlu0
    %v300 = vpop.trf.xlu0
    %v301 = vpop.trf.xlu0
    %v302 = vpop.trf.xlu0
    %v303 = vpop.trf.xlu0
    %v304 = vpop.trf.xlu0
    %v305 = vpop.trf.xlu0
    %v306 = vpop.trf.xlu0
    %v307 = vpop.trf.xlu0
    %v308 = vpop.trf.xlu0
    %v309 = vpop.trf.xlu0
    %v310 = vpop.trf.xlu0
    %v311 = vpop.trf.xlu0
    %312 = vxpose.xlu0.b32.start [1/16] %v271, 128
    %313 = vxpose.xlu0.b32.cont [2/16] 0.0, 128
    %314 = vxpose.xlu0.b32.cont [3/16] 0.0, 128
    %315 = vxpose.xlu0.b32.cont [4/16] 0.0, 128
    %316 = vxpose.xlu0.b32.cont [5/16] 0.0, 128
    %317 = vxpose.xlu0.b32.cont [6/16] 0.0, 128
    %318 = vxpose.xlu0.b32.cont [7/16] 0.0, 128
    %319 = vxpose.xlu0.b32.cont [8/16] 0.0, 128
    %320 = vxpose.xlu0.b32.cont [9/16] 0.0, 128
    %321 = vxpose.xlu0.b32.cont [10/16] 0.0, 128
    %322 = vxpose.xlu0.b32.cont [11/16] 0.0, 128
    %323 = vxpose.xlu0.b32.cont [12/16] 0.0, 128
    %324 = vxpose.xlu0.b32.cont [13/16] 0.0, 128
    %325 = vxpose.xlu0.b32.cont [14/16] 0.0, 128
    %326 = vxpose.xlu0.b32.cont [15/16] 0.0, 128
    %327 = vxpose.xlu0.b32.end [16/16] 0.0, 128
    %v328 = vpop.trf.xlu0
    %v329 = vpop.trf.xlu0
    %v330 = vpop.trf.xlu0
    %v331 = vpop.trf.xlu0
    %v332 = vpop.trf.xlu0
    %v333 = vpop.trf.xlu0
    %v334 = vpop.trf.xlu0
    %v335 = vpop.trf.xlu0
    %v336 = vpop.trf.xlu0
    %v337 = vpop.trf.xlu0
    %v338 = vpop.trf.xlu0
    %v339 = vpop.trf.xlu0
    %v340 = vpop.trf.xlu0
    %v341 = vpop.trf.xlu0
    %v342 = vpop.trf.xlu0
    %v343 = vpop.trf.xlu0
    %344 = vxpose.xlu0.b32.start [1/16] %v273, 128
    %345 = vxpose.xlu0.b32.cont [2/16] 0.0, 128
    %346 = vxpose.xlu0.b32.cont [3/16] 0.0, 128
    %347 = vxpose.xlu0.b32.cont [4/16] 0.0, 128
    %348 = vxpose.xlu0.b32.cont [5/16] 0.0, 128
    %349 = vxpose.xlu0.b32.cont [6/16] 0.0, 128
    %350 = vxpose.xlu0.b32.cont [7/16] 0.0, 128
    %351 = vxpose.xlu0.b32.cont [8/16] 0.0, 128
    %352 = vxpose.xlu0.b32.cont [9/16] 0.0, 128
    %353 = vxpose.xlu0.b32.cont [10/16] 0.0, 128
    %354 = vxpose.xlu0.b32.cont [11/16] 0.0, 128
    %355 = vxpose.xlu0.b32.cont [12/16] 0.0, 128
    %356 = vxpose.xlu0.b32.cont [13/16] 0.0, 128
    %357 = vxpose.xlu0.b32.cont [14/16] 0.0, 128
    %358 = vxpose.xlu0.b32.cont [15/16] 0.0, 128
    %359 = vxpose.xlu0.b32.end [16/16] 0.0, 128
    %v360 = vpop.trf.xlu0
    %v361 = vpop.trf.xlu0
    %v362 = vpop.trf.xlu0
    %v363 = vpop.trf.xlu0
    %v364 = vpop.trf.xlu0
    %v365 = vpop.trf.xlu0
    %v366 = vpop.trf.xlu0
    %v367 = vpop.trf.xlu0
    %v368 = vpop.trf.xlu0
    %v369 = vpop.trf.xlu0
    %v370 = vpop.trf.xlu0
    %v371 = vpop.trf.xlu0
    %v372 = vpop.trf.xlu0
    %v373 = vpop.trf.xlu0
    %v374 = vpop.trf.xlu0
    %v375 = vpop.trf.xlu0
    %376 = vxpose.xlu0.b32.start [1/16] %v275, 128
    %377 = vxpose.xlu0.b32.cont [2/16] 0.0, 128
    %378 = vxpose.xlu0.b32.cont [3/16] 0.0, 128
    %379 = vxpose.xlu0.b32.cont [4/16] 0.0, 128
    %380 = vxpose.xlu0.b32.cont [5/16] 0.0, 128
    %381 = vxpose.xlu0.b32.cont [6/16] 0.0, 128
    %382 = vxpose.xlu0.b32.cont [7/16] 0.0, 128
    %383 = vxpose.xlu0.b32.cont [8/16] 0.0, 128
    %384 = vxpose.xlu0.b32.cont [9/16] 0.0, 128
    %385 = vxpose.xlu0.b32.cont [10/16] 0.0, 128
    %386 = vxpose.xlu0.b32.cont [11/16] 0.0, 128
    %387 = vxpose.xlu0.b32.cont [12/16] 0.0, 128
    %388 = vxpose.xlu0.b32.cont [13/16] 0.0, 128
    %389 = vxpose.xlu0.b32.cont [14/16] 0.0, 128
    %390 = vxpose.xlu0.b32.cont [15/16] 0.0, 128
    %391 = vxpose.xlu0.b32.end [16/16] 0.0, 128
    %v392 = vpop.trf.xlu0
    %v393 = vpop.trf.xlu0
    %v394 = vpop.trf.xlu0
    %v395 = vpop.trf.xlu0
    %v396 = vpop.trf.xlu0
    %v397 = vpop.trf.xlu0
    %v398 = vpop.trf.xlu0
    %v399 = vpop.trf.xlu0
    %v400 = vpop.trf.xlu0
    %v401 = vpop.trf.xlu0
    %v402 = vpop.trf.xlu0
    %v403 = vpop.trf.xlu0
    %v404 = vpop.trf.xlu0
    %v405 = vpop.trf.xlu0
    %v406 = vpop.trf.xlu0
    %v407 = vpop.trf.xlu0
    %vm408 = vcmask 64512
    %v409 = vsel %vm408, %v249, 0
    %411 = vmatprep.subr.mxu0 0.0
    %412 = vmatpush1.msra.mxu0 %v296
    %413 = vmatprep.subr.mxu0 0.0
    %414 = vmatpush1.msra.mxu0 0.0
    %415 = vmatprep.subr.mxu0 0.0
    %416 = vmatpush1.msra.mxu0 0.0
    %417 = vmatprep.subr.mxu0 0.0
    %418 = vmatpush1.msra.mxu0 0.0
    %419 = vmatprep.subr.mxu0 0.0
    %420 = vmatpush1.msra.mxu0 0.0
    %421 = vmatprep.subr.mxu0 0.0
    %422 = vmatpush1.msra.mxu0 0.0
    %423 = vmatprep.subr.mxu0 0.0
    %424 = vmatpush1.msra.mxu0 0.0
    %425 = vmatprep.subr.mxu0 0.0
    %426 = vmatpush1.msra.mxu0 0.0
    %427 = vmatprep.subr.mxu0 0.0
    %428 = vmatpush1.msra.mxu0 0.0
    %429 = vmatprep.subr.mxu0 0.0
    %430 = vmatpush1.msra.mxu0 0.0
    %431 = vmatprep.subr.mxu0 0.0
    %432 = vmatpush1.msra.mxu0 0.0
    %433 = vmatprep.subr.mxu0 0.0
    %434 = vmatpush1.msra.mxu0 0.0
    %435 = vmatprep.subr.mxu0 0.0
    %436 = vmatpush1.msra.mxu0 0.0
    %437 = vmatprep.subr.mxu0 0.0
    %438 = vmatpush1.msra.mxu0 0.0
    %439 = vmatprep.subr.mxu0 0.0
    %440 = vmatpush1.msra.mxu0 0.0
    %441 = vmatprep.subr.mxu0 0.0
    %442 = vmatpush1.msra.mxu0 0.0
    %443 = vmatprep.subr.mxu0 0.0
    %444 = vmatpush1.msra.mxu0 0.0
    %445 = vmatprep.subr.mxu0 0.0
    %446 = vmatpush1.msra.mxu0 0.0
    %447 = vmatprep.subr.mxu0 0.0
    %448 = vmatpush1.msra.mxu0 0.0
    %449 = vmatprep.subr.mxu0 0.0
    %450 = vmatpush1.msra.mxu0 0.0
    %451 = vmatprep.subr.mxu0 0.0
    %452 = vmatpush1.msra.mxu0 0.0
    %453 = vmatprep.subr.mxu0 0.0
    %454 = vmatpush1.msra.mxu0 0.0
    %455 = vmatprep.subr.mxu0 0.0
    %456 = vmatpush1.msra.mxu0 0.0
    %457 = vmatprep.subr.mxu0 0.0
    %458 = vmatpush1.msra.mxu0 0.0
    %459 = vmatprep.subr.mxu0 0.0
    %460 = vmatpush1.msra.mxu0 0.0
    %461 = vmatprep.subr.mxu0 0.0
    %462 = vmatpush1.msra.mxu0 0.0
    %463 = vmatprep.subr.mxu0 0.0
    %464 = vmatpush1.msra.mxu0 0.0
    %465 = vmatprep.subr.mxu0 0.0
    %466 = vmatpush1.msra.mxu0 0.0
    %467 = vmatprep.subr.mxu0 0.0
    %468 = vmatpush1.msra.mxu0 0.0
    %469 = vmatprep.subr.mxu0 0.0
    %470 = vmatpush1.msra.mxu0 0.0
    %471 = vmatprep.subr.mxu0 0.0
    %472 = vmatpush1.msra.mxu0 0.0
    %473 = vmatprep.subr.mxu0 0.0
    %474 = vmatpush1.msra.mxu0 0.0
    %475 = vmatprep.mubr.f32.mxu0 0.0
    %476 = vmatmul.mubr.f32.gmra.mrb[0].mxu0 %v409
    %v477 = vpop.f32.mrb[0].mxu0
    %v478 = vadd.f32 %v267, %v477
    %v479 = vpop.f32.mrb[0].mxu0
    %480 = vdwg.mxu0
    %v481 = vsel %vm408, %v259, 0
    %483 = vmatprep.subr.mxu0 0.0
    %484 = vmatpush1.msra.mxu0 %v328
    %485 = vmatprep.subr.mxu0 0.0
    %486 = vmatpush1.msra.mxu0 0.0
    %487 = vmatprep.subr.mxu0 0.0
    %488 = vmatpush1.msra.mxu0 0.0
    %489 = vmatprep.subr.mxu0 0.0
    %490 = vmatpush1.msra.mxu0 0.0
    %491 = vmatprep.subr.mxu0 0.0
    %492 = vmatpush1.msra.mxu0 0.0
    %493 = vmatprep.subr.mxu0 0.0
    %494 = vmatpush1.msra.mxu0 0.0
    %495 = vmatprep.subr.mxu0 0.0
    %496 = vmatpush1.msra.mxu0 0.0
    %497 = vmatprep.subr.mxu0 0.0
    %498 = vmatpush1.msra.mxu0 0.0
    %499 = vmatprep.subr.mxu0 0.0
    %500 = vmatpush1.msra.mxu0 0.0
    %501 = vmatprep.subr.mxu0 0.0
    %502 = vmatpush1.msra.mxu0 0.0
    %503 = vmatprep.subr.mxu0 0.0
    %504 = vmatpush1.msra.mxu0 0.0
    %505 = vmatprep.subr.mxu0 0.0
    %506 = vmatpush1.msra.mxu0 0.0
    %507 = vmatprep.subr.mxu0 0.0
    %508 = vmatpush1.msra.mxu0 0.0
    %509 = vmatprep.subr.mxu0 0.0
    %510 = vmatpush1.msra.mxu0 0.0
    %511 = vmatprep.subr.mxu0 0.0
    %512 = vmatpush1.msra.mxu0 0.0
    %513 = vmatprep.subr.mxu0 0.0
    %514 = vmatpush1.msra.mxu0 0.0
    %515 = vmatprep.subr.mxu0 0.0
    %516 = vmatpush1.msra.mxu0 0.0
    %517 = vmatprep.subr.mxu0 0.0
    %518 = vmatpush1.msra.mxu0 0.0
    %519 = vmatprep.subr.mxu0 0.0
    %520 = vmatpush1.msra.mxu0 0.0
    %521 = vmatprep.subr.mxu0 0.0
    %522 = vmatpush1.msra.mxu0 0.0
    %523 = vmatprep.subr.mxu0 0.0
    %524 = vmatpush1.msra.mxu0 0.0
    %525 = vmatprep.subr.mxu0 0.0
    %526 = vmatpush1.msra.mxu0 0.0
    %527 = vmatprep.subr.mxu0 0.0
    %528 = vmatpush1.msra.mxu0 0.0
    %529 = vmatprep.subr.mxu0 0.0
    %530 = vmatpush1.msra.mxu0 0.0
    %531 = vmatprep.subr.mxu0 0.0
    %532 = vmatpush1.msra.mxu0 0.0
    %533 = vmatprep.subr.mxu0 0.0
    %534 = vmatpush1.msra.mxu0 0.0
    %535 = vmatprep.subr.mxu0 0.0
    %536 = vmatpush1.msra.mxu0 0.0
    %537 = vmatprep.subr.mxu0 0.0
    %538 = vmatpush1.msra.mxu0 0.0
    %539 = vmatprep.subr.mxu0 0.0
    %540 = vmatpush1.msra.mxu0 0.0
    %541 = vmatprep.subr.mxu0 0.0
    %542 = vmatpush1.msra.mxu0 0.0
    %543 = vmatprep.subr.mxu0 0.0
    %544 = vmatpush1.msra.mxu0 0.0
    %545 = vmatprep.subr.mxu0 0.0
    %546 = vmatpush1.msra.mxu0 0.0
    %547 = vmatprep.mubr.f32.mxu0 0.0
    %548 = vmatmul.mubr.f32.gmra.mrb[0].mxu0 %v481
    %v549 = vpop.f32.mrb[0].mxu0
    %v550 = vadd.f32 %v267, %v549
    %v551 = vpop.f32.mrb[0].mxu0
    %552 = vdwg.mxu0
    %v553 = vsel %vm408, %v261, 0
    %555 = vmatprep.subr.mxu0 0.0
    %556 = vmatpush1.msra.mxu0 %v360
    %557 = vmatprep.subr.mxu0 0.0
    %558 = vmatpush1.msra.mxu0 0.0
    %559 = vmatprep.subr.mxu0 0.0
    %560 = vmatpush1.msra.mxu0 0.0
    %561 = vmatprep.subr.mxu0 0.0
    %562 = vmatpush1.msra.mxu0 0.0
    %563 = vmatprep.subr.mxu0 0.0
    %564 = vmatpush1.msra.mxu0 0.0
    %565 = vmatprep.subr.mxu0 0.0
    %566 = vmatpush1.msra.mxu0 0.0
    %567 = vmatprep.subr.mxu0 0.0
    %568 = vmatpush1.msra.mxu0 0.0
    %569 = vmatprep.subr.mxu0 0.0
    %570 = vmatpush1.msra.mxu0 0.0
    %571 = vmatprep.subr.mxu0 0.0
    %572 = vmatpush1.msra.mxu0 0.0
    %573 = vmatprep.subr.mxu0 0.0
    %574 = vmatpush1.msra.mxu0 0.0
    %575 = vmatprep.subr.mxu0 0.0
    %576 = vmatpush1.msra.mxu0 0.0
    %577 = vmatprep.subr.mxu0 0.0
    %578 = vmatpush1.msra.mxu0 0.0
    %579 = vmatprep.subr.mxu0 0.0
    %580 = vmatpush1.msra.mxu0 0.0
    %581 = vmatprep.subr.mxu0 0.0
    %582 = vmatpush1.msra.mxu0 0.0
    %583 = vmatprep.subr.mxu0 0.0
    %584 = vmatpush1.msra.mxu0 0.0
    %585 = vmatprep.subr.mxu0 0.0
    %586 = vmatpush1.msra.mxu0 0.0
    %587 = vmatprep.subr.mxu0 0.0
    %588 = vmatpush1.msra.mxu0 0.0
    %589 = vmatprep.subr.mxu0 0.0
    %590 = vmatpush1.msra.mxu0 0.0
    %591 = vmatprep.subr.mxu0 0.0
    %592 = vmatpush1.msra.mxu0 0.0
    %593 = vmatprep.subr.mxu0 0.0
    %594 = vmatpush1.msra.mxu0 0.0
    %595 = vmatprep.subr.mxu0 0.0
    %596 = vmatpush1.msra.mxu0 0.0
    %597 = vmatprep.subr.mxu0 0.0
    %598 = vmatpush1.msra.mxu0 0.0
    %599 = vmatprep.subr.mxu0 0.0
    %600 = vmatpush1.msra.mxu0 0.0
    %601 = vmatprep.subr.mxu0 0.0
    %602 = vmatpush1.msra.mxu0 0.0
    %603 = vmatprep.subr.mxu0 0.0
    %604 = vmatpush1.msra.mxu0 0.0
    %605 = vmatprep.subr.mxu0 0.0
    %606 = vmatpush1.msra.mxu0 0.0
    %607 = vmatprep.subr.mxu0 0.0
    %608 = vmatpush1.msra.mxu0 0.0
    %609 = vmatprep.subr.mxu0 0.0
    %610 = vmatpush1.msra.mxu0 0.0
    %611 = vmatprep.subr.mxu0 0.0
    %612 = vmatpush1.msra.mxu0 0.0
    %613 = vmatprep.subr.mxu0 0.0
    %614 = vmatpush1.msra.mxu0 0.0
    %615 = vmatprep.subr.mxu0 0.0
    %616 = vmatpush1.msra.mxu0 0.0
    %617 = vmatprep.subr.mxu0 0.0
    %618 = vmatpush1.msra.mxu0 0.0
    %619 = vmatprep.mubr.f32.mxu0 0.0
    %620 = vmatmul.mubr.f32.gmra.mrb[0].mxu0 %v553
    %v621 = vpop.f32.mrb[0].mxu0
    %v622 = vadd.f32 %v267, %v621
    %v623 = vpop.f32.mrb[0].mxu0
    %624 = vdwg.mxu0
    %v625 = vsel %vm408, %v263, 0
    %627 = vmatprep.subr.mxu0 0.0
    %628 = vmatpush1.msra.mxu0 %v392
    %629 = vmatprep.subr.mxu0 0.0
    %630 = vmatpush1.msra.mxu0 0.0
    %631 = vmatprep.subr.mxu0 0.0
    %632 = vmatpush1.msra.mxu0 0.0
    %633 = vmatprep.subr.mxu0 0.0
    %634 = vmatpush1.msra.mxu0 0.0
    %635 = vmatprep.subr.mxu0 0.0
    %636 = vmatpush1.msra.mxu0 0.0
    %637 = vmatprep.subr.mxu0 0.0
    %638 = vmatpush1.msra.mxu0 0.0
    %639 = vmatprep.subr.mxu0 0.0
    %640 = vmatpush1.msra.mxu0 0.0
    %641 = vmatprep.subr.mxu0 0.0
    %642 = vmatpush1.msra.mxu0 0.0
    %643 = vmatprep.subr.mxu0 0.0
    %644 = vmatpush1.msra.mxu0 0.0
    %645 = vmatprep.subr.mxu0 0.0
    %646 = vmatpush1.msra.mxu0 0.0
    %647 = vmatprep.subr.mxu0 0.0
    %648 = vmatpush1.msra.mxu0 0.0
    %649 = vmatprep.subr.mxu0 0.0
    %650 = vmatpush1.msra.mxu0 0.0
    %651 = vmatprep.subr.mxu0 0.0
    %652 = vmatpush1.msra.mxu0 0.0
    %653 = vmatprep.subr.mxu0 0.0
    %654 = vmatpush1.msra.mxu0 0.0
    %655 = vmatprep.subr.mxu0 0.0
    %656 = vmatpush1.msra.mxu0 0.0
    %657 = vmatprep.subr.mxu0 0.0
    %658 = vmatpush1.msra.mxu0 0.0
    %659 = vmatprep.subr.mxu0 0.0
    %660 = vmatpush1.msra.mxu0 0.0
    %661 = vmatprep.subr.mxu0 0.0
    %662 = vmatpush1.msra.mxu0 0.0
    %663 = vmatprep.subr.mxu0 0.0
    %664 = vmatpush1.msra.mxu0 0.0
    %665 = vmatprep.subr.mxu0 0.0
    %666 = vmatpush1.msra.mxu0 0.0
    %667 = vmatprep.subr.mxu0 0.0
    %668 = vmatpush1.msra.mxu0 0.0
    %669 = vmatprep.subr.mxu0 0.0
    %670 = vmatpush1.msra.mxu0 0.0
    %671 = vmatprep.subr.mxu0 0.0
    %672 = vmatpush1.msra.mxu0 0.0
    %673 = vmatprep.subr.mxu0 0.0
    %674 = vmatpush1.msra.mxu0 0.0
    %675 = vmatprep.subr.mxu0 0.0
    %676 = vmatpush1.msra.mxu0 0.0
    %677 = vmatprep.subr.mxu0 0.0
    %678 = vmatpush1.msra.mxu0 0.0
    %679 = vmatprep.subr.mxu0 0.0
    %680 = vmatpush1.msra.mxu0 0.0
    %681 = vmatprep.subr.mxu0 0.0
    %682 = vmatpush1.msra.mxu0 0.0
    %683 = vmatprep.subr.mxu0 0.0
    %684 = vmatpush1.msra.mxu0 0.0
    %685 = vmatprep.subr.mxu0 0.0
    %686 = vmatpush1.msra.mxu0 0.0
    %687 = vmatprep.subr.mxu0 0.0
    %688 = vmatpush1.msra.mxu0 0.0
    %689 = vmatprep.subr.mxu0 0.0
    %690 = vmatpush1.msra.mxu0 0.0
    %691 = vmatprep.mubr.f32.mxu0 0.0
    %692 = vmatmul.mubr.f32.gmra.mrb[0].mxu0 %v625
    %v693 = vpop.f32.mrb[0].mxu0
    %v694 = vadd.f32 %v267, %v693
    %v695 = vpop.f32.mrb[0].mxu0
    %696 = vdwg.mxu0
    %v697 = vsel %vm408, %v478, -inf
    %698 = vmax.xlane.f32.xlu0 %v697
    %v699 = vpop.xlane.xlu0 %698
    %v700 = vsel %vm408, %v550, -inf
    %701 = vmax.xlane.f32.xlu0 %v700
    %v702 = vpop.xlane.xlu0 %701
    %v703 = vsel %vm408, %v622, -inf
    %704 = vmax.xlane.f32.xlu0 %v703
    %v705 = vpop.xlane.xlu0 %704
    %v706 = vsel %vm408, %v694, -inf
    %707 = vmax.xlane.f32.xlu0 %v706
    %v708 = vpop.xlane.xlu0 %707
    %v709 = vsub.f32 %v478, %v699
    %v710 = vsub.f32 %v550, %v702
    %v711 = vsub.f32 %v622, %v705
    %v712 = vsub.f32 %v694, %v708
    %v713 = vmul.f32 %v709, 1.442695
    %v714 = vpow.pop %v713
    %v715 = vmul.f32 %v710, 1.442695
    %v716 = vpow.pop %v715
    %v717 = vmul.f32 %v711, 1.442695
    %v718 = vpow.pop %v717
    %v719 = vmul.f32 %v712, 1.442695
    %v720 = vpow.pop %v719
    %v721 = vsel %vm408, %v714, 0.0
    %722 = vadd.xlane.f32.xlu0 %v721
    %v723 = vpop.xlane.xlu0 %722
    %v724 = vsel %vm408, %v716, 0.0
    %725 = vadd.xlane.f32.xlu0 %v724
    %v726 = vpop.xlane.xlu0 %725
    %v727 = vsel %vm408, %v718, 0.0
    %728 = vadd.xlane.f32.xlu0 %v727
    %v729 = vpop.xlane.xlu0 %728
    %v730 = vsel %vm408, %v720, 0.0
    %731 = vadd.xlane.f32.xlu0 %v730
    %v732 = vpop.xlane.xlu0 %731
    %v733 = vrcp.pop %v723
    %v734 = vrcp.pop %v726
    %v735 = vrcp.pop %v729
    %v736 = vrcp.pop %v732
    %v737 = vmul.f32 %v714, %v733
    %v738 = vmul.f32 %v716, %v734
    %v739 = vmul.f32 %v718, %v735
    %v740 = vmul.f32 %v720, %v736
    %741 = vrot.lane.b32.xlu0 %v249, 64
    %v742 = vpop.permute.xlu0 %741
    %743 = vrot.lane.b32.xlu0 %v259, 64
    %v744 = vpop.permute.xlu0 %743
    %745 = vrot.lane.b32.xlu0 %v261, 64
    %v746 = vpop.permute.xlu0 %745
    %747 = vrot.lane.b32.xlu0 %v263, 64
    %v748 = vpop.permute.xlu0 %747
    %753 = vxpose.xlu0.b32.start [1/16] %v742, 128
    %754 = vxpose.xlu0.b32.cont [2/16] 0.0, 128
    %755 = vxpose.xlu0.b32.cont [3/16] 0.0, 128
    %756 = vxpose.xlu0.b32.cont [4/16] 0.0, 128
    %757 = vxpose.xlu0.b32.cont [5/16] 0.0, 128
    %758 = vxpose.xlu0.b32.cont [6/16] 0.0, 128
    %759 = vxpose.xlu0.b32.cont [7/16] 0.0, 128
    %760 = vxpose.xlu0.b32.cont [8/16] 0.0, 128
    %761 = vxpose.xlu0.b32.cont [9/16] 0.0, 128
    %762 = vxpose.xlu0.b32.cont [10/16] 0.0, 128
    %763 = vxpose.xlu0.b32.cont [11/16] 0.0, 128
    %764 = vxpose.xlu0.b32.cont [12/16] 0.0, 128
    %765 = vxpose.xlu0.b32.cont [13/16] 0.0, 128
    %766 = vxpose.xlu0.b32.cont [14/16] 0.0, 128
    %767 = vxpose.xlu0.b32.cont [15/16] 0.0, 128
    %768 = vxpose.xlu0.b32.end [16/16] 0.0, 128
    %v769 = vpop.trf.xlu0
    %v770 = vpop.trf.xlu0
    %v771 = vpop.trf.xlu0
    %v772 = vpop.trf.xlu0
    %v773 = vpop.trf.xlu0
    %v774 = vpop.trf.xlu0
    %v775 = vpop.trf.xlu0
    %v776 = vpop.trf.xlu0
    %v777 = vpop.trf.xlu0
    %v778 = vpop.trf.xlu0
    %v779 = vpop.trf.xlu0
    %v780 = vpop.trf.xlu0
    %v781 = vpop.trf.xlu0
    %v782 = vpop.trf.xlu0
    %v783 = vpop.trf.xlu0
    %v784 = vpop.trf.xlu0
    %785 = vxpose.xlu0.b32.start [1/16] %v744, 128
    %786 = vxpose.xlu0.b32.cont [2/16] 0.0, 128
    %787 = vxpose.xlu0.b32.cont [3/16] 0.0, 128
    %788 = vxpose.xlu0.b32.cont [4/16] 0.0, 128
    %789 = vxpose.xlu0.b32.cont [5/16] 0.0, 128
    %790 = vxpose.xlu0.b32.cont [6/16] 0.0, 128
    %791 = vxpose.xlu0.b32.cont [7/16] 0.0, 128
    %792 = vxpose.xlu0.b32.cont [8/16] 0.0, 128
    %793 = vxpose.xlu0.b32.cont [9/16] 0.0, 128
    %794 = vxpose.xlu0.b32.cont [10/16] 0.0, 128
    %795 = vxpose.xlu0.b32.cont [11/16] 0.0, 128
    %796 = vxpose.xlu0.b32.cont [12/16] 0.0, 128
    %797 = vxpose.xlu0.b32.cont [13/16] 0.0, 128
    %798 = vxpose.xlu0.b32.cont [14/16] 0.0, 128
    %799 = vxpose.xlu0.b32.cont [15/16] 0.0, 128
    %800 = vxpose.xlu0.b32.end [16/16] 0.0, 128
    %v801 = vpop.trf.xlu0
    %v802 = vpop.trf.xlu0
    %v803 = vpop.trf.xlu0
    %v804 = vpop.trf.xlu0
    %v805 = vpop.trf.xlu0
    %v806 = vpop.trf.xlu0
    %v807 = vpop.trf.xlu0
    %v808 = vpop.trf.xlu0
    %v809 = vpop.trf.xlu0
    %v810 = vpop.trf.xlu0
    %v811 = vpop.trf.xlu0
    %v812 = vpop.trf.xlu0
    %v813 = vpop.trf.xlu0
    %v814 = vpop.trf.xlu0
    %v815 = vpop.trf.xlu0
    %v816 = vpop.trf.xlu0
    %817 = vxpose.xlu0.b32.start [1/16] %v746, 128
    %818 = vxpose.xlu0.b32.cont [2/16] 0.0, 128
    %819 = vxpose.xlu0.b32.cont [3/16] 0.0, 128
    %820 = vxpose.xlu0.b32.cont [4/16] 0.0, 128
    %821 = vxpose.xlu0.b32.cont [5/16] 0.0, 128
    %822 = vxpose.xlu0.b32.cont [6/16] 0.0, 128
    %823 = vxpose.xlu0.b32.cont [7/16] 0.0, 128
    %824 = vxpose.xlu0.b32.cont [8/16] 0.0, 128
    %825 = vxpose.xlu0.b32.cont [9/16] 0.0, 128
    %826 = vxpose.xlu0.b32.cont [10/16] 0.0, 128
    %827 = vxpose.xlu0.b32.cont [11/16] 0.0, 128
    %828 = vxpose.xlu0.b32.cont [12/16] 0.0, 128
    %829 = vxpose.xlu0.b32.cont [13/16] 0.0, 128
    %830 = vxpose.xlu0.b32.cont [14/16] 0.0, 128
    %831 = vxpose.xlu0.b32.cont [15/16] 0.0, 128
    %832 = vxpose.xlu0.b32.end [16/16] 0.0, 128
    %v833 = vpop.trf.xlu0
    %v834 = vpop.trf.xlu0
    %v835 = vpop.trf.xlu0
    %v836 = vpop.trf.xlu0
    %v837 = vpop.trf.xlu0
    %v838 = vpop.trf.xlu0
    %v839 = vpop.trf.xlu0
    %v840 = vpop.trf.xlu0
    %v841 = vpop.trf.xlu0
    %v842 = vpop.trf.xlu0
    %v843 = vpop.trf.xlu0
    %v844 = vpop.trf.xlu0
    %v845 = vpop.trf.xlu0
    %v846 = vpop.trf.xlu0
    %v847 = vpop.trf.xlu0
    %v848 = vpop.trf.xlu0
    %849 = vxpose.xlu0.b32.start [1/16] %v748, 128
    %850 = vxpose.xlu0.b32.cont [2/16] 0.0, 128
    %851 = vxpose.xlu0.b32.cont [3/16] 0.0, 128
    %852 = vxpose.xlu0.b32.cont [4/16] 0.0, 128
    %853 = vxpose.xlu0.b32.cont [5/16] 0.0, 128
    %854 = vxpose.xlu0.b32.cont [6/16] 0.0, 128
    %855 = vxpose.xlu0.b32.cont [7/16] 0.0, 128
    %856 = vxpose.xlu0.b32.cont [8/16] 0.0, 128
    %857 = vxpose.xlu0.b32.cont [9/16] 0.0, 128
    %858 = vxpose.xlu0.b32.cont [10/16] 0.0, 128
    %859 = vxpose.xlu0.b32.cont [11/16] 0.0, 128
    %860 = vxpose.xlu0.b32.cont [12/16] 0.0, 128
    %861 = vxpose.xlu0.b32.cont [13/16] 0.0, 128
    %862 = vxpose.xlu0.b32.cont [14/16] 0.0, 128
    %863 = vxpose.xlu0.b32.cont [15/16] 0.0, 128
    %864 = vxpose.xlu0.b32.end [16/16] 0.0, 128
    %v865 = vpop.trf.xlu0
    %v866 = vpop.trf.xlu0
    %v867 = vpop.trf.xlu0
    %v868 = vpop.trf.xlu0
    %v869 = vpop.trf.xlu0
    %v870 = vpop.trf.xlu0
    %v871 = vpop.trf.xlu0
    %v872 = vpop.trf.xlu0
    %v873 = vpop.trf.xlu0
    %v874 = vpop.trf.xlu0
    %v875 = vpop.trf.xlu0
    %v876 = vpop.trf.xlu0
    %v877 = vpop.trf.xlu0
    %v878 = vpop.trf.xlu0
    %v879 = vpop.trf.xlu0
    %v880 = vpop.trf.xlu0
    %v882 = vsel %vm408, %v769, 0
    %v885 = vsel %vm408, %v737, 0
    %887 = vmatprep.subr.mxu0 0.0
    %888 = vmatpush1.xpose.msra.mxu0 %v885
    %889 = vmatprep.subr.mxu0 0.0
    %890 = vmatpush1.xpose.msra.mxu0 0.0
    %891 = vmatprep.subr.mxu0 0.0
    %892 = vmatpush1.xpose.msra.mxu0 0.0
    %893 = vmatprep.subr.mxu0 0.0
    %894 = vmatpush1.xpose.msra.mxu0 0.0
    %895 = vmatprep.subr.mxu0 0.0
    %896 = vmatpush1.xpose.msra.mxu0 0.0
    %897 = vmatprep.subr.mxu0 0.0
    %898 = vmatpush1.xpose.msra.mxu0 0.0
    %899 = vmatprep.subr.mxu0 0.0
    %900 = vmatpush1.xpose.msra.mxu0 0.0
    %901 = vmatprep.subr.mxu0 0.0
    %902 = vmatpush1.xpose.msra.mxu0 0.0
    %903 = vmatprep.subr.mxu0 0.0
    %904 = vmatpush1.xpose.msra.mxu0 0.0
    %905 = vmatprep.subr.mxu0 0.0
    %906 = vmatpush1.xpose.msra.mxu0 0.0
    %907 = vmatprep.subr.mxu0 0.0
    %908 = vmatpush1.xpose.msra.mxu0 0.0
    %909 = vmatprep.subr.mxu0 0.0
    %910 = vmatpush1.xpose.msra.mxu0 0.0
    %911 = vmatprep.subr.mxu0 0.0
    %912 = vmatpush1.xpose.msra.mxu0 0.0
    %913 = vmatprep.subr.mxu0 0.0
    %914 = vmatpush1.xpose.msra.mxu0 0.0
    %915 = vmatprep.subr.mxu0 0.0
    %916 = vmatpush1.xpose.msra.mxu0 0.0
    %917 = vmatprep.subr.mxu0 0.0
    %918 = vmatpush1.xpose.msra.mxu0 0.0
    %919 = vmatprep.subr.mxu0 0.0
    %920 = vmatpush1.xpose.msra.mxu0 0.0
    %921 = vmatprep.subr.mxu0 0.0
    %922 = vmatpush1.xpose.msra.mxu0 0.0
    %923 = vmatprep.subr.mxu0 0.0
    %924 = vmatpush1.xpose.msra.mxu0 0.0
    %925 = vmatprep.subr.mxu0 0.0
    %926 = vmatpush1.xpose.msra.mxu0 0.0
    %927 = vmatprep.subr.mxu0 0.0
    %928 = vmatpush1.xpose.msra.mxu0 0.0
    %929 = vmatprep.subr.mxu0 0.0
    %930 = vmatpush1.xpose.msra.mxu0 0.0
    %931 = vmatprep.subr.mxu0 0.0
    %932 = vmatpush1.xpose.msra.mxu0 0.0
    %933 = vmatprep.subr.mxu0 0.0
    %934 = vmatpush1.xpose.msra.mxu0 0.0
    %935 = vmatprep.subr.mxu0 0.0
    %936 = vmatpush1.xpose.msra.mxu0 0.0
    %937 = vmatprep.subr.mxu0 0.0
    %938 = vmatpush1.xpose.msra.mxu0 0.0
    %939 = vmatprep.subr.mxu0 0.0
    %940 = vmatpush1.xpose.msra.mxu0 0.0
    %941 = vmatprep.subr.mxu0 0.0
    %942 = vmatpush1.xpose.msra.mxu0 0.0
    %943 = vmatprep.subr.mxu0 0.0
    %944 = vmatpush1.xpose.msra.mxu0 0.0
    %945 = vmatprep.subr.mxu0 0.0
    %946 = vmatpush1.xpose.msra.mxu0 0.0
    %947 = vmatprep.subr.mxu0 0.0
    %948 = vmatpush1.xpose.msra.mxu0 0.0
    %949 = vmatprep.subr.mxu0 0.0
    %950 = vmatpush1.xpose.msra.mxu0 0.0
    %951 = vmatprep.mubr.f32.mxu0 0.0
    %952 = vmatmul.mubr.f32.gmra.mrb[0].mxu0 %v882
    %v953 = vpop.f32.mrb[0].mxu0
    %v954 = vadd.f32 0.0, %v953
    %v955 = vpop.f32.mrb[0].mxu0
    %956 = vdwg.mxu0
    %v958 = vsel %vm408, %v801, 0
    %v961 = vsel %vm408, %v738, 0
    %963 = vmatprep.subr.mxu0 0.0
    %964 = vmatpush1.xpose.msra.mxu0 %v961
    %965 = vmatprep.subr.mxu0 0.0
    %966 = vmatpush1.xpose.msra.mxu0 0.0
    %967 = vmatprep.subr.mxu0 0.0
    %968 = vmatpush1.xpose.msra.mxu0 0.0
    %969 = vmatprep.subr.mxu0 0.0
    %970 = vmatpush1.xpose.msra.mxu0 0.0
    %971 = vmatprep.subr.mxu0 0.0
    %972 = vmatpush1.xpose.msra.mxu0 0.0
    %973 = vmatprep.subr.mxu0 0.0
    %974 = vmatpush1.xpose.msra.mxu0 0.0
    %975 = vmatprep.subr.mxu0 0.0
    %976 = vmatpush1.xpose.msra.mxu0 0.0
    %977 = vmatprep.subr.mxu0 0.0
    %978 = vmatpush1.xpose.msra.mxu0 0.0
    %979 = vmatprep.subr.mxu0 0.0
    %980 = vmatpush1.xpose.msra.mxu0 0.0
    %981 = vmatprep.subr.mxu0 0.0
    %982 = vmatpush1.xpose.msra.mxu0 0.0
    %983 = vmatprep.subr.mxu0 0.0
    %984 = vmatpush1.xpose.msra.mxu0 0.0
    %985 = vmatprep.subr.mxu0 0.0
    %986 = vmatpush1.xpose.msra.mxu0 0.0
    %987 = vmatprep.subr.mxu0 0.0
    %988 = vmatpush1.xpose.msra.mxu0 0.0
    %989 = vmatprep.subr.mxu0 0.0
    %990 = vmatpush1.xpose.msra.mxu0 0.0
    %991 = vmatprep.subr.mxu0 0.0
    %992 = vmatpush1.xpose.msra.mxu0 0.0
    %993 = vmatprep.subr.mxu0 0.0
    %994 = vmatpush1.xpose.msra.mxu0 0.0
    %995 = vmatprep.subr.mxu0 0.0
    %996 = vmatpush1.xpose.msra.mxu0 0.0
    %997 = vmatprep.subr.mxu0 0.0
    %998 = vmatpush1.xpose.msra.mxu0 0.0
    %999 = vmatprep.subr.mxu0 0.0
    %1000 = vmatpush1.xpose.msra.mxu0 0.0
    %1001 = vmatprep.subr.mxu0 0.0
    %1002 = vmatpush1.xpose.msra.mxu0 0.0
    %1003 = vmatprep.subr.mxu0 0.0
    %1004 = vmatpush1.xpose.msra.mxu0 0.0
    %1005 = vmatprep.subr.mxu0 0.0
    %1006 = vmatpush1.xpose.msra.mxu0 0.0
    %1007 = vmatprep.subr.mxu0 0.0
    %1008 = vmatpush1.xpose.msra.mxu0 0.0
    %1009 = vmatprep.subr.mxu0 0.0
    %1010 = vmatpush1.xpose.msra.mxu0 0.0
    %1011 = vmatprep.subr.mxu0 0.0
    %1012 = vmatpush1.xpose.msra.mxu0 0.0
    %1013 = vmatprep.subr.mxu0 0.0
    %1014 = vmatpush1.xpose.msra.mxu0 0.0
    %1015 = vmatprep.subr.mxu0 0.0
    %1016 = vmatpush1.xpose.msra.mxu0 0.0
    %1017 = vmatprep.subr.mxu0 0.0
    %1018 = vmatpush1.xpose.msra.mxu0 0.0
    %1019 = vmatprep.subr.mxu0 0.0
    %1020 = vmatpush1.xpose.msra.mxu0 0.0
    %1021 = vmatprep.subr.mxu0 0.0
    %1022 = vmatpush1.xpose.msra.mxu0 0.0
    %1023 = vmatprep.subr.mxu0 0.0
    %1024 = vmatpush1.xpose.msra.mxu0 0.0
    %1025 = vmatprep.subr.mxu0 0.0
    %1026 = vmatpush1.xpose.msra.mxu0 0.0
    %1027 = vmatprep.mubr.f32.mxu0 0.0
    %1028 = vmatmul.mubr.f32.gmra.mrb[0].mxu0 %v958
    %v1029 = vpop.f32.mrb[0].mxu0
    %v1030 = vadd.f32 0.0, %v1029
    %v1031 = vpop.f32.mrb[0].mxu0
    %1032 = vdwg.mxu0
    %v1034 = vsel %vm408, %v833, 0
    %v1037 = vsel %vm408, %v739, 0
    %1039 = vmatprep.subr.mxu0 0.0
    %1040 = vmatpush1.xpose.msra.mxu0 %v1037
    %1041 = vmatprep.subr.mxu0 0.0
    %1042 = vmatpush1.xpose.msra.mxu0 0.0
    %1043 = vmatprep.subr.mxu0 0.0
    %1044 = vmatpush1.xpose.msra.mxu0 0.0
    %1045 = vmatprep.subr.mxu0 0.0
    %1046 = vmatpush1.xpose.msra.mxu0 0.0
    %1047 = vmatprep.subr.mxu0 0.0
    %1048 = vmatpush1.xpose.msra.mxu0 0.0
    %1049 = vmatprep.subr.mxu0 0.0
    %1050 = vmatpush1.xpose.msra.mxu0 0.0
    %1051 = vmatprep.subr.mxu0 0.0
    %1052 = vmatpush1.xpose.msra.mxu0 0.0
    %1053 = vmatprep.subr.mxu0 0.0
    %1054 = vmatpush1.xpose.msra.mxu0 0.0
    %1055 = vmatprep.subr.mxu0 0.0
    %1056 = vmatpush1.xpose.msra.mxu0 0.0
    %1057 = vmatprep.subr.mxu0 0.0
    %1058 = vmatpush1.xpose.msra.mxu0 0.0
    %1059 = vmatprep.subr.mxu0 0.0
    %1060 = vmatpush1.xpose.msra.mxu0 0.0
    %1061 = vmatprep.subr.mxu0 0.0
    %1062 = vmatpush1.xpose.msra.mxu0 0.0
    %1063 = vmatprep.subr.mxu0 0.0
    %1064 = vmatpush1.xpose.msra.mxu0 0.0
    %1065 = vmatprep.subr.mxu0 0.0
    %1066 = vmatpush1.xpose.msra.mxu0 0.0
    %1067 = vmatprep.subr.mxu0 0.0
    %1068 = vmatpush1.xpose.msra.mxu0 0.0
    %1069 = vmatprep.subr.mxu0 0.0
    %1070 = vmatpush1.xpose.msra.mxu0 0.0
    %1071 = vmatprep.subr.mxu0 0.0
    %1072 = vmatpush1.xpose.msra.mxu0 0.0
    %1073 = vmatprep.subr.mxu0 0.0
    %1074 = vmatpush1.xpose.msra.mxu0 0.0
    %1075 = vmatprep.subr.mxu0 0.0
    %1076 = vmatpush1.xpose.msra.mxu0 0.0
    %1077 = vmatprep.subr.mxu0 0.0
    %1078 = vmatpush1.xpose.msra.mxu0 0.0
    %1079 = vmatprep.subr.mxu0 0.0
    %1080 = vmatpush1.xpose.msra.mxu0 0.0
    %1081 = vmatprep.subr.mxu0 0.0
    %1082 = vmatpush1.xpose.msra.mxu0 0.0
    %1083 = vmatprep.subr.mxu0 0.0
    %1084 = vmatpush1.xpose.msra.mxu0 0.0
    %1085 = vmatprep.subr.mxu0 0.0
    %1086 = vmatpush1.xpose.msra.mxu0 0.0
    %1087 = vmatprep.subr.mxu0 0.0
    %1088 = vmatpush1.xpose.msra.mxu0 0.0
    %1089 = vmatprep.subr.mxu0 0.0
    %1090 = vmatpush1.xpose.msra.mxu0 0.0
    %1091 = vmatprep.subr.mxu0 0.0
    %1092 = vmatpush1.xpose.msra.mxu0 0.0
    %1093 = vmatprep.subr.mxu0 0.0
    %1094 = vmatpush1.xpose.msra.mxu0 0.0
    %1095 = vmatprep.subr.mxu0 0.0
    %1096 = vmatpush1.xpose.msra.mxu0 0.0
    %1097 = vmatprep.subr.mxu0 0.0
    %1098 = vmatpush1.xpose.msra.mxu0 0.0
    %1099 = vmatprep.subr.mxu0 0.0
    %1100 = vmatpush1.xpose.msra.mxu0 0.0
    %1101 = vmatprep.subr.mxu0 0.0
    %1102 = vmatpush1.xpose.msra.mxu0 0.0
    %1103 = vmatprep.mubr.f32.mxu0 0.0
    %1104 = vmatmul.mubr.f32.gmra.mrb[0].mxu0 %v1034
    %v1105 = vpop.f32.mrb[0].mxu0
    %v1106 = vadd.f32 0.0, %v1105
    %v1107 = vpop.f32.mrb[0].mxu0
    %1108 = vdwg.mxu0
    %v1110 = vsel %vm408, %v865, 0
    %v1113 = vsel %vm408, %v740, 0
    %1115 = vmatprep.subr.mxu0 0.0
    %1116 = vmatpush1.xpose.msra.mxu0 %v1113
    %1117 = vmatprep.subr.mxu0 0.0
    %1118 = vmatpush1.xpose.msra.mxu0 0.0
    %1119 = vmatprep.subr.mxu0 0.0
    %1120 = vmatpush1.xpose.msra.mxu0 0.0
    %1121 = vmatprep.subr.mxu0 0.0
    %1122 = vmatpush1.xpose.msra.mxu0 0.0
    %1123 = vmatprep.subr.mxu0 0.0
    %1124 = vmatpush1.xpose.msra.mxu0 0.0
    %1125 = vmatprep.subr.mxu0 0.0
    %1126 = vmatpush1.xpose.msra.mxu0 0.0
    %1127 = vmatprep.subr.mxu0 0.0
    %1128 = vmatpush1.xpose.msra.mxu0 0.0
    %1129 = vmatprep.subr.mxu0 0.0
    %1130 = vmatpush1.xpose.msra.mxu0 0.0
    %1131 = vmatprep.subr.mxu0 0.0
    %1132 = vmatpush1.xpose.msra.mxu0 0.0
    %1133 = vmatprep.subr.mxu0 0.0
    %1134 = vmatpush1.xpose.msra.mxu0 0.0
    %1135 = vmatprep.subr.mxu0 0.0
    %1136 = vmatpush1.xpose.msra.mxu0 0.0
    %1137 = vmatprep.subr.mxu0 0.0
    %1138 = vmatpush1.xpose.msra.mxu0 0.0
    %1139 = vmatprep.subr.mxu0 0.0
    %1140 = vmatpush1.xpose.msra.mxu0 0.0
    %1141 = vmatprep.subr.mxu0 0.0
    %1142 = vmatpush1.xpose.msra.mxu0 0.0
    %1143 = vmatprep.subr.mxu0 0.0
    %1144 = vmatpush1.xpose.msra.mxu0 0.0
    %1145 = vmatprep.subr.mxu0 0.0
    %1146 = vmatpush1.xpose.msra.mxu0 0.0
    %1147 = vmatprep.subr.mxu0 0.0
    %1148 = vmatpush1.xpose.msra.mxu0 0.0
    %1149 = vmatprep.subr.mxu0 0.0
    %1150 = vmatpush1.xpose.msra.mxu0 0.0
    %1151 = vmatprep.subr.mxu0 0.0
    %1152 = vmatpush1.xpose.msra.mxu0 0.0
    %1153 = vmatprep.subr.mxu0 0.0
    %1154 = vmatpush1.xpose.msra.mxu0 0.0
    %1155 = vmatprep.subr.mxu0 0.0
    %1156 = vmatpush1.xpose.msra.mxu0 0.0
    %1157 = vmatprep.subr.mxu0 0.0
    %1158 = vmatpush1.xpose.msra.mxu0 0.0
    %1159 = vmatprep.subr.mxu0 0.0
    %1160 = vmatpush1.xpose.msra.mxu0 0.0
    %1161 = vmatprep.subr.mxu0 0.0
    %1162 = vmatpush1.xpose.msra.mxu0 0.0
    %1163 = vmatprep.subr.mxu0 0.0
    %1164 = vmatpush1.xpose.msra.mxu0 0.0
    %1165 = vmatprep.subr.mxu0 0.0
    %1166 = vmatpush1.xpose.msra.mxu0 0.0
    %1167 = vmatprep.subr.mxu0 0.0
    %1168 = vmatpush1.xpose.msra.mxu0 0.0
    %1169 = vmatprep.subr.mxu0 0.0
    %1170 = vmatpush1.xpose.msra.mxu0 0.0
    %1171 = vmatprep.subr.mxu0 0.0
    %1172 = vmatpush1.xpose.msra.mxu0 0.0
    %1173 = vmatprep.subr.mxu0 0.0
    %1174 = vmatpush1.xpose.msra.mxu0 0.0
    %1175 = vmatprep.subr.mxu0 0.0
    %1176 = vmatpush1.xpose.msra.mxu0 0.0
    %1177 = vmatprep.subr.mxu0 0.0
    %1178 = vmatpush1.xpose.msra.mxu0 0.0
    %1179 = vmatprep.mubr.f32.mxu0 0.0
    %1180 = vmatmul.mubr.f32.gmra.mrb[0].mxu0 %v1110
    %v1181 = vpop.f32.mrb[0].mxu0
    %v1182 = vadd.f32 0.0, %v1181
    %v1183 = vpop.f32.mrb[0].mxu0
    %1184 = vdwg.mxu0
    %1185 = vxpose.xlu0.b32.start [1/16] %v954, 128
    %1186 = vxpose.xlu0.b32.cont [2/16] 0.0, 128
    %1187 = vxpose.xlu0.b32.cont [3/16] 0.0, 128
    %1188 = vxpose.xlu0.b32.cont [4/16] 0.0, 128
    %1189 = vxpose.xlu0.b32.cont [5/16] 0.0, 128
    %1190 = vxpose.xlu0.b32.cont [6/16] 0.0, 128
    %1191 = vxpose.xlu0.b32.cont [7/16] 0.0, 128
    %1192 = vxpose.xlu0.b32.cont [8/16] 0.0, 128
    %1193 = vxpose.xlu0.b32.cont [9/16] 0.0, 128
    %1194 = vxpose.xlu0.b32.cont [10/16] 0.0, 128
    %1195 = vxpose.xlu0.b32.cont [11/16] 0.0, 128
    %1196 = vxpose.xlu0.b32.cont [12/16] 0.0, 128
    %1197 = vxpose.xlu0.b32.cont [13/16] 0.0, 128
    %1198 = vxpose.xlu0.b32.cont [14/16] 0.0, 128
    %1199 = vxpose.xlu0.b32.cont [15/16] 0.0, 128
    %1200 = vxpose.xlu0.b32.end [16/16] 0.0, 128
    %v1201 = vpop.trf.xlu0
    %v1202 = vpop.trf.xlu0
    %v1203 = vpop.trf.xlu0
    %v1204 = vpop.trf.xlu0
    %v1205 = vpop.trf.xlu0
    %v1206 = vpop.trf.xlu0
    %v1207 = vpop.trf.xlu0
    %v1208 = vpop.trf.xlu0
    %v1209 = vpop.trf.xlu0
    %v1210 = vpop.trf.xlu0
    %v1211 = vpop.trf.xlu0
    %v1212 = vpop.trf.xlu0
    %v1213 = vpop.trf.xlu0
    %v1214 = vpop.trf.xlu0
    %v1215 = vpop.trf.xlu0
    %v1216 = vpop.trf.xlu0
    %1217 = vxpose.xlu0.b32.start [1/16] %v1030, 128
    %1218 = vxpose.xlu0.b32.cont [2/16] 0.0, 128
    %1219 = vxpose.xlu0.b32.cont [3/16] 0.0, 128
    %1220 = vxpose.xlu0.b32.cont [4/16] 0.0, 128
    %1221 = vxpose.xlu0.b32.cont [5/16] 0.0, 128
    %1222 = vxpose.xlu0.b32.cont [6/16] 0.0, 128
    %1223 = vxpose.xlu0.b32.cont [7/16] 0.0, 128
    %1224 = vxpose.xlu0.b32.cont [8/16] 0.0, 128
    %1225 = vxpose.xlu0.b32.cont [9/16] 0.0, 128
    %1226 = vxpose.xlu0.b32.cont [10/16] 0.0, 128
    %1227 = vxpose.xlu0.b32.cont [11/16] 0.0, 128
    %1228 = vxpose.xlu0.b32.cont [12/16] 0.0, 128
    %1229 = vxpose.xlu0.b32.cont [13/16] 0.0, 128
    %1230 = vxpose.xlu0.b32.cont [14/16] 0.0, 128
    %1231 = vxpose.xlu0.b32.cont [15/16] 0.0, 128
    %1232 = vxpose.xlu0.b32.end [16/16] 0.0, 128
    %v1233 = vpop.trf.xlu0
    %v1234 = vpop.trf.xlu0
    %v1235 = vpop.trf.xlu0
    %v1236 = vpop.trf.xlu0
    %v1237 = vpop.trf.xlu0
    %v1238 = vpop.trf.xlu0
    %v1239 = vpop.trf.xlu0
    %v1240 = vpop.trf.xlu0
    %v1241 = vpop.trf.xlu0
    %v1242 = vpop.trf.xlu0
    %v1243 = vpop.trf.xlu0
    %v1244 = vpop.trf.xlu0
    %v1245 = vpop.trf.xlu0
    %v1246 = vpop.trf.xlu0
    %v1247 = vpop.trf.xlu0
    %v1248 = vpop.trf.xlu0
    %1249 = vxpose.xlu0.b32.start [1/16] %v1106, 128
    %1250 = vxpose.xlu0.b32.cont [2/16] 0.0, 128
    %1251 = vxpose.xlu0.b32.cont [3/16] 0.0, 128
    %1252 = vxpose.xlu0.b32.cont [4/16] 0.0, 128
    %1253 = vxpose.xlu0.b32.cont [5/16] 0.0, 128
    %1254 = vxpose.xlu0.b32.cont [6/16] 0.0, 128
    %1255 = vxpose.xlu0.b32.cont [7/16] 0.0, 128
    %1256 = vxpose.xlu0.b32.cont [8/16] 0.0, 128
    %1257 = vxpose.xlu0.b32.cont [9/16] 0.0, 128
    %1258 = vxpose.xlu0.b32.cont [10/16] 0.0, 128
    %1259 = vxpose.xlu0.b32.cont [11/16] 0.0, 128
    %1260 = vxpose.xlu0.b32.cont [12/16] 0.0, 128
    %1261 = vxpose.xlu0.b32.cont [13/16] 0.0, 128
    %1262 = vxpose.xlu0.b32.cont [14/16] 0.0, 128
    %1263 = vxpose.xlu0.b32.cont [15/16] 0.0, 128
    %1264 = vxpose.xlu0.b32.end [16/16] 0.0, 128
    %v1265 = vpop.trf.xlu0
    %v1266 = vpop.trf.xlu0
    %v1267 = vpop.trf.xlu0
    %v1268 = vpop.trf.xlu0
    %v1269 = vpop.trf.xlu0
    %v1270 = vpop.trf.xlu0
    %v1271 = vpop.trf.xlu0
    %v1272 = vpop.trf.xlu0
    %v1273 = vpop.trf.xlu0
    %v1274 = vpop.trf.xlu0
    %v1275 = vpop.trf.xlu0
    %v1276 = vpop.trf.xlu0
    %v1277 = vpop.trf.xlu0
    %v1278 = vpop.trf.xlu0
    %v1279 = vpop.trf.xlu0
    %v1280 = vpop.trf.xlu0
    %1281 = vxpose.xlu0.b32.start [1/16] %v1182, 128
    %1282 = vxpose.xlu0.b32.cont [2/16] 0.0, 128
    %1283 = vxpose.xlu0.b32.cont [3/16] 0.0, 128
    %1284 = vxpose.xlu0.b32.cont [4/16] 0.0, 128
    %1285 = vxpose.xlu0.b32.cont [5/16] 0.0, 128
    %1286 = vxpose.xlu0.b32.cont [6/16] 0.0, 128
    %1287 = vxpose.xlu0.b32.cont [7/16] 0.0, 128
    %1288 = vxpose.xlu0.b32.cont [8/16] 0.0, 128
    %1289 = vxpose.xlu0.b32.cont [9/16] 0.0, 128
    %1290 = vxpose.xlu0.b32.cont [10/16] 0.0, 128
    %1291 = vxpose.xlu0.b32.cont [11/16] 0.0, 128
    %1292 = vxpose.xlu0.b32.cont [12/16] 0.0, 128
    %1293 = vxpose.xlu0.b32.cont [13/16] 0.0, 128
    %1294 = vxpose.xlu0.b32.cont [14/16] 0.0, 128
    %1295 = vxpose.xlu0.b32.cont [15/16] 0.0, 128
    %1296 = vxpose.xlu0.b32.end [16/16] 0.0, 128
    %v1297 = vpop.trf.xlu0
    %v1298 = vpop.trf.xlu0
    %v1299 = vpop.trf.xlu0
    %v1300 = vpop.trf.xlu0
    %v1301 = vpop.trf.xlu0
    %v1302 = vpop.trf.xlu0
    %v1303 = vpop.trf.xlu0
    %v1304 = vpop.trf.xlu0
    %v1305 = vpop.trf.xlu0
    %v1306 = vpop.trf.xlu0
    %v1307 = vpop.trf.xlu0
    %v1308 = vpop.trf.xlu0
    %v1309 = vpop.trf.xlu0
    %v1310 = vpop.trf.xlu0
    %v1311 = vpop.trf.xlu0
    %v1312 = vpop.trf.xlu0
    %v1313 = vcombine.low %v1201, %v1265
    %v1314 = vcombine.high %v1201, %v1265
    %v1316 = vunpack.c.l.s4 1983009808
    %v1317 = vunpack.c.0.s8 %v1316
    %v1318 = vlaneseq
    %v1319 = vshrl.u32 %v1318, 7
    %v1320 = vsub.s32 %v1317, %v1319
    %v1321 = vrot.slane %v1313, %v1320
    %v1323 = vunpack.c.l.s4 1983009808
    %v1324 = vunpack.c.0.s8 %v1323
    %v1325 = vlaneseq
    %v1326 = vshrl.u32 %v1325, 7
    %v1327 = vsub.s32 %v1324, %v1326
    %v1328 = vrot.slane %v1314, %v1327
    %v1329 = vcombine.low %v1233, %v1297
    %v1330 = vcombine.high %v1233, %v1297
    %v1332 = vunpack.c.l.s4 1983009808
    %v1333 = vunpack.c.0.s8 %v1332
    %v1334 = vlaneseq
    %v1335 = vshrl.u32 %v1334, 7
    %v1336 = vsub.s32 %v1333, %v1335
    %v1337 = vrot.slane %v1329, %v1336
    %v1339 = vunpack.c.l.s4 1983009808
    %v1340 = vunpack.c.0.s8 %v1339
    %v1341 = vlaneseq
    %v1342 = vshrl.u32 %v1341, 7
    %v1343 = vsub.s32 %v1340, %v1342
    %v1344 = vrot.slane %v1330, %v1343
    %v1345 = vcombine.low %v1321, %v1337
    %v1346 = vcombine.high %v1321, %v1337
    %v1348 = vunpack.c.l.s4 1934713408
    %v1349 = vunpack.c.0.s8 %v1348
    %v1350 = vlaneseq
    %v1351 = vshrl.u32 %v1350, 7
    %v1352 = vsub.s32 %v1349, %v1351
    %v1353 = vrot.slane %v1345, %v1352
    %v1355 = vunpack.c.l.s4 1934713408
    %v1356 = vunpack.c.0.s8 %v1355
    %v1357 = vlaneseq
    %v1358 = vshrl.u32 %v1357, 7
    %v1359 = vsub.s32 %v1356, %v1358
    %v1360 = vrot.slane %v1346, %v1359
    %v1361 = vcombine.low %v1328, %v1344
    %v1362 = vcombine.high %v1328, %v1344
    %v1364 = vunpack.c.l.s4 1934713408
    %v1365 = vunpack.c.0.s8 %v1364
    %v1366 = vlaneseq
    %v1367 = vshrl.u32 %v1366, 7
    %v1368 = vsub.s32 %v1365, %v1367
    %v1369 = vrot.slane %v1361, %v1368
    %v1371 = vunpack.c.l.s4 1934713408
    %v1372 = vunpack.c.0.s8 %v1371
    %v1373 = vlaneseq
    %v1374 = vshrl.u32 %v1373, 7
    %v1375 = vsub.s32 %v1372, %v1374
    %v1376 = vrot.slane %v1362, %v1375
    %v1377 = vcombine.high %v1353, 0.0
    %v1378 = vcombine.high %v1360, 0.0
    %v1379 = vcombine.high %v1369, 0.0
    %v1380 = vcombine.high %v1376, 0.0
    %v1381 = vcombine.low %v1353, %v1360
    %v1383 = vunpack.c.l.s4 1983009808
    %v1384 = vunpack.c.0.s8 %v1383
    %v1385 = vlaneseq
    %v1386 = vshrl.u32 %v1385, 7
    %v1387 = vsub.s32 %v1384, %v1386
    %v1388 = vrot.slane %v1381, %v1387
    %v1389 = vcombine.low %v1377, %v1378
    %v1391 = vunpack.c.l.s4 1983009808
    %v1392 = vunpack.c.0.s8 %v1391
    %v1393 = vlaneseq
    %v1394 = vshrl.u32 %v1393, 7
    %v1395 = vsub.s32 %v1392, %v1394
    %v1396 = vrot.slane %v1389, %v1395
    %v1397 = vcombine.low %v1369, %v1376
    %v1399 = vunpack.c.l.s4 1983009808
    %v1400 = vunpack.c.0.s8 %v1399
    %v1401 = vlaneseq
    %v1402 = vshrl.u32 %v1401, 7
    %v1403 = vsub.s32 %v1400, %v1402
    %v1404 = vrot.slane %v1397, %v1403
    %v1405 = vcombine.low %v1379, %v1380
    %v1407 = vunpack.c.l.s4 1983009808
    %v1408 = vunpack.c.0.s8 %v1407
    %v1409 = vlaneseq
    %v1410 = vshrl.u32 %v1409, 7
    %v1411 = vsub.s32 %v1408, %v1410
    %v1412 = vrot.slane %v1405, %v1411
    %v1413 = vcombine.low %v1388, %v1396
    %v1414 = vcombine.high %v1388, %v1396
    %v1416 = vunpack.c.l.s4 1934713408
    %v1417 = vunpack.c.0.s8 %v1416
    %v1418 = vlaneseq
    %v1419 = vshrl.u32 %v1418, 7
    %v1420 = vsub.s32 %v1417, %v1419
    %v1421 = vrot.slane %v1413, %v1420
    %v1423 = vunpack.c.l.s4 1934713408
    %v1424 = vunpack.c.0.s8 %v1423
    %v1425 = vlaneseq
    %v1426 = vshrl.u32 %v1425, 7
    %v1427 = vsub.s32 %v1424, %v1426
    %v1428 = vrot.slane %v1414, %v1427
    %v1429 = vcombine.low %v1404, %v1412
    %v1430 = vcombine.high %v1404, %v1412
    %v1432 = vunpack.c.l.s4 1934713408
    %v1433 = vunpack.c.0.s8 %v1432
    %v1434 = vlaneseq
    %v1435 = vshrl.u32 %v1434, 7
    %v1436 = vsub.s32 %v1433, %v1435
    %v1437 = vrot.slane %v1429, %v1436
    %v1439 = vunpack.c.l.s4 1934713408
    %v1440 = vunpack.c.0.s8 %v1439
    %v1441 = vlaneseq
    %v1442 = vshrl.u32 %v1441, 7
    %v1443 = vsub.s32 %v1440, %v1442
    %v1444 = vrot.slane %v1430, %v1443
    %v1445 = vcombine.low %v1421, %v1437
    %v1446 = vcombine.high %v1421, %v1437
    %v1447 = vcombine.low %v1428, %v1444
    %v1448 = vcombine.high %v1428, %v1444
    %1450 = vrot.lane.b32.xlu0 %v1446, 8
    %v1451 = vpop.permute.xlu0 %1450
    %1454 = vrot.lane.b32.xlu0 %v1447, 16
    %v1455 = vpop.permute.xlu0 %1454
    %1458 = vrot.lane.b32.xlu0 %v1448, 24
    %v1459 = vpop.permute.xlu0 %1458
    %v1461 = vsel %vm408, %v1445, %v1451
    %vm1462 = vcmask 130048
    %v1463 = vsel %vm1462, %v1461, %v1455
    %vm1464 = vcmask 195584
    %v1465 = vsel %vm1464, %v1463, %v1459
    %1467 = vrot.lane.b32.xlu0 %v254, 120
    %v1468 = vpop.permute.xlu0 %1467
    %1469 = vrot.lane.b32.xlu0 %v254, 112
    %v1470 = vpop.permute.xlu0 %1469
    %1471 = vrot.lane.b32.xlu0 %v254, 104
    %v1472 = vpop.permute.xlu0 %1471
    %v1473 = vlaneseq
    %v1474 = vshrl.u32 %v1473, 7
    %v1475 = vsub.s32 1, %v1474
    %v1476 = vrot.slane %v139, %v1475
    %1477 = vrot.lane.b32.xlu0 %v254, 96
    %v1478 = vpop.permute.xlu0 %1477
    %1479 = vrot.lane.b32.xlu0 %v1468, 96
    %v1480 = vpop.permute.xlu0 %1479
    %1481 = vrot.lane.b32.xlu0 %v1470, 96
    %v1482 = vpop.permute.xlu0 %1481
    %1483 = vrot.lane.b32.xlu0 %v1472, 96
    %v1484 = vpop.permute.xlu0 %1483
    %1489 = vxpose.xlu0.b32.start [1/16] %v1478, 128
    %1490 = vxpose.xlu0.b32.cont [2/16] 0.0, 128
    %1491 = vxpose.xlu0.b32.cont [3/16] 0.0, 128
    %1492 = vxpose.xlu0.b32.cont [4/16] 0.0, 128
    %1493 = vxpose.xlu0.b32.cont [5/16] 0.0, 128
    %1494 = vxpose.xlu0.b32.cont [6/16] 0.0, 128
    %1495 = vxpose.xlu0.b32.cont [7/16] 0.0, 128
    %1496 = vxpose.xlu0.b32.cont [8/16] 0.0, 128
    %1497 = vxpose.xlu0.b32.cont [9/16] 0.0, 128
    %1498 = vxpose.xlu0.b32.cont [10/16] 0.0, 128
    %1499 = vxpose.xlu0.b32.cont [11/16] 0.0, 128
    %1500 = vxpose.xlu0.b32.cont [12/16] 0.0, 128
    %1501 = vxpose.xlu0.b32.cont [13/16] 0.0, 128
    %1502 = vxpose.xlu0.b32.cont [14/16] 0.0, 128
    %1503 = vxpose.xlu0.b32.cont [15/16] 0.0, 128
    %1504 = vxpose.xlu0.b32.end [16/16] 0.0, 128
    %v1505 = vpop.trf.xlu0
    %v1506 = vpop.trf.xlu0
    %v1507 = vpop.trf.xlu0
    %v1508 = vpop.trf.xlu0
    %v1509 = vpop.trf.xlu0
    %v1510 = vpop.trf.xlu0
    %v1511 = vpop.trf.xlu0
    %v1512 = vpop.trf.xlu0
    %v1513 = vpop.trf.xlu0
    %v1514 = vpop.trf.xlu0
    %v1515 = vpop.trf.xlu0
    %v1516 = vpop.trf.xlu0
    %v1517 = vpop.trf.xlu0
    %v1518 = vpop.trf.xlu0
    %v1519 = vpop.trf.xlu0
    %v1520 = vpop.trf.xlu0
    %1521 = vxpose.xlu0.b32.start [1/16] %v1480, 128
    %1522 = vxpose.xlu0.b32.cont [2/16] 0.0, 128
    %1523 = vxpose.xlu0.b32.cont [3/16] 0.0, 128
    %1524 = vxpose.xlu0.b32.cont [4/16] 0.0, 128
    %1525 = vxpose.xlu0.b32.cont [5/16] 0.0, 128
    %1526 = vxpose.xlu0.b32.cont [6/16] 0.0, 128
    %1527 = vxpose.xlu0.b32.cont [7/16] 0.0, 128
    %1528 = vxpose.xlu0.b32.cont [8/16] 0.0, 128
    %1529 = vxpose.xlu0.b32.cont [9/16] 0.0, 128
    %1530 = vxpose.xlu0.b32.cont [10/16] 0.0, 128
    %1531 = vxpose.xlu0.b32.cont [11/16] 0.0, 128
    %1532 = vxpose.xlu0.b32.cont [12/16] 0.0, 128
    %1533 = vxpose.xlu0.b32.cont [13/16] 0.0, 128
    %1534 = vxpose.xlu0.b32.cont [14/16] 0.0, 128
    %1535 = vxpose.xlu0.b32.cont [15/16] 0.0, 128
    %1536 = vxpose.xlu0.b32.end [16/16] 0.0, 128
    %v1537 = vpop.trf.xlu0
    %v1538 = vpop.trf.xlu0
    %v1539 = vpop.trf.xlu0
    %v1540 = vpop.trf.xlu0
    %v1541 = vpop.trf.xlu0
    %v1542 = vpop.trf.xlu0
    %v1543 = vpop.trf.xlu0
    %v1544 = vpop.trf.xlu0
    %v1545 = vpop.trf.xlu0
    %v1546 = vpop.trf.xlu0
    %v1547 = vpop.trf.xlu0
    %v1548 = vpop.trf.xlu0
    %v1549 = vpop.trf.xlu0
    %v1550 = vpop.trf.xlu0
    %v1551 = vpop.trf.xlu0
    %v1552 = vpop.trf.xlu0
    %1553 = vxpose.xlu0.b32.start [1/16] %v1482, 128
    %1554 = vxpose.xlu0.b32.cont [2/16] 0.0, 128
    %1555 = vxpose.xlu0.b32.cont [3/16] 0.0, 128
    %1556 = vxpose.xlu0.b32.cont [4/16] 0.0, 128
    %1557 = vxpose.xlu0.b32.cont [5/16] 0.0, 128
    %1558 = vxpose.xlu0.b32.cont [6/16] 0.0, 128
    %1559 = vxpose.xlu0.b32.cont [7/16] 0.0, 128
    %1560 = vxpose.xlu0.b32.cont [8/16] 0.0, 128
    %1561 = vxpose.xlu0.b32.cont [9/16] 0.0, 128
    %1562 = vxpose.xlu0.b32.cont [10/16] 0.0, 128
    %1563 = vxpose.xlu0.b32.cont [11/16] 0.0, 128
    %1564 = vxpose.xlu0.b32.cont [12/16] 0.0, 128
    %1565 = vxpose.xlu0.b32.cont [13/16] 0.0, 128
    %1566 = vxpose.xlu0.b32.cont [14/16] 0.0, 128
    %1567 = vxpose.xlu0.b32.cont [15/16] 0.0, 128
    %1568 = vxpose.xlu0.b32.end [16/16] 0.0, 128
    %v1569 = vpop.trf.xlu0
    %v1570 = vpop.trf.xlu0
    %v1571 = vpop.trf.xlu0
    %v1572 = vpop.trf.xlu0
    %v1573 = vpop.trf.xlu0
    %v1574 = vpop.trf.xlu0
    %v1575 = vpop.trf.xlu0
    %v1576 = vpop.trf.xlu0
    %v1577 = vpop.trf.xlu0
    %v1578 = vpop.trf.xlu0
    %v1579 = vpop.trf.xlu0
    %v1580 = vpop.trf.xlu0
    %v1581 = vpop.trf.xlu0
    %v1582 = vpop.trf.xlu0
    %v1583 = vpop.trf.xlu0
    %v1584 = vpop.trf.xlu0
    %1585 = vxpose.xlu0.b32.start [1/16] %v1484, 128
    %1586 = vxpose.xlu0.b32.cont [2/16] 0.0, 128
    %1587 = vxpose.xlu0.b32.cont [3/16] 0.0, 128
    %1588 = vxpose.xlu0.b32.cont [4/16] 0.0, 128
    %1589 = vxpose.xlu0.b32.cont [5/16] 0.0, 128
    %1590 = vxpose.xlu0.b32.cont [6/16] 0.0, 128
    %1591 = vxpose.xlu0.b32.cont [7/16] 0.0, 128
    %1592 = vxpose.xlu0.b32.cont [8/16] 0.0, 128
    %1593 = vxpose.xlu0.b32.cont [9/16] 0.0, 128
    %1594 = vxpose.xlu0.b32.cont [10/16] 0.0, 128
    %1595 = vxpose.xlu0.b32.cont [11/16] 0.0, 128
    %1596 = vxpose.xlu0.b32.cont [12/16] 0.0, 128
    %1597 = vxpose.xlu0.b32.cont [13/16] 0.0, 128
    %1598 = vxpose.xlu0.b32.cont [14/16] 0.0, 128
    %1599 = vxpose.xlu0.b32.cont [15/16] 0.0, 128
    %1600 = vxpose.xlu0.b32.end [16/16] 0.0, 128
    %v1601 = vpop.trf.xlu0
    %v1602 = vpop.trf.xlu0
    %v1603 = vpop.trf.xlu0
    %v1604 = vpop.trf.xlu0
    %v1605 = vpop.trf.xlu0
    %v1606 = vpop.trf.xlu0
    %v1607 = vpop.trf.xlu0
    %v1608 = vpop.trf.xlu0
    %v1609 = vpop.trf.xlu0
    %v1610 = vpop.trf.xlu0
    %v1611 = vpop.trf.xlu0
    %v1612 = vpop.trf.xlu0
    %v1613 = vpop.trf.xlu0
    %v1614 = vpop.trf.xlu0
    %v1615 = vpop.trf.xlu0
    %v1616 = vpop.trf.xlu0
    %v1617 = vsel %vm408, %v254, 0
    %1619 = vmatprep.subr.mxu0 0.0
    %1620 = vmatpush1.msra.mxu0 %v1505
    %1621 = vmatprep.subr.mxu0 0.0
    %1622 = vmatpush1.msra.mxu0 0.0
    %1623 = vmatprep.subr.mxu0 0.0
    %1624 = vmatpush1.msra.mxu0 0.0
    %1625 = vmatprep.subr.mxu0 0.0
    %1626 = vmatpush1.msra.mxu0 0.0
    %1627 = vmatprep.subr.mxu0 0.0
    %1628 = vmatpush1.msra.mxu0 0.0
    %1629 = vmatprep.subr.mxu0 0.0
    %1630 = vmatpush1.msra.mxu0 0.0
    %1631 = vmatprep.subr.mxu0 0.0
    %1632 = vmatpush1.msra.mxu0 0.0
    %1633 = vmatprep.subr.mxu0 0.0
    %1634 = vmatpush1.msra.mxu0 0.0
    %1635 = vmatprep.subr.mxu0 0.0
    %1636 = vmatpush1.msra.mxu0 0.0
    %1637 = vmatprep.subr.mxu0 0.0
    %1638 = vmatpush1.msra.mxu0 0.0
    %1639 = vmatprep.subr.mxu0 0.0
    %1640 = vmatpush1.msra.mxu0 0.0
    %1641 = vmatprep.subr.mxu0 0.0
    %1642 = vmatpush1.msra.mxu0 0.0
    %1643 = vmatprep.subr.mxu0 0.0
    %1644 = vmatpush1.msra.mxu0 0.0
    %1645 = vmatprep.subr.mxu0 0.0
    %1646 = vmatpush1.msra.mxu0 0.0
    %1647 = vmatprep.subr.mxu0 0.0
    %1648 = vmatpush1.msra.mxu0 0.0
    %1649 = vmatprep.subr.mxu0 0.0
    %1650 = vmatpush1.msra.mxu0 0.0
    %1651 = vmatprep.subr.mxu0 0.0
    %1652 = vmatpush1.msra.mxu0 0.0
    %1653 = vmatprep.subr.mxu0 0.0
    %1654 = vmatpush1.msra.mxu0 0.0
    %1655 = vmatprep.subr.mxu0 0.0
    %1656 = vmatpush1.msra.mxu0 0.0
    %1657 = vmatprep.subr.mxu0 0.0
    %1658 = vmatpush1.msra.mxu0 0.0
    %1659 = vmatprep.subr.mxu0 0.0
    %1660 = vmatpush1.msra.mxu0 0.0
    %1661 = vmatprep.subr.mxu0 0.0
    %1662 = vmatpush1.msra.mxu0 0.0
    %1663 = vmatprep.subr.mxu0 0.0
    %1664 = vmatpush1.msra.mxu0 0.0
    %1665 = vmatprep.subr.mxu0 0.0
    %1666 = vmatpush1.msra.mxu0 0.0
    %1667 = vmatprep.subr.mxu0 0.0
    %1668 = vmatpush1.msra.mxu0 0.0
    %1669 = vmatprep.subr.mxu0 0.0
    %1670 = vmatpush1.msra.mxu0 0.0
    %1671 = vmatprep.subr.mxu0 0.0
    %1672 = vmatpush1.msra.mxu0 0.0
    %1673 = vmatprep.subr.mxu0 0.0
    %1674 = vmatpush1.msra.mxu0 0.0
    %1675 = vmatprep.subr.mxu0 0.0
    %1676 = vmatpush1.msra.mxu0 0.0
    %1677 = vmatprep.subr.mxu0 0.0
    %1678 = vmatpush1.msra.mxu0 0.0
    %1679 = vmatprep.subr.mxu0 0.0
    %1680 = vmatpush1.msra.mxu0 0.0
    %1681 = vmatprep.subr.mxu0 0.0
    %1682 = vmatpush1.msra.mxu0 0.0
    %1683 = vmatprep.mubr.f32.mxu0 0.0
    %1684 = vmatmul.mubr.f32.gmra.mrb[0].mxu0 %v1617
    %v1685 = vpop.f32.mrb[0].mxu0
    %v1686 = vadd.f32 %v1476, %v1685
    %v1687 = vpop.f32.mrb[0].mxu0
    %1688 = vdwg.mxu0
    %v1689 = vsel %vm408, %v1468, 0
    %1691 = vmatprep.subr.mxu0 0.0
    %1692 = vmatpush1.msra.mxu0 %v1537
    %1693 = vmatprep.subr.mxu0 0.0
    %1694 = vmatpush1.msra.mxu0 0.0
    %1695 = vmatprep.subr.mxu0 0.0
    %1696 = vmatpush1.msra.mxu0 0.0
    %1697 = vmatprep.subr.mxu0 0.0
    %1698 = vmatpush1.msra.mxu0 0.0
    %1699 = vmatprep.subr.mxu0 0.0
    %1700 = vmatpush1.msra.mxu0 0.0
    %1701 = vmatprep.subr.mxu0 0.0
    %1702 = vmatpush1.msra.mxu0 0.0
    %1703 = vmatprep.subr.mxu0 0.0
    %1704 = vmatpush1.msra.mxu0 0.0
    %1705 = vmatprep.subr.mxu0 0.0
    %1706 = vmatpush1.msra.mxu0 0.0
    %1707 = vmatprep.subr.mxu0 0.0
    %1708 = vmatpush1.msra.mxu0 0.0
    %1709 = vmatprep.subr.mxu0 0.0
    %1710 = vmatpush1.msra.mxu0 0.0
    %1711 = vmatprep.subr.mxu0 0.0
    %1712 = vmatpush1.msra.mxu0 0.0
    %1713 = vmatprep.subr.mxu0 0.0
    %1714 = vmatpush1.msra.mxu0 0.0
    %1715 = vmatprep.subr.mxu0 0.0
    %1716 = vmatpush1.msra.mxu0 0.0
    %1717 = vmatprep.subr.mxu0 0.0
    %1718 = vmatpush1.msra.mxu0 0.0
    %1719 = vmatprep.subr.mxu0 0.0
    %1720 = vmatpush1.msra.mxu0 0.0
    %1721 = vmatprep.subr.mxu0 0.0
    %1722 = vmatpush1.msra.mxu0 0.0
    %1723 = vmatprep.subr.mxu0 0.0
    %1724 = vmatpush1.msra.mxu0 0.0
    %1725 = vmatprep.subr.mxu0 0.0
    %1726 = vmatpush1.msra.mxu0 0.0
    %1727 = vmatprep.subr.mxu0 0.0
    %1728 = vmatpush1.msra.mxu0 0.0
    %1729 = vmatprep.subr.mxu0 0.0
    %1730 = vmatpush1.msra.mxu0 0.0
    %1731 = vmatprep.subr.mxu0 0.0
    %1732 = vmatpush1.msra.mxu0 0.0
    %1733 = vmatprep.subr.mxu0 0.0
    %1734 = vmatpush1.msra.mxu0 0.0
    %1735 = vmatprep.subr.mxu0 0.0
    %1736 = vmatpush1.msra.mxu0 0.0
    %1737 = vmatprep.subr.mxu0 0.0
    %1738 = vmatpush1.msra.mxu0 0.0
    %1739 = vmatprep.subr.mxu0 0.0
    %1740 = vmatpush1.msra.mxu0 0.0
    %1741 = vmatprep.subr.mxu0 0.0
    %1742 = vmatpush1.msra.mxu0 0.0
    %1743 = vmatprep.subr.mxu0 0.0
    %1744 = vmatpush1.msra.mxu0 0.0
    %1745 = vmatprep.subr.mxu0 0.0
    %1746 = vmatpush1.msra.mxu0 0.0
    %1747 = vmatprep.subr.mxu0 0.0
    %1748 = vmatpush1.msra.mxu0 0.0
    %1749 = vmatprep.subr.mxu0 0.0
    %1750 = vmatpush1.msra.mxu0 0.0
    %1751 = vmatprep.subr.mxu0 0.0
    %1752 = vmatpush1.msra.mxu0 0.0
    %1753 = vmatprep.subr.mxu0 0.0
    %1754 = vmatpush1.msra.mxu0 0.0
    %1755 = vmatprep.mubr.f32.mxu0 0.0
    %1756 = vmatmul.mubr.f32.gmra.mrb[0].mxu0 %v1689
    %v1757 = vpop.f32.mrb[0].mxu0
    %v1758 = vadd.f32 %v1476, %v1757
    %v1759 = vpop.f32.mrb[0].mxu0
    %1760 = vdwg.mxu0
    %v1761 = vsel %vm408, %v1470, 0
    %1763 = vmatprep.subr.mxu0 0.0
    %1764 = vmatpush1.msra.mxu0 %v1569
    %1765 = vmatprep.subr.mxu0 0.0
    %1766 = vmatpush1.msra.mxu0 0.0
    %1767 = vmatprep.subr.mxu0 0.0
    %1768 = vmatpush1.msra.mxu0 0.0
    %1769 = vmatprep.subr.mxu0 0.0
    %1770 = vmatpush1.msra.mxu0 0.0
    %1771 = vmatprep.subr.mxu0 0.0
    %1772 = vmatpush1.msra.mxu0 0.0
    %1773 = vmatprep.subr.mxu0 0.0
    %1774 = vmatpush1.msra.mxu0 0.0
    %1775 = vmatprep.subr.mxu0 0.0
    %1776 = vmatpush1.msra.mxu0 0.0
    %1777 = vmatprep.subr.mxu0 0.0
    %1778 = vmatpush1.msra.mxu0 0.0
    %1779 = vmatprep.subr.mxu0 0.0
    %1780 = vmatpush1.msra.mxu0 0.0
    %1781 = vmatprep.subr.mxu0 0.0
    %1782 = vmatpush1.msra.mxu0 0.0
    %1783 = vmatprep.subr.mxu0 0.0
    %1784 = vmatpush1.msra.mxu0 0.0
    %1785 = vmatprep.subr.mxu0 0.0
    %1786 = vmatpush1.msra.mxu0 0.0
    %1787 = vmatprep.subr.mxu0 0.0
    %1788 = vmatpush1.msra.mxu0 0.0
    %1789 = vmatprep.subr.mxu0 0.0
    %1790 = vmatpush1.msra.mxu0 0.0
    %1791 = vmatprep.subr.mxu0 0.0
    %1792 = vmatpush1.msra.mxu0 0.0
    %1793 = vmatprep.subr.mxu0 0.0
    %1794 = vmatpush1.msra.mxu0 0.0
    %1795 = vmatprep.subr.mxu0 0.0
    %1796 = vmatpush1.msra.mxu0 0.0
    %1797 = vmatprep.subr.mxu0 0.0
    %1798 = vmatpush1.msra.mxu0 0.0
    %1799 = vmatprep.subr.mxu0 0.0
    %1800 = vmatpush1.msra.mxu0 0.0
    %1801 = vmatprep.subr.mxu0 0.0
    %1802 = vmatpush1.msra.mxu0 0.0
    %1803 = vmatprep.subr.mxu0 0.0
    %1804 = vmatpush1.msra.mxu0 0.0
    %1805 = vmatprep.subr.mxu0 0.0
    %1806 = vmatpush1.msra.mxu0 0.0
    %1807 = vmatprep.subr.mxu0 0.0
    %1808 = vmatpush1.msra.mxu0 0.0
    %1809 = vmatprep.subr.mxu0 0.0
    %1810 = vmatpush1.msra.mxu0 0.0
    %1811 = vmatprep.subr.mxu0 0.0
    %1812 = vmatpush1.msra.mxu0 0.0
    %1813 = vmatprep.subr.mxu0 0.0
    %1814 = vmatpush1.msra.mxu0 0.0
    %1815 = vmatprep.subr.mxu0 0.0
    %1816 = vmatpush1.msra.mxu0 0.0
    %1817 = vmatprep.subr.mxu0 0.0
    %1818 = vmatpush1.msra.mxu0 0.0
    %1819 = vmatprep.subr.mxu0 0.0
    %1820 = vmatpush1.msra.mxu0 0.0
    %1821 = vmatprep.subr.mxu0 0.0
    %1822 = vmatpush1.msra.mxu0 0.0
    %1823 = vmatprep.subr.mxu0 0.0
    %1824 = vmatpush1.msra.mxu0 0.0
    %1825 = vmatprep.subr.mxu0 0.0
    %1826 = vmatpush1.msra.mxu0 0.0
    %1827 = vmatprep.mubr.f32.mxu0 0.0
    %1828 = vmatmul.mubr.f32.gmra.mrb[0].mxu0 %v1761
    %v1829 = vpop.f32.mrb[0].mxu0
    %v1830 = vadd.f32 %v1476, %v1829
    %v1831 = vpop.f32.mrb[0].mxu0
    %1832 = vdwg.mxu0
    %v1833 = vsel %vm408, %v1472, 0
    %1835 = vmatprep.subr.mxu0 0.0
    %1836 = vmatpush1.msra.mxu0 %v1601
    %1837 = vmatprep.subr.mxu0 0.0
    %1838 = vmatpush1.msra.mxu0 0.0
    %1839 = vmatprep.subr.mxu0 0.0
    %1840 = vmatpush1.msra.mxu0 0.0
    %1841 = vmatprep.subr.mxu0 0.0
    %1842 = vmatpush1.msra.mxu0 0.0
    %1843 = vmatprep.subr.mxu0 0.0
    %1844 = vmatpush1.msra.mxu0 0.0
    %1845 = vmatprep.subr.mxu0 0.0
    %1846 = vmatpush1.msra.mxu0 0.0
    %1847 = vmatprep.subr.mxu0 0.0
    %1848 = vmatpush1.msra.mxu0 0.0
    %1849 = vmatprep.subr.mxu0 0.0
    %1850 = vmatpush1.msra.mxu0 0.0
    %1851 = vmatprep.subr.mxu0 0.0
    %1852 = vmatpush1.msra.mxu0 0.0
    %1853 = vmatprep.subr.mxu0 0.0
    %1854 = vmatpush1.msra.mxu0 0.0
    %1855 = vmatprep.subr.mxu0 0.0
    %1856 = vmatpush1.msra.mxu0 0.0
    %1857 = vmatprep.subr.mxu0 0.0
    %1858 = vmatpush1.msra.mxu0 0.0
    %1859 = vmatprep.subr.mxu0 0.0
    %1860 = vmatpush1.msra.mxu0 0.0
    %1861 = vmatprep.subr.mxu0 0.0
    %1862 = vmatpush1.msra.mxu0 0.0
    %1863 = vmatprep.subr.mxu0 0.0
    %1864 = vmatpush1.msra.mxu0 0.0
    %1865 = vmatprep.subr.mxu0 0.0
    %1866 = vmatpush1.msra.mxu0 0.0
    %1867 = vmatprep.subr.mxu0 0.0
    %1868 = vmatpush1.msra.mxu0 0.0
    %1869 = vmatprep.subr.mxu0 0.0
    %1870 = vmatpush1.msra.mxu0 0.0
    %1871 = vmatprep.subr.mxu0 0.0
    %1872 = vmatpush1.msra.mxu0 0.0
    %1873 = vmatprep.subr.mxu0 0.0
    %1874 = vmatpush1.msra.mxu0 0.0
    %1875 = vmatprep.subr.mxu0 0.0
    %1876 = vmatpush1.msra.mxu0 0.0
    %1877 = vmatprep.subr.mxu0 0.0
    %1878 = vmatpush1.msra.mxu0 0.0
    %1879 = vmatprep.subr.mxu0 0.0
    %1880 = vmatpush1.msra.mxu0 0.0
    %1881 = vmatprep.subr.mxu0 0.0
    %1882 = vmatpush1.msra.mxu0 0.0
    %1883 = vmatprep.subr.mxu0 0.0
    %1884 = vmatpush1.msra.mxu0 0.0
    %1885 = vmatprep.subr.mxu0 0.0
    %1886 = vmatpush1.msra.mxu0 0.0
    %1887 = vmatprep.subr.mxu0 0.0
    %1888 = vmatpush1.msra.mxu0 0.0
    %1889 = vmatprep.subr.mxu0 0.0
    %1890 = vmatpush1.msra.mxu0 0.0
    %1891 = vmatprep.subr.mxu0 0.0
    %1892 = vmatpush1.msra.mxu0 0.0
    %1893 = vmatprep.subr.mxu0 0.0
    %1894 = vmatpush1.msra.mxu0 0.0
    %1895 = vmatprep.subr.mxu0 0.0
    %1896 = vmatpush1.msra.mxu0 0.0
    %1897 = vmatprep.subr.mxu0 0.0
    %1898 = vmatpush1.msra.mxu0 0.0
    %1899 = vmatprep.mubr.f32.mxu0 0.0
    %1900 = vmatmul.mubr.f32.gmra.mrb[0].mxu0 %v1833
    %v1901 = vpop.f32.mrb[0].mxu0
    %v1902 = vadd.f32 %v1476, %v1901
    %v1903 = vpop.f32.mrb[0].mxu0
    %1904 = vdwg.mxu0
    %v1905 = vsel %vm408, %v1686, -inf
    %1906 = vmax.xlane.f32.xlu0 %v1905
    %v1907 = vpop.xlane.xlu0 %1906
    %v1908 = vsel %vm408, %v1758, -inf
    %1909 = vmax.xlane.f32.xlu0 %v1908
    %v1910 = vpop.xlane.xlu0 %1909
    %v1911 = vsel %vm408, %v1830, -inf
    %1912 = vmax.xlane.f32.xlu0 %v1911
    %v1913 = vpop.xlane.xlu0 %1912
    %v1914 = vsel %vm408, %v1902, -inf
    %1915 = vmax.xlane.f32.xlu0 %v1914
    %v1916 = vpop.xlane.xlu0 %1915
    %v1917 = vsub.f32 %v1686, %v1907
    %v1918 = vsub.f32 %v1758, %v1910
    %v1919 = vsub.f32 %v1830, %v1913
    %v1920 = vsub.f32 %v1902, %v1916
    %v1921 = vmul.f32 %v1917, 1.442695
    %v1922 = vpow.pop %v1921
    %v1923 = vmul.f32 %v1918, 1.442695
    %v1924 = vpow.pop %v1923
    %v1925 = vmul.f32 %v1919, 1.442695
    %v1926 = vpow.pop %v1925
    %v1927 = vmul.f32 %v1920, 1.442695
    %v1928 = vpow.pop %v1927
    %v1929 = vsel %vm408, %v1922, 0.0
    %1930 = vadd.xlane.f32.xlu0 %v1929
    %v1931 = vpop.xlane.xlu0 %1930
    %v1932 = vsel %vm408, %v1924, 0.0
    %1933 = vadd.xlane.f32.xlu0 %v1932
    %v1934 = vpop.xlane.xlu0 %1933
    %v1935 = vsel %vm408, %v1926, 0.0
    %1936 = vadd.xlane.f32.xlu0 %v1935
    %v1937 = vpop.xlane.xlu0 %1936
    %v1938 = vsel %vm408, %v1928, 0.0
    %1939 = vadd.xlane.f32.xlu0 %v1938
    %v1940 = vpop.xlane.xlu0 %1939
    %v1941 = vrcp.pop %v1931
    %v1942 = vrcp.pop %v1934
    %v1943 = vrcp.pop %v1937
    %v1944 = vrcp.pop %v1940
    %v1945 = vmul.f32 %v1922, %v1941
    %v1946 = vmul.f32 %v1924, %v1942
    %v1947 = vmul.f32 %v1926, %v1943
    %v1948 = vmul.f32 %v1928, %v1944
    %1949 = vrot.lane.b32.xlu0 %v254, 64
    %v1950 = vpop.permute.xlu0 %1949
    %1951 = vrot.lane.b32.xlu0 %v1468, 64
    %v1952 = vpop.permute.xlu0 %1951
    %1953 = vrot.lane.b32.xlu0 %v1470, 64
    %v1954 = vpop.permute.xlu0 %1953
    %1955 = vrot.lane.b32.xlu0 %v1472, 64
    %v1956 = vpop.permute.xlu0 %1955
    %1961 = vxpose.xlu0.b32.start [1/16] %v1950, 128
    %1962 = vxpose.xlu0.b32.cont [2/16] 0.0, 128
    %1963 = vxpose.xlu0.b32.cont [3/16] 0.0, 128
    %1964 = vxpose.xlu0.b32.cont [4/16] 0.0, 128
    %1965 = vxpose.xlu0.b32.cont [5/16] 0.0, 128
    %1966 = vxpose.xlu0.b32.cont [6/16] 0.0, 128
    %1967 = vxpose.xlu0.b32.cont [7/16] 0.0, 128
    %1968 = vxpose.xlu0.b32.cont [8/16] 0.0, 128
    %1969 = vxpose.xlu0.b32.cont [9/16] 0.0, 128
    %1970 = vxpose.xlu0.b32.cont [10/16] 0.0, 128
    %1971 = vxpose.xlu0.b32.cont [11/16] 0.0, 128
    %1972 = vxpose.xlu0.b32.cont [12/16] 0.0, 128
    %1973 = vxpose.xlu0.b32.cont [13/16] 0.0, 128
    %1974 = vxpose.xlu0.b32.cont [14/16] 0.0, 128
    %1975 = vxpose.xlu0.b32.cont [15/16] 0.0, 128
    %1976 = vxpose.xlu0.b32.end [16/16] 0.0, 128
    %v1977 = vpop.trf.xlu0
    %v1978 = vpop.trf.xlu0
    %v1979 = vpop.trf.xlu0
    %v1980 = vpop.trf.xlu0
    %v1981 = vpop.trf.xlu0
    %v1982 = vpop.trf.xlu0
    %v1983 = vpop.trf.xlu0
    %v1984 = vpop.trf.xlu0
    %v1985 = vpop.trf.xlu0
    %v1986 = vpop.trf.xlu0
    %v1987 = vpop.trf.xlu0
    %v1988 = vpop.trf.xlu0
    %v1989 = vpop.trf.xlu0
    %v1990 = vpop.trf.xlu0
    %v1991 = vpop.trf.xlu0
    %v1992 = vpop.trf.xlu0
    %1993 = vxpose.xlu0.b32.start [1/16] %v1952, 128
    %1994 = vxpose.xlu0.b32.cont [2/16] 0.0, 128
    %1995 = vxpose.xlu0.b32.cont [3/16] 0.0, 128
    %1996 = vxpose.xlu0.b32.cont [4/16] 0.0, 128
    %1997 = vxpose.xlu0.b32.cont [5/16] 0.0, 128
    %1998 = vxpose.xlu0.b32.cont [6/16] 0.0, 128
    %1999 = vxpose.xlu0.b32.cont [7/16] 0.0, 128
    %2000 = vxpose.xlu0.b32.cont [8/16] 0.0, 128
    %2001 = vxpose.xlu0.b32.cont [9/16] 0.0, 128
    %2002 = vxpose.xlu0.b32.cont [10/16] 0.0, 128
    %2003 = vxpose.xlu0.b32.cont [11/16] 0.0, 128
    %2004 = vxpose.xlu0.b32.cont [12/16] 0.0, 128
    %2005 = vxpose.xlu0.b32.cont [13/16] 0.0, 128
    %2006 = vxpose.xlu0.b32.cont [14/16] 0.0, 128
    %2007 = vxpose.xlu0.b32.cont [15/16] 0.0, 128
    %2008 = vxpose.xlu0.b32.end [16/16] 0.0, 128
    %v2009 = vpop.trf.xlu0
    %v2010 = vpop.trf.xlu0
    %v2011 = vpop.trf.xlu0
    %v2012 = vpop.trf.xlu0
    %v2013 = vpop.trf.xlu0
    %v2014 = vpop.trf.xlu0
    %v2015 = vpop.trf.xlu0
    %v2016 = vpop.trf.xlu0
    %v2017 = vpop.trf.xlu0
    %v2018 = vpop.trf.xlu0
    %v2019 = vpop.trf.xlu0
    %v2020 = vpop.trf.xlu0
    %v2021 = vpop.trf.xlu0
    %v2022 = vpop.trf.xlu0
    %v2023 = vpop.trf.xlu0
    %v2024 = vpop.trf.xlu0
    %2025 = vxpose.xlu0.b32.start [1/16] %v1954, 128
    %2026 = vxpose.xlu0.b32.cont [2/16] 0.0, 128
    %2027 = vxpose.xlu0.b32.cont [3/16] 0.0, 128
    %2028 = vxpose.xlu0.b32.cont [4/16] 0.0, 128
    %2029 = vxpose.xlu0.b32.cont [5/16] 0.0, 128
    %2030 = vxpose.xlu0.b32.cont [6/16] 0.0, 128
    %2031 = vxpose.xlu0.b32.cont [7/16] 0.0, 128
    %2032 = vxpose.xlu0.b32.cont [8/16] 0.0, 128
    %2033 = vxpose.xlu0.b32.cont [9/16] 0.0, 128
    %2034 = vxpose.xlu0.b32.cont [10/16] 0.0, 128
    %2035 = vxpose.xlu0.b32.cont [11/16] 0.0, 128
    %2036 = vxpose.xlu0.b32.cont [12/16] 0.0, 128
    %2037 = vxpose.xlu0.b32.cont [13/16] 0.0, 128
    %2038 = vxpose.xlu0.b32.cont [14/16] 0.0, 128
    %2039 = vxpose.xlu0.b32.cont [15/16] 0.0, 128
    %2040 = vxpose.xlu0.b32.end [16/16] 0.0, 128
    %v2041 = vpop.trf.xlu0
    %v2042 = vpop.trf.xlu0
    %v2043 = vpop.trf.xlu0
    %v2044 = vpop.trf.xlu0
    %v2045 = vpop.trf.xlu0
    %v2046 = vpop.trf.xlu0
    %v2047 = vpop.trf.xlu0
    %v2048 = vpop.trf.xlu0
    %v2049 = vpop.trf.xlu0
    %v2050 = vpop.trf.xlu0
    %v2051 = vpop.trf.xlu0
    %v2052 = vpop.trf.xlu0
    %v2053 = vpop.trf.xlu0
    %v2054 = vpop.trf.xlu0
    %v2055 = vpop.trf.xlu0
    %v2056 = vpop.trf.xlu0
    %2057 = vxpose.xlu0.b32.start [1/16] %v1956, 128
    %2058 = vxpose.xlu0.b32.cont [2/16] 0.0, 128
    %2059 = vxpose.xlu0.b32.cont [3/16] 0.0, 128
    %2060 = vxpose.xlu0.b32.cont [4/16] 0.0, 128
    %2061 = vxpose.xlu0.b32.cont [5/16] 0.0, 128
    %2062 = vxpose.xlu0.b32.cont [6/16] 0.0, 128
    %2063 = vxpose.xlu0.b32.cont [7/16] 0.0, 128
    %2064 = vxpose.xlu0.b32.cont [8/16] 0.0, 128
    %2065 = vxpose.xlu0.b32.cont [9/16] 0.0, 128
    %2066 = vxpose.xlu0.b32.cont [10/16] 0.0, 128
    %2067 = vxpose.xlu0.b32.cont [11/16] 0.0, 128
    %2068 = vxpose.xlu0.b32.cont [12/16] 0.0, 128
    %2069 = vxpose.xlu0.b32.cont [13/16] 0.0, 128
    %2070 = vxpose.xlu0.b32.cont [14/16] 0.0, 128
    %2071 = vxpose.xlu0.b32.cont [15/16] 0.0, 128
    %2072 = vxpose.xlu0.b32.end [16/16] 0.0, 128
    %v2073 = vpop.trf.xlu0
    %v2074 = vpop.trf.xlu0
    %v2075 = vpop.trf.xlu0
    %v2076 = vpop.trf.xlu0
    %v2077 = vpop.trf.xlu0
    %v2078 = vpop.trf.xlu0
    %v2079 = vpop.trf.xlu0
    %v2080 = vpop.trf.xlu0
    %v2081 = vpop.trf.xlu0
    %v2082 = vpop.trf.xlu0
    %v2083 = vpop.trf.xlu0
    %v2084 = vpop.trf.xlu0
    %v2085 = vpop.trf.xlu0
    %v2086 = vpop.trf.xlu0
    %v2087 = vpop.trf.xlu0
    %v2088 = vpop.trf.xlu0
    %v2090 = vsel %vm408, %v1977, 0
    %v2093 = vsel %vm408, %v1945, 0
    %2095 = vmatprep.subr.mxu0 0.0
    %2096 = vmatpush1.xpose.msra.mxu0 %v2093
    %2097 = vmatprep.subr.mxu0 0.0
    %2098 = vmatpush1.xpose.msra.mxu0 0.0
    %2099 = vmatprep.subr.mxu0 0.0
    %2100 = vmatpush1.xpose.msra.mxu0 0.0
    %2101 = vmatprep.subr.mxu0 0.0
    %2102 = vmatpush1.xpose.msra.mxu0 0.0
    %2103 = vmatprep.subr.mxu0 0.0
    %2104 = vmatpush1.xpose.msra.mxu0 0.0
    %2105 = vmatprep.subr.mxu0 0.0
    %2106 = vmatpush1.xpose.msra.mxu0 0.0
    %2107 = vmatprep.subr.mxu0 0.0
    %2108 = vmatpush1.xpose.msra.mxu0 0.0
    %2109 = vmatprep.subr.mxu0 0.0
    %2110 = vmatpush1.xpose.msra.mxu0 0.0
    %2111 = vmatprep.subr.mxu0 0.0
    %2112 = vmatpush1.xpose.msra.mxu0 0.0
    %2113 = vmatprep.subr.mxu0 0.0
    %2114 = vmatpush1.xpose.msra.mxu0 0.0
    %2115 = vmatprep.subr.mxu0 0.0
    %2116 = vmatpush1.xpose.msra.mxu0 0.0
    %2117 = vmatprep.subr.mxu0 0.0
    %2118 = vmatpush1.xpose.msra.mxu0 0.0
    %2119 = vmatprep.subr.mxu0 0.0
    %2120 = vmatpush1.xpose.msra.mxu0 0.0
    %2121 = vmatprep.subr.mxu0 0.0
    %2122 = vmatpush1.xpose.msra.mxu0 0.0
    %2123 = vmatprep.subr.mxu0 0.0
    %2124 = vmatpush1.xpose.msra.mxu0 0.0
    %2125 = vmatprep.subr.mxu0 0.0
    %2126 = vmatpush1.xpose.msra.mxu0 0.0
    %2127 = vmatprep.subr.mxu0 0.0
    %2128 = vmatpush1.xpose.msra.mxu0 0.0
    %2129 = vmatprep.subr.mxu0 0.0
    %2130 = vmatpush1.xpose.msra.mxu0 0.0
    %2131 = vmatprep.subr.mxu0 0.0
    %2132 = vmatpush1.xpose.msra.mxu0 0.0
    %2133 = vmatprep.subr.mxu0 0.0
    %2134 = vmatpush1.xpose.msra.mxu0 0.0
    %2135 = vmatprep.subr.mxu0 0.0
    %2136 = vmatpush1.xpose.msra.mxu0 0.0
    %2137 = vmatprep.subr.mxu0 0.0
    %2138 = vmatpush1.xpose.msra.mxu0 0.0
    %2139 = vmatprep.subr.mxu0 0.0
    %2140 = vmatpush1.xpose.msra.mxu0 0.0
    %2141 = vmatprep.subr.mxu0 0.0
    %2142 = vmatpush1.xpose.msra.mxu0 0.0
    %2143 = vmatprep.subr.mxu0 0.0
    %2144 = vmatpush1.xpose.msra.mxu0 0.0
    %2145 = vmatprep.subr.mxu0 0.0
    %2146 = vmatpush1.xpose.msra.mxu0 0.0
    %2147 = vmatprep.subr.mxu0 0.0
    %2148 = vmatpush1.xpose.msra.mxu0 0.0
    %2149 = vmatprep.subr.mxu0 0.0
    %2150 = vmatpush1.xpose.msra.mxu0 0.0
    %2151 = vmatprep.subr.mxu0 0.0
    %2152 = vmatpush1.xpose.msra.mxu0 0.0
    %2153 = vmatprep.subr.mxu0 0.0
    %2154 = vmatpush1.xpose.msra.mxu0 0.0
    %2155 = vmatprep.subr.mxu0 0.0
    %2156 = vmatpush1.xpose.msra.mxu0 0.0
    %2157 = vmatprep.subr.mxu0 0.0
    %2158 = vmatpush1.xpose.msra.mxu0 0.0
    %2159 = vmatprep.mubr.f32.mxu0 0.0
    %2160 = vmatmul.mubr.f32.gmra.mrb[0].mxu0 %v2090
    %v2161 = vpop.f32.mrb[0].mxu0
    %v2162 = vadd.f32 0.0, %v2161
    %v2163 = vpop.f32.mrb[0].mxu0
    %2164 = vdwg.mxu0
    %v2166 = vsel %vm408, %v2009, 0
    %v2169 = vsel %vm408, %v1946, 0
    %2171 = vmatprep.subr.mxu0 0.0
    %2172 = vmatpush1.xpose.msra.mxu0 %v2169
    %2173 = vmatprep.subr.mxu0 0.0
    %2174 = vmatpush1.xpose.msra.mxu0 0.0
    %2175 = vmatprep.subr.mxu0 0.0
    %2176 = vmatpush1.xpose.msra.mxu0 0.0
    %2177 = vmatprep.subr.mxu0 0.0
    %2178 = vmatpush1.xpose.msra.mxu0 0.0
    %2179 = vmatprep.subr.mxu0 0.0
    %2180 = vmatpush1.xpose.msra.mxu0 0.0
    %2181 = vmatprep.subr.mxu0 0.0
    %2182 = vmatpush1.xpose.msra.mxu0 0.0
    %2183 = vmatprep.subr.mxu0 0.0
    %2184 = vmatpush1.xpose.msra.mxu0 0.0
    %2185 = vmatprep.subr.mxu0 0.0
    %2186 = vmatpush1.xpose.msra.mxu0 0.0
    %2187 = vmatprep.subr.mxu0 0.0
    %2188 = vmatpush1.xpose.msra.mxu0 0.0
    %2189 = vmatprep.subr.mxu0 0.0
    %2190 = vmatpush1.xpose.msra.mxu0 0.0
    %2191 = vmatprep.subr.mxu0 0.0
    %2192 = vmatpush1.xpose.msra.mxu0 0.0
    %2193 = vmatprep.subr.mxu0 0.0
    %2194 = vmatpush1.xpose.msra.mxu0 0.0
    %2195 = vmatprep.subr.mxu0 0.0
    %2196 = vmatpush1.xpose.msra.mxu0 0.0
    %2197 = vmatprep.subr.mxu0 0.0
    %2198 = vmatpush1.xpose.msra.mxu0 0.0
    %2199 = vmatprep.subr.mxu0 0.0
    %2200 = vmatpush1.xpose.msra.mxu0 0.0
    %2201 = vmatprep.subr.mxu0 0.0
    %2202 = vmatpush1.xpose.msra.mxu0 0.0
    %2203 = vmatprep.subr.mxu0 0.0
    %2204 = vmatpush1.xpose.msra.mxu0 0.0
    %2205 = vmatprep.subr.mxu0 0.0
    %2206 = vmatpush1.xpose.msra.mxu0 0.0
    %2207 = vmatprep.subr.mxu0 0.0
    %2208 = vmatpush1.xpose.msra.mxu0 0.0
    %2209 = vmatprep.subr.mxu0 0.0
    %2210 = vmatpush1.xpose.msra.mxu0 0.0
    %2211 = vmatprep.subr.mxu0 0.0
    %2212 = vmatpush1.xpose.msra.mxu0 0.0
    %2213 = vmatprep.subr.mxu0 0.0
    %2214 = vmatpush1.xpose.msra.mxu0 0.0
    %2215 = vmatprep.subr.mxu0 0.0
    %2216 = vmatpush1.xpose.msra.mxu0 0.0
    %2217 = vmatprep.subr.mxu0 0.0
    %2218 = vmatpush1.xpose.msra.mxu0 0.0
    %2219 = vmatprep.subr.mxu0 0.0
    %2220 = vmatpush1.xpose.msra.mxu0 0.0
    %2221 = vmatprep.subr.mxu0 0.0
    %2222 = vmatpush1.xpose.msra.mxu0 0.0
    %2223 = vmatprep.subr.mxu0 0.0
    %2224 = vmatpush1.xpose.msra.mxu0 0.0
    %2225 = vmatprep.subr.mxu0 0.0
    %2226 = vmatpush1.xpose.msra.mxu0 0.0
    %2227 = vmatprep.subr.mxu0 0.0
    %2228 = vmatpush1.xpose.msra.mxu0 0.0
    %2229 = vmatprep.subr.mxu0 0.0
    %2230 = vmatpush1.xpose.msra.mxu0 0.0
    %2231 = vmatprep.subr.mxu0 0.0
    %2232 = vmatpush1.xpose.msra.mxu0 0.0
    %2233 = vmatprep.subr.mxu0 0.0
    %2234 = vmatpush1.xpose.msra.mxu0 0.0
    %2235 = vmatprep.mubr.f32.mxu0 0.0
    %2236 = vmatmul.mubr.f32.gmra.mrb[0].mxu0 %v2166
    %v2237 = vpop.f32.mrb[0].mxu0
    %v2238 = vadd.f32 0.0, %v2237
    %v2239 = vpop.f32.mrb[0].mxu0
    %2240 = vdwg.mxu0
    %v2242 = vsel %vm408, %v2041, 0
    %v2245 = vsel %vm408, %v1947, 0
    %2247 = vmatprep.subr.mxu0 0.0
    %2248 = vmatpush1.xpose.msra.mxu0 %v2245
    %2249 = vmatprep.subr.mxu0 0.0
    %2250 = vmatpush1.xpose.msra.mxu0 0.0
    %2251 = vmatprep.subr.mxu0 0.0
    %2252 = vmatpush1.xpose.msra.mxu0 0.0
    %2253 = vmatprep.subr.mxu0 0.0
    %2254 = vmatpush1.xpose.msra.mxu0 0.0
    %2255 = vmatprep.subr.mxu0 0.0
    %2256 = vmatpush1.xpose.msra.mxu0 0.0
    %2257 = vmatprep.subr.mxu0 0.0
    %2258 = vmatpush1.xpose.msra.mxu0 0.0
    %2259 = vmatprep.subr.mxu0 0.0
    %2260 = vmatpush1.xpose.msra.mxu0 0.0
    %2261 = vmatprep.subr.mxu0 0.0
    %2262 = vmatpush1.xpose.msra.mxu0 0.0
    %2263 = vmatprep.subr.mxu0 0.0
    %2264 = vmatpush1.xpose.msra.mxu0 0.0
    %2265 = vmatprep.subr.mxu0 0.0
    %2266 = vmatpush1.xpose.msra.mxu0 0.0
    %2267 = vmatprep.subr.mxu0 0.0
    %2268 = vmatpush1.xpose.msra.mxu0 0.0
    %2269 = vmatprep.subr.mxu0 0.0
    %2270 = vmatpush1.xpose.msra.mxu0 0.0
    %2271 = vmatprep.subr.mxu0 0.0
    %2272 = vmatpush1.xpose.msra.mxu0 0.0
    %2273 = vmatprep.subr.mxu0 0.0
    %2274 = vmatpush1.xpose.msra.mxu0 0.0
    %2275 = vmatprep.subr.mxu0 0.0
    %2276 = vmatpush1.xpose.msra.mxu0 0.0
    %2277 = vmatprep.subr.mxu0 0.0
    %2278 = vmatpush1.xpose.msra.mxu0 0.0
    %2279 = vmatprep.subr.mxu0 0.0
    %2280 = vmatpush1.xpose.msra.mxu0 0.0
    %2281 = vmatprep.subr.mxu0 0.0
    %2282 = vmatpush1.xpose.msra.mxu0 0.0
    %2283 = vmatprep.subr.mxu0 0.0
    %2284 = vmatpush1.xpose.msra.mxu0 0.0
    %2285 = vmatprep.subr.mxu0 0.0
    %2286 = vmatpush1.xpose.msra.mxu0 0.0
    %2287 = vmatprep.subr.mxu0 0.0
    %2288 = vmatpush1.xpose.msra.mxu0 0.0
    %2289 = vmatprep.subr.mxu0 0.0
    %2290 = vmatpush1.xpose.msra.mxu0 0.0
    %2291 = vmatprep.subr.mxu0 0.0
    %2292 = vmatpush1.xpose.msra.mxu0 0.0
    %2293 = vmatprep.subr.mxu0 0.0
    %2294 = vmatpush1.xpose.msra.mxu0 0.0
    %2295 = vmatprep.subr.mxu0 0.0
    %2296 = vmatpush1.xpose.msra.mxu0 0.0
    %2297 = vmatprep.subr.mxu0 0.0
    %2298 = vmatpush1.xpose.msra.mxu0 0.0
    %2299 = vmatprep.subr.mxu0 0.0
    %2300 = vmatpush1.xpose.msra.mxu0 0.0
    %2301 = vmatprep.subr.mxu0 0.0
    %2302 = vmatpush1.xpose.msra.mxu0 0.0
    %2303 = vmatprep.subr.mxu0 0.0
    %2304 = vmatpush1.xpose.msra.mxu0 0.0
    %2305 = vmatprep.subr.mxu0 0.0
    %2306 = vmatpush1.xpose.msra.mxu0 0.0
    %2307 = vmatprep.subr.mxu0 0.0
    %2308 = vmatpush1.xpose.msra.mxu0 0.0
    %2309 = vmatprep.subr.mxu0 0.0
    %2310 = vmatpush1.xpose.msra.mxu0 0.0
    %2311 = vmatprep.mubr.f32.mxu0 0.0
    %2312 = vmatmul.mubr.f32.gmra.mrb[0].mxu0 %v2242
    %v2313 = vpop.f32.mrb[0].mxu0
    %v2314 = vadd.f32 0.0, %v2313
    %v2315 = vpop.f32.mrb[0].mxu0
    %2316 = vdwg.mxu0
    %v2318 = vsel %vm408, %v2073, 0
    %v2321 = vsel %vm408, %v1948, 0
    %2323 = vmatprep.subr.mxu0 0.0
    %2324 = vmatpush1.xpose.msra.mxu0 %v2321
    %2325 = vmatprep.subr.mxu0 0.0
    %2326 = vmatpush1.xpose.msra.mxu0 0.0
    %2327 = vmatprep.subr.mxu0 0.0
    %2328 = vmatpush1.xpose.msra.mxu0 0.0
    %2329 = vmatprep.subr.mxu0 0.0
    %2330 = vmatpush1.xpose.msra.mxu0 0.0
    %2331 = vmatprep.subr.mxu0 0.0
    %2332 = vmatpush1.xpose.msra.mxu0 0.0
    %2333 = vmatprep.subr.mxu0 0.0
    %2334 = vmatpush1.xpose.msra.mxu0 0.0
    %2335 = vmatprep.subr.mxu0 0.0
    %2336 = vmatpush1.xpose.msra.mxu0 0.0
    %2337 = vmatprep.subr.mxu0 0.0
    %2338 = vmatpush1.xpose.msra.mxu0 0.0
    %2339 = vmatprep.subr.mxu0 0.0
    %2340 = vmatpush1.xpose.msra.mxu0 0.0
    %2341 = vmatprep.subr.mxu0 0.0
    %2342 = vmatpush1.xpose.msra.mxu0 0.0
    %2343 = vmatprep.subr.mxu0 0.0
    %2344 = vmatpush1.xpose.msra.mxu0 0.0
    %2345 = vmatprep.subr.mxu0 0.0
    %2346 = vmatpush1.xpose.msra.mxu0 0.0
    %2347 = vmatprep.subr.mxu0 0.0
    %2348 = vmatpush1.xpose.msra.mxu0 0.0
    %2349 = vmatprep.subr.mxu0 0.0
    %2350 = vmatpush1.xpose.msra.mxu0 0.0
    %2351 = vmatprep.subr.mxu0 0.0
    %2352 = vmatpush1.xpose.msra.mxu0 0.0
    %2353 = vmatprep.subr.mxu0 0.0
    %2354 = vmatpush1.xpose.msra.mxu0 0.0
    %2355 = vmatprep.subr.mxu0 0.0
    %2356 = vmatpush1.xpose.msra.mxu0 0.0
    %2357 = vmatprep.subr.mxu0 0.0
    %2358 = vmatpush1.xpose.msra.mxu0 0.0
    %2359 = vmatprep.subr.mxu0 0.0
    %2360 = vmatpush1.xpose.msra.mxu0 0.0
    %2361 = vmatprep.subr.mxu0 0.0
    %2362 = vmatpush1.xpose.msra.mxu0 0.0
    %2363 = vmatprep.subr.mxu0 0.0
    %2364 = vmatpush1.xpose.msra.mxu0 0.0
    %2365 = vmatprep.subr.mxu0 0.0
    %2366 = vmatpush1.xpose.msra.mxu0 0.0
    %2367 = vmatprep.subr.mxu0 0.0
    %2368 = vmatpush1.xpose.msra.mxu0 0.0
    %2369 = vmatprep.subr.mxu0 0.0
    %2370 = vmatpush1.xpose.msra.mxu0 0.0
    %2371 = vmatprep.subr.mxu0 0.0
    %2372 = vmatpush1.xpose.msra.mxu0 0.0
    %2373 = vmatprep.subr.mxu0 0.0
    %2374 = vmatpush1.xpose.msra.mxu0 0.0
    %2375 = vmatprep.subr.mxu0 0.0
    %2376 = vmatpush1.xpose.msra.mxu0 0.0
    %2377 = vmatprep.subr.mxu0 0.0
    %2378 = vmatpush1.xpose.msra.mxu0 0.0
    %2379 = vmatprep.subr.mxu0 0.0
    %2380 = vmatpush1.xpose.msra.mxu0 0.0
    %2381 = vmatprep.subr.mxu0 0.0
    %2382 = vmatpush1.xpose.msra.mxu0 0.0
    %2383 = vmatprep.subr.mxu0 0.0
    %2384 = vmatpush1.xpose.msra.mxu0 0.0
    %2385 = vmatprep.subr.mxu0 0.0
    %2386 = vmatpush1.xpose.msra.mxu0 0.0
    %2387 = vmatprep.mubr.f32.mxu0 0.0
    %2388 = vmatmul.mubr.f32.gmra.mrb[0].mxu0 %v2318
    %v2389 = vpop.f32.mrb[0].mxu0
    %v2390 = vadd.f32 0.0, %v2389
    %v2391 = vpop.f32.mrb[0].mxu0
    %2392 = vdwg.mxu0
    %2393 = vxpose.xlu0.b32.start [1/16] %v2162, 128
    %2394 = vxpose.xlu0.b32.cont [2/16] 0.0, 128
    %2395 = vxpose.xlu0.b32.cont [3/16] 0.0, 128
    %2396 = vxpose.xlu0.b32.cont [4/16] 0.0, 128
    %2397 = vxpose.xlu0.b32.cont [5/16] 0.0, 128
    %2398 = vxpose.xlu0.b32.cont [6/16] 0.0, 128
    %2399 = vxpose.xlu0.b32.cont [7/16] 0.0, 128
    %2400 = vxpose.xlu0.b32.cont [8/16] 0.0, 128
    %2401 = vxpose.xlu0.b32.cont [9/16] 0.0, 128
    %2402 = vxpose.xlu0.b32.cont [10/16] 0.0, 128
    %2403 = vxpose.xlu0.b32.cont [11/16] 0.0, 128
    %2404 = vxpose.xlu0.b32.cont [12/16] 0.0, 128
    %2405 = vxpose.xlu0.b32.cont [13/16] 0.0, 128
    %2406 = vxpose.xlu0.b32.cont [14/16] 0.0, 128
    %2407 = vxpose.xlu0.b32.cont [15/16] 0.0, 128
    %2408 = vxpose.xlu0.b32.end [16/16] 0.0, 128
    %v2409 = vpop.trf.xlu0
    %v2410 = vpop.trf.xlu0
    %v2411 = vpop.trf.xlu0
    %v2412 = vpop.trf.xlu0
    %v2413 = vpop.trf.xlu0
    %v2414 = vpop.trf.xlu0
    %v2415 = vpop.trf.xlu0
    %v2416 = vpop.trf.xlu0
    %v2417 = vpop.trf.xlu0
    %v2418 = vpop.trf.xlu0
    %v2419 = vpop.trf.xlu0
    %v2420 = vpop.trf.xlu0
    %v2421 = vpop.trf.xlu0
    %v2422 = vpop.trf.xlu0
    %v2423 = vpop.trf.xlu0
    %v2424 = vpop.trf.xlu0
    %2425 = vxpose.xlu0.b32.start [1/16] %v2238, 128
    %2426 = vxpose.xlu0.b32.cont [2/16] 0.0, 128
    %2427 = vxpose.xlu0.b32.cont [3/16] 0.0, 128
    %2428 = vxpose.xlu0.b32.cont [4/16] 0.0, 128
    %2429 = vxpose.xlu0.b32.cont [5/16] 0.0, 128
    %2430 = vxpose.xlu0.b32.cont [6/16] 0.0, 128
    %2431 = vxpose.xlu0.b32.cont [7/16] 0.0, 128
    %2432 = vxpose.xlu0.b32.cont [8/16] 0.0, 128
    %2433 = vxpose.xlu0.b32.cont [9/16] 0.0, 128
    %2434 = vxpose.xlu0.b32.cont [10/16] 0.0, 128
    %2435 = vxpose.xlu0.b32.cont [11/16] 0.0, 128
    %2436 = vxpose.xlu0.b32.cont [12/16] 0.0, 128
    %2437 = vxpose.xlu0.b32.cont [13/16] 0.0, 128
    %2438 = vxpose.xlu0.b32.cont [14/16] 0.0, 128
    %2439 = vxpose.xlu0.b32.cont [15/16] 0.0, 128
    %2440 = vxpose.xlu0.b32.end [16/16] 0.0, 128
    %v2441 = vpop.trf.xlu0
    %v2442 = vpop.trf.xlu0
    %v2443 = vpop.trf.xlu0
    %v2444 = vpop.trf.xlu0
    %v2445 = vpop.trf.xlu0
    %v2446 = vpop.trf.xlu0
    %v2447 = vpop.trf.xlu0
    %v2448 = vpop.trf.xlu0
    %v2449 = vpop.trf.xlu0
    %v2450 = vpop.trf.xlu0
    %v2451 = vpop.trf.xlu0
    %v2452 = vpop.trf.xlu0
    %v2453 = vpop.trf.xlu0
    %v2454 = vpop.trf.xlu0
    %v2455 = vpop.trf.xlu0
    %v2456 = vpop.trf.xlu0
    %2457 = vxpose.xlu0.b32.start [1/16] %v2314, 128
    %2458 = vxpose.xlu0.b32.cont [2/16] 0.0, 128
    %2459 = vxpose.xlu0.b32.cont [3/16] 0.0, 128
    %2460 = vxpose.xlu0.b32.cont [4/16] 0.0, 128
    %2461 = vxpose.xlu0.b32.cont [5/16] 0.0, 128
    %2462 = vxpose.xlu0.b32.cont [6/16] 0.0, 128
    %2463 = vxpose.xlu0.b32.cont [7/16] 0.0, 128
    %2464 = vxpose.xlu0.b32.cont [8/16] 0.0, 128
    %2465 = vxpose.xlu0.b32.cont [9/16] 0.0, 128
    %2466 = vxpose.xlu0.b32.cont [10/16] 0.0, 128
    %2467 = vxpose.xlu0.b32.cont [11/16] 0.0, 128
    %2468 = vxpose.xlu0.b32.cont [12/16] 0.0, 128
    %2469 = vxpose.xlu0.b32.cont [13/16] 0.0, 128
    %2470 = vxpose.xlu0.b32.cont [14/16] 0.0, 128
    %2471 = vxpose.xlu0.b32.cont [15/16] 0.0, 128
    %2472 = vxpose.xlu0.b32.end [16/16] 0.0, 128
    %v2473 = vpop.trf.xlu0
    %v2474 = vpop.trf.xlu0
    %v2475 = vpop.trf.xlu0
    %v2476 = vpop.trf.xlu0
    %v2477 = vpop.trf.xlu0
    %v2478 = vpop.trf.xlu0
    %v2479 = vpop.trf.xlu0
    %v2480 = vpop.trf.xlu0
    %v2481 = vpop.trf.xlu0
    %v2482 = vpop.trf.xlu0
    %v2483 = vpop.trf.xlu0
    %v2484 = vpop.trf.xlu0
    %v2485 = vpop.trf.xlu0
    %v2486 = vpop.trf.xlu0
    %v2487 = vpop.trf.xlu0
    %v2488 = vpop.trf.xlu0
    %2489 = vxpose.xlu0.b32.start [1/16] %v2390, 128
    %2490 = vxpose.xlu0.b32.cont [2/16] 0.0, 128
    %2491 = vxpose.xlu0.b32.cont [3/16] 0.0, 128
    %2492 = vxpose.xlu0.b32.cont [4/16] 0.0, 128
    %2493 = vxpose.xlu0.b32.cont [5/16] 0.0, 128
    %2494 = vxpose.xlu0.b32.cont [6/16] 0.0, 128
    %2495 = vxpose.xlu0.b32.cont [7/16] 0.0, 128
    %2496 = vxpose.xlu0.b32.cont [8/16] 0.0, 128
    %2497 = vxpose.xlu0.b32.cont [9/16] 0.0, 128
    %2498 = vxpose.xlu0.b32.cont [10/16] 0.0, 128
    %2499 = vxpose.xlu0.b32.cont [11/16] 0.0, 128
    %2500 = vxpose.xlu0.b32.cont [12/16] 0.0, 128
    %2501 = vxpose.xlu0.b32.cont [13/16] 0.0, 128
    %2502 = vxpose.xlu0.b32.cont [14/16] 0.0, 128
    %2503 = vxpose.xlu0.b32.cont [15/16] 0.0, 128
    %2504 = vxpose.xlu0.b32.end [16/16] 0.0, 128
    %v2505 = vpop.trf.xlu0
    %v2506 = vpop.trf.xlu0
    %v2507 = vpop.trf.xlu0
    %v2508 = vpop.trf.xlu0
    %v2509 = vpop.trf.xlu0
    %v2510 = vpop.trf.xlu0
    %v2511 = vpop.trf.xlu0
    %v2512 = vpop.trf.xlu0
    %v2513 = vpop.trf.xlu0
    %v2514 = vpop.trf.xlu0
    %v2515 = vpop.trf.xlu0
    %v2516 = vpop.trf.xlu0
    %v2517 = vpop.trf.xlu0
    %v2518 = vpop.trf.xlu0
    %v2519 = vpop.trf.xlu0
    %v2520 = vpop.trf.xlu0
    %v2521 = vcombine.low %v2409, %v2473
    %v2522 = vcombine.high %v2409, %v2473
    %v2524 = vunpack.c.l.s4 1983009808
    %v2525 = vunpack.c.0.s8 %v2524
    %v2526 = vlaneseq
    %v2527 = vshrl.u32 %v2526, 7
    %v2528 = vsub.s32 %v2525, %v2527
    %v2529 = vrot.slane %v2521, %v2528
    %v2531 = vunpack.c.l.s4 1983009808
    %v2532 = vunpack.c.0.s8 %v2531
    %v2533 = vlaneseq
    %v2534 = vshrl.u32 %v2533, 7
    %v2535 = vsub.s32 %v2532, %v2534
    %v2536 = vrot.slane %v2522, %v2535
    %v2537 = vcombine.low %v2441, %v2505
    %v2538 = vcombine.high %v2441, %v2505
    %v2540 = vunpack.c.l.s4 1983009808
    %v2541 = vunpack.c.0.s8 %v2540
    %v2542 = vlaneseq
    %v2543 = vshrl.u32 %v2542, 7
    %v2544 = vsub.s32 %v2541, %v2543
    %v2545 = vrot.slane %v2537, %v2544
    %v2547 = vunpack.c.l.s4 1983009808
    %v2548 = vunpack.c.0.s8 %v2547
    %v2549 = vlaneseq
    %v2550 = vshrl.u32 %v2549, 7
    %v2551 = vsub.s32 %v2548, %v2550
    %v2552 = vrot.slane %v2538, %v2551
    %v2553 = vcombine.low %v2529, %v2545
    %v2554 = vcombine.high %v2529, %v2545
    %v2556 = vunpack.c.l.s4 1934713408
    %v2557 = vunpack.c.0.s8 %v2556
    %v2558 = vlaneseq
    %v2559 = vshrl.u32 %v2558, 7
    %v2560 = vsub.s32 %v2557, %v2559
    %v2561 = vrot.slane %v2553, %v2560
    %v2563 = vunpack.c.l.s4 1934713408
    %v2564 = vunpack.c.0.s8 %v2563
    %v2565 = vlaneseq
    %v2566 = vshrl.u32 %v2565, 7
    %v2567 = vsub.s32 %v2564, %v2566
    %v2568 = vrot.slane %v2554, %v2567
    %v2569 = vcombine.low %v2536, %v2552
    %v2570 = vcombine.high %v2536, %v2552
    %v2572 = vunpack.c.l.s4 1934713408
    %v2573 = vunpack.c.0.s8 %v2572
    %v2574 = vlaneseq
    %v2575 = vshrl.u32 %v2574, 7
    %v2576 = vsub.s32 %v2573, %v2575
    %v2577 = vrot.slane %v2569, %v2576
    %v2579 = vunpack.c.l.s4 1934713408
    %v2580 = vunpack.c.0.s8 %v2579
    %v2581 = vlaneseq
    %v2582 = vshrl.u32 %v2581, 7
    %v2583 = vsub.s32 %v2580, %v2582
    %v2584 = vrot.slane %v2570, %v2583
    %v2585 = vcombine.high %v2561, 0.0
    %v2586 = vcombine.high %v2568, 0.0
    %v2587 = vcombine.high %v2577, 0.0
    %v2588 = vcombine.high %v2584, 0.0
    %v2589 = vcombine.low %v2561, %v2568
    %v2591 = vunpack.c.l.s4 1983009808
    %v2592 = vunpack.c.0.s8 %v2591
    %v2593 = vlaneseq
    %v2594 = vshrl.u32 %v2593, 7
    %v2595 = vsub.s32 %v2592, %v2594
    %v2596 = vrot.slane %v2589, %v2595
    %v2597 = vcombine.low %v2585, %v2586
    %v2599 = vunpack.c.l.s4 1983009808
    %v2600 = vunpack.c.0.s8 %v2599
    %v2601 = vlaneseq
    %v2602 = vshrl.u32 %v2601, 7
    %v2603 = vsub.s32 %v2600, %v2602
    %v2604 = vrot.slane %v2597, %v2603
    %v2605 = vcombine.low %v2577, %v2584
    %v2607 = vunpack.c.l.s4 1983009808
    %v2608 = vunpack.c.0.s8 %v2607
    %v2609 = vlaneseq
    %v2610 = vshrl.u32 %v2609, 7
    %v2611 = vsub.s32 %v2608, %v2610
    %v2612 = vrot.slane %v2605, %v2611
    %v2613 = vcombine.low %v2587, %v2588
    %v2615 = vunpack.c.l.s4 1983009808
    %v2616 = vunpack.c.0.s8 %v2615
    %v2617 = vlaneseq
    %v2618 = vshrl.u32 %v2617, 7
    %v2619 = vsub.s32 %v2616, %v2618
    %v2620 = vrot.slane %v2613, %v2619
    %v2621 = vcombine.low %v2596, %v2604
    %v2622 = vcombine.high %v2596, %v2604
    %v2624 = vunpack.c.l.s4 1934713408
    %v2625 = vunpack.c.0.s8 %v2624
    %v2626 = vlaneseq
    %v2627 = vshrl.u32 %v2626, 7
    %v2628 = vsub.s32 %v2625, %v2627
    %v2629 = vrot.slane %v2621, %v2628
    %v2631 = vunpack.c.l.s4 1934713408
    %v2632 = vunpack.c.0.s8 %v2631
    %v2633 = vlaneseq
    %v2634 = vshrl.u32 %v2633, 7
    %v2635 = vsub.s32 %v2632, %v2634
    %v2636 = vrot.slane %v2622, %v2635
    %v2637 = vcombine.low %v2612, %v2620
    %v2638 = vcombine.high %v2612, %v2620
    %v2640 = vunpack.c.l.s4 1934713408
    %v2641 = vunpack.c.0.s8 %v2640
    %v2642 = vlaneseq
    %v2643 = vshrl.u32 %v2642, 7
    %v2644 = vsub.s32 %v2641, %v2643
    %v2645 = vrot.slane %v2637, %v2644
    %v2647 = vunpack.c.l.s4 1934713408
    %v2648 = vunpack.c.0.s8 %v2647
    %v2649 = vlaneseq
    %v2650 = vshrl.u32 %v2649, 7
    %v2651 = vsub.s32 %v2648, %v2650
    %v2652 = vrot.slane %v2638, %v2651
    %v2653 = vcombine.low %v2629, %v2645
    %v2654 = vcombine.high %v2629, %v2645
    %v2655 = vcombine.low %v2636, %v2652
    %v2656 = vcombine.high %v2636, %v2652
    %2658 = vrot.lane.b32.xlu0 %v2654, 8
    %v2659 = vpop.permute.xlu0 %2658
    %2662 = vrot.lane.b32.xlu0 %v2655, 16
    %v2663 = vpop.permute.xlu0 %2662
    %2666 = vrot.lane.b32.xlu0 %v2656, 24
    %v2667 = vpop.permute.xlu0 %2666
    %v2669 = vsel %vm408, %v2653, %v2659
    %v2670 = vsel %vm1462, %v2669, %v2663
    %v2671 = vsel %vm1464, %v2670, %v2667
    %v2672 = vlaneseq
    %v2673 = vshrl.u32 %v2672, 7
    %v2674 = vsub.s32 1, %v2673
    %v2675 = vrot.slane %v140, %v2674
    %2680 = vrot.lane.b32.xlu0 %v147, 32
    %v2681 = vpop.permute.xlu0 %2680
    %2682 = vrot.lane.b32.xlu0 %v149, 32
    %v2683 = vpop.permute.xlu0 %2682
    %2684 = vrot.lane.b32.xlu0 %v151, 32
    %v2685 = vpop.permute.xlu0 %2684
    %2686 = vrot.lane.b32.xlu0 %v153, 32
    %v2687 = vpop.permute.xlu0 %2686
    %v2693 = vsel %vm175, %v1465, 0
    %v2696 = vsel %vm175, %v2671, 0
    %2698 = vmatprep.subr.mxu0 0.0
    %2699 = vmatpush1.msra.mxu0 %v2681
    %2700 = vmatprep.subr.mxu0 0.0
    %2701 = vmatpush1.msra.mxu0 %v2683
    %2702 = vmatprep.subr.mxu0 0.0
    %2703 = vmatpush1.msra.mxu0 %v2685
    %2704 = vmatprep.subr.mxu0 0.0
    %2705 = vmatpush1.msra.mxu0 %v2687
    %2706 = vmatprep.subr.mxu0 0.0
    %2707 = vmatpush1.msra.mxu0 0.0
    %2708 = vmatprep.subr.mxu0 0.0
    %2709 = vmatpush1.msra.mxu0 0.0
    %2710 = vmatprep.subr.mxu0 0.0
    %2711 = vmatpush1.msra.mxu0 0.0
    %2712 = vmatprep.subr.mxu0 0.0
    %2713 = vmatpush1.msra.mxu0 0.0
    %2714 = vmatprep.subr.mxu0 0.0
    %2715 = vmatpush1.msra.mxu0 0.0
    %2716 = vmatprep.subr.mxu0 0.0
    %2717 = vmatpush1.msra.mxu0 0.0
    %2718 = vmatprep.subr.mxu0 0.0
    %2719 = vmatpush1.msra.mxu0 0.0
    %2720 = vmatprep.subr.mxu0 0.0
    %2721 = vmatpush1.msra.mxu0 0.0
    %2722 = vmatprep.subr.mxu0 0.0
    %2723 = vmatpush1.msra.mxu0 0.0
    %2724 = vmatprep.subr.mxu0 0.0
    %2725 = vmatpush1.msra.mxu0 0.0
    %2726 = vmatprep.subr.mxu0 0.0
    %2727 = vmatpush1.msra.mxu0 0.0
    %2728 = vmatprep.subr.mxu0 0.0
    %2729 = vmatpush1.msra.mxu0 0.0
    %2730 = vmatprep.subr.mxu0 0.0
    %2731 = vmatpush1.msra.mxu0 0.0
    %2732 = vmatprep.subr.mxu0 0.0
    %2733 = vmatpush1.msra.mxu0 0.0
    %2734 = vmatprep.subr.mxu0 0.0
    %2735 = vmatpush1.msra.mxu0 0.0
    %2736 = vmatprep.subr.mxu0 0.0
    %2737 = vmatpush1.msra.mxu0 0.0
    %2738 = vmatprep.subr.mxu0 0.0
    %2739 = vmatpush1.msra.mxu0 0.0
    %2740 = vmatprep.subr.mxu0 0.0
    %2741 = vmatpush1.msra.mxu0 0.0
    %2742 = vmatprep.subr.mxu0 0.0
    %2743 = vmatpush1.msra.mxu0 0.0
    %2744 = vmatprep.subr.mxu0 0.0
    %2745 = vmatpush1.msra.mxu0 0.0
    %2746 = vmatprep.subr.mxu0 0.0
    %2747 = vmatpush1.msra.mxu0 0.0
    %2748 = vmatprep.subr.mxu0 0.0
    %2749 = vmatpush1.msra.mxu0 0.0
    %2750 = vmatprep.subr.mxu0 0.0
    %2751 = vmatpush1.msra.mxu0 0.0
    %2752 = vmatprep.subr.mxu0 0.0
    %2753 = vmatpush1.msra.mxu0 0.0
    %2754 = vmatprep.subr.mxu0 0.0
    %2755 = vmatpush1.msra.mxu0 0.0
    %2756 = vmatprep.subr.mxu0 0.0
    %2757 = vmatpush1.msra.mxu0 0.0
    %2758 = vmatprep.subr.mxu0 0.0
    %2759 = vmatpush1.msra.mxu0 0.0
    %2760 = vmatprep.subr.mxu0 0.0
    %2761 = vmatpush1.msra.mxu0 0.0
    %2762 = vmatprep.mubr.f32.mxu0 0.0
    %2763 = vmatmul.mubr.f32.gmra.mrb[0].mxu0 %v2693
    %v2764 = vpop.f32.mrb[0].mxu0
    %v2765 = vadd.f32 %v2675, %v2764
    %v2766 = vpop.f32.mrb[0].mxu0
    %2767 = vmatprep.mubr.f32.mxu0 0.0
    %2768 = vmatmul.mubr.f32.gmra.mrb[0].mxu0 %v2696
    %v2769 = vpop.f32.mrb[0].mxu0
    %v2770 = vadd.f32 %v2675, %v2769
    %v2771 = vpop.f32.mrb[0].mxu0
    %2772 = vdwg.mxu0
    %v2773 = vadd.f32 %v131, %v2765
    %v2774 = vadd.f32 %v136, %v2770
    %v2775 = vsel %vm175, %v2773, 0.0
    %2776 = vadd.xlane.f32.xlu0 %v2775
    %v2777 = vpop.xlane.xlu0 %2776
    %v2778 = vsel %vm175, %v2774, 0.0
    %2779 = vadd.xlane.f32.xlu0 %v2778
    %v2780 = vpop.xlane.xlu0 %2779
    %v2781 = vrcp.pop 32.0
    %v2782 = vmul.f32 %v2777, %v2781
    %v2783 = vmul.f32 %v2780, %v2781
    %v2784 = vsub.f32 %v2773, %v2782
    %v2785 = vsub.f32 %v2774, %v2783
    %v2786 = vmul.f32 %v2784, %v2784
    %v2787 = vmul.f32 %v2785, %v2785
    %v2788 = vsel %vm175, %v2786, 0.0
    %2789 = vadd.xlane.f32.xlu0 %v2788
    %v2790 = vpop.xlane.xlu0 %2789
    %v2791 = vsel %vm175, %v2787, 0.0
    %2792 = vadd.xlane.f32.xlu0 %v2791
    %v2793 = vpop.xlane.xlu0 %2792
    %v2794 = vmul.f32 %v2790, %v2781
    %v2795 = vmul.f32 %v2793, %v2781
    %v2796 = vadd.f32 %v2794, 1e-05
    %v2797 = vadd.f32 %v2795, 1e-05
    %v2798 = vrsqrt.pop %v2796
    %v2799 = vrsqrt.pop %v2797
    %v2800 = vmul.f32 %v2784, %v2798
    %v2801 = vmul.f32 %v2785, %v2799
    %v2802 = vlaneseq
    %v2803 = vshrl.u32 %v2802, 7
    %v2804 = vsub.s32 4, %v2803
    %v2805 = vrot.slane %v140, %v2804
    %v2806 = vmul.f32 %v2800, %v2805
    %v2807 = vmul.f32 %v2801, %v2805
    %v2808 = vlaneseq
    %v2809 = vshrl.u32 %v2808, 7
    %v2810 = vsub.s32 5, %v2809
    %v2811 = vrot.slane %v140, %v2810
    %v2812 = vadd.f32 %v2806, %v2811
    %v2813 = vadd.f32 %v2807, %v2811
    %v2814 = vlaneseq
    %v2815 = vshrl.u32 %v2814, 7
    %v2816 = vsub.s32 2, %v2815
    %v2817 = vrot.slane %v140, %v2816
    %v2819 = vsel %vm175, %v2812, 0
    %v2822 = vsel %vm175, %v2813, 0
    %2824 = vmatprep.subr.mxu0 0.0
    %2825 = vmatpush1.msra.mxu0 %v148
    %2826 = vmatprep.subr.mxu0 0.0
    %2827 = vmatpush1.msra.mxu0 %v150
    %2828 = vmatprep.subr.mxu0 0.0
    %2829 = vmatpush1.msra.mxu0 %v152
    %2830 = vmatprep.subr.mxu0 0.0
    %2831 = vmatpush1.msra.mxu0 %v154
    %2832 = vmatprep.subr.mxu0 0.0
    %2833 = vmatpush1.msra.mxu0 0.0
    %2834 = vmatprep.subr.mxu0 0.0
    %2835 = vmatpush1.msra.mxu0 0.0
    %2836 = vmatprep.subr.mxu0 0.0
    %2837 = vmatpush1.msra.mxu0 0.0
    %2838 = vmatprep.subr.mxu0 0.0
    %2839 = vmatpush1.msra.mxu0 0.0
    %2840 = vmatprep.subr.mxu0 0.0
    %2841 = vmatpush1.msra.mxu0 0.0
    %2842 = vmatprep.subr.mxu0 0.0
    %2843 = vmatpush1.msra.mxu0 0.0
    %2844 = vmatprep.subr.mxu0 0.0
    %2845 = vmatpush1.msra.mxu0 0.0
    %2846 = vmatprep.subr.mxu0 0.0
    %2847 = vmatpush1.msra.mxu0 0.0
    %2848 = vmatprep.subr.mxu0 0.0
    %2849 = vmatpush1.msra.mxu0 0.0
    %2850 = vmatprep.subr.mxu0 0.0
    %2851 = vmatpush1.msra.mxu0 0.0
    %2852 = vmatprep.subr.mxu0 0.0
    %2853 = vmatpush1.msra.mxu0 0.0
    %2854 = vmatprep.subr.mxu0 0.0
    %2855 = vmatpush1.msra.mxu0 0.0
    %2856 = vmatprep.subr.mxu0 0.0
    %2857 = vmatpush1.msra.mxu0 0.0
    %2858 = vmatprep.subr.mxu0 0.0
    %2859 = vmatpush1.msra.mxu0 0.0
    %2860 = vmatprep.subr.mxu0 0.0
    %2861 = vmatpush1.msra.mxu0 0.0
    %2862 = vmatprep.subr.mxu0 0.0
    %2863 = vmatpush1.msra.mxu0 0.0
    %2864 = vmatprep.subr.mxu0 0.0
    %2865 = vmatpush1.msra.mxu0 0.0
    %2866 = vmatprep.subr.mxu0 0.0
    %2867 = vmatpush1.msra.mxu0 0.0
    %2868 = vmatprep.subr.mxu0 0.0
    %2869 = vmatpush1.msra.mxu0 0.0
    %2870 = vmatprep.subr.mxu0 0.0
    %2871 = vmatpush1.msra.mxu0 0.0
    %2872 = vmatprep.subr.mxu0 0.0
    %2873 = vmatpush1.msra.mxu0 0.0
    %2874 = vmatprep.subr.mxu0 0.0
    %2875 = vmatpush1.msra.mxu0 0.0
    %2876 = vmatprep.subr.mxu0 0.0
    %2877 = vmatpush1.msra.mxu0 0.0
    %2878 = vmatprep.subr.mxu0 0.0
    %2879 = vmatpush1.msra.mxu0 0.0
    %2880 = vmatprep.subr.mxu0 0.0
    %2881 = vmatpush1.msra.mxu0 0.0
    %2882 = vmatprep.subr.mxu0 0.0
    %2883 = vmatpush1.msra.mxu0 0.0
    %2884 = vmatprep.subr.mxu0 0.0
    %2885 = vmatpush1.msra.mxu0 0.0
    %2886 = vmatprep.subr.mxu0 0.0
    %2887 = vmatpush1.msra.mxu0 0.0
    %2888 = vmatprep.mubr.f32.mxu0 0.0
    %2889 = vmatmul.mubr.f32.gmra.mrb[0].mxu0 %v2819
    %v2890 = vpop.f32.mrb[0].mxu0
    %v2891 = vadd.f32 %v2817, %v2890
    %v2892 = vpop.f32.mrb[0].mxu0
    %2893 = vmatprep.mubr.f32.mxu0 0.0
    %2894 = vmatmul.mubr.f32.gmra.mrb[0].mxu0 %v2822
    %v2895 = vpop.f32.mrb[0].mxu0
    %v2896 = vadd.f32 %v2817, %v2895
    %v2897 = vpop.f32.mrb[0].mxu0
    %2898 = vdwg.mxu0
    %v2899 = vmax.f32 %v2891, 0.0
    %v2900 = vmax.f32 %v2896, 0.0
    %v2901 = vlaneseq
    %v2902 = vshrl.u32 %v2901, 7
    %v2903 = vsub.s32 3, %v2902
    %v2904 = vrot.slane %v140, %v2903
    %2905 = vmatprep.subr.mxu0 0.0
    %2906 = vmatpush1.msra.mxu0 %v155
    %2907 = vmatprep.subr.mxu0 0.0
    %2908 = vmatpush1.msra.mxu0 %v156
    %2909 = vmatprep.subr.mxu0 0.0
    %2910 = vmatpush1.msra.mxu0 %v157
    %2911 = vmatprep.subr.mxu0 0.0
    %2912 = vmatpush1.msra.mxu0 %v158
    %2913 = vmatprep.subr.mxu0 0.0
    %2914 = vmatpush1.msra.mxu0 %v159
    %2915 = vmatprep.subr.mxu0 0.0
    %2916 = vmatpush1.msra.mxu0 %v160
    %2917 = vmatprep.subr.mxu0 0.0
    %2918 = vmatpush1.msra.mxu0 %v161
    %2919 = vmatprep.subr.mxu0 0.0
    %2920 = vmatpush1.msra.mxu0 %v162
    %2921 = vmatprep.subr.mxu0 0.0
    %2922 = vmatpush1.msra.mxu0 %v163
    %2923 = vmatprep.subr.mxu0 0.0
    %2924 = vmatpush1.msra.mxu0 %v164
    %2925 = vmatprep.subr.mxu0 0.0
    %2926 = vmatpush1.msra.mxu0 %v165
    %2927 = vmatprep.subr.mxu0 0.0
    %2928 = vmatpush1.msra.mxu0 %v166
    %2929 = vmatprep.subr.mxu0 0.0
    %2930 = vmatpush1.msra.mxu0 %v167
    %2931 = vmatprep.subr.mxu0 0.0
    %2932 = vmatpush1.msra.mxu0 %v168
    %2933 = vmatprep.subr.mxu0 0.0
    %2934 = vmatpush1.msra.mxu0 %v169
    %2935 = vmatprep.subr.mxu0 0.0
    %2936 = vmatpush1.msra.mxu0 %v170
    %2937 = vmatprep.subr.mxu0 0.0
    %2938 = vmatpush1.msra.mxu0 0.0
    %2939 = vmatprep.subr.mxu0 0.0
    %2940 = vmatpush1.msra.mxu0 0.0
    %2941 = vmatprep.subr.mxu0 0.0
    %2942 = vmatpush1.msra.mxu0 0.0
    %2943 = vmatprep.subr.mxu0 0.0
    %2944 = vmatpush1.msra.mxu0 0.0
    %2945 = vmatprep.subr.mxu0 0.0
    %2946 = vmatpush1.msra.mxu0 0.0
    %2947 = vmatprep.subr.mxu0 0.0
    %2948 = vmatpush1.msra.mxu0 0.0
    %2949 = vmatprep.subr.mxu0 0.0
    %2950 = vmatpush1.msra.mxu0 0.0
    %2951 = vmatprep.subr.mxu0 0.0
    %2952 = vmatpush1.msra.mxu0 0.0
    %2953 = vmatprep.subr.mxu0 0.0
    %2954 = vmatpush1.msra.mxu0 0.0
    %2955 = vmatprep.subr.mxu0 0.0
    %2956 = vmatpush1.msra.mxu0 0.0
    %2957 = vmatprep.subr.mxu0 0.0
    %2958 = vmatpush1.msra.mxu0 0.0
    %2959 = vmatprep.subr.mxu0 0.0
    %2960 = vmatpush1.msra.mxu0 0.0
    %2961 = vmatprep.subr.mxu0 0.0
    %2962 = vmatpush1.msra.mxu0 0.0
    %2963 = vmatprep.subr.mxu0 0.0
    %2964 = vmatpush1.msra.mxu0 0.0
    %2965 = vmatprep.subr.mxu0 0.0
    %2966 = vmatpush1.msra.mxu0 0.0
    %2967 = vmatprep.subr.mxu0 0.0
    %2968 = vmatpush1.msra.mxu0 0.0
    %2969 = vmatprep.mubr.f32.mxu0 0.0
    %2970 = vmatmul.mubr.f32.gmra.mrb[0].mxu0 %v2899
    %v2971 = vpop.f32.mrb[0].mxu0
    %v2972 = vadd.f32 %v2904, %v2971
    %v2973 = vpop.f32.mrb[0].mxu0
    %2974 = vmatprep.mubr.f32.mxu0 0.0
    %2975 = vmatmul.mubr.f32.gmra.mrb[0].mxu0 %v2900
    %v2976 = vpop.f32.mrb[0].mxu0
    %v2977 = vadd.f32 %v2904, %v2976
    %v2978 = vpop.f32.mrb[0].mxu0
    %2979 = vdwg.mxu0
    %v2980 = vadd.f32 %v2812, %v2972
    %v2981 = vadd.f32 %v2813, %v2977
    %v2982 = vsel %vm175, %v2980, 0.0
    %2983 = vadd.xlane.f32.xlu0 %v2982
    %v2984 = vpop.xlane.xlu0 %2983
    %v2985 = vsel %vm175, %v2981, 0.0
    %2986 = vadd.xlane.f32.xlu0 %v2985
    %v2987 = vpop.xlane.xlu0 %2986
    %v2988 = vmul.f32 %v2984, %v2781
    %v2989 = vmul.f32 %v2987, %v2781
    %v2990 = vsub.f32 %v2980, %v2988
    %v2991 = vsub.f32 %v2981, %v2989
    %v2992 = vmul.f32 %v2990, %v2990
    %v2993 = vmul.f32 %v2991, %v2991
    %v2994 = vsel %vm175, %v2992, 0.0
    %2995 = vadd.xlane.f32.xlu0 %v2994
    %v2996 = vpop.xlane.xlu0 %2995
    %v2997 = vsel %vm175, %v2993, 0.0
    %2998 = vadd.xlane.f32.xlu0 %v2997
    %v2999 = vpop.xlane.xlu0 %2998
    %v3000 = vmul.f32 %v2996, %v2781
    %v3001 = vmul.f32 %v2999, %v2781
    %v3002 = vadd.f32 %v3000, 1e-05
    %v3003 = vadd.f32 %v3001, 1e-05
    %v3004 = vrsqrt.pop %v3002
    %v3005 = vrsqrt.pop %v3003
    %v3006 = vmul.f32 %v2990, %v3004
    %v3007 = vmul.f32 %v2991, %v3005
    %v3008 = vlaneseq
    %v3009 = vshrl.u32 %v3008, 7
    %v3010 = vsub.s32 6, %v3009
    %v3011 = vrot.slane %v140, %v3010
    %v3012 = vmul.f32 %v3006, %v3011
    %v3013 = vmul.f32 %v3007, %v3011
    %v3014 = vlaneseq
    %v3015 = vshrl.u32 %v3014, 7
    %v3016 = vsub.s32 7, %v3015
    %v3017 = vrot.slane %v140, %v3016
    %v3018 = vadd.f32 %v3012, %v3017
    %v3019 = vadd.f32 %v3013, %v3017
    %s3020 = scalar_lea.vmem %s3, 64
    %v3021 = vld [vmem:[%s3020] sm:$0xff]
    %v3022 = vld [vmem:[%s3020 + $0x8] sm:$0xff]
    %v3023 = vld [vmem:[%s3020 + $0x10] sm:$0xff]
    %v3024 = vld [vmem:[%s3020 + $0x18] sm:$0xff]
    %v3025 = vld [vmem:[%s3020 + $0x20] sm:$0xff]
    %v3026 = vld [vmem:[%s3020 + $0x28] sm:$0xff]
    %v3027 = vld [vmem:[%s3020 + $0x30] sm:$0xff]
    %v3028 = vld [vmem:[%s3020 + $0x38] sm:$0xff]
    %s3029 = scalar_lea.vmem %s4, 128
    %v3030 = vld [vmem:[%s3029] sm:$0xff]
    %v3031 = vld [vmem:[%s3029 + $0x8] sm:$0xff]
    %v3032 = vld [vmem:[%s3029 + $0x10] sm:$0xff]
    %v3033 = vld [vmem:[%s3029 + $0x18] sm:$0xff]
    %v3034 = vld [vmem:[%s3029 + $0x20] sm:$0xff]
    %v3035 = vld [vmem:[%s3029 + $0x28] sm:$0xff]
    %v3036 = vld [vmem:[%s3029 + $0x30] sm:$0xff]
    %v3037 = vld [vmem:[%s3029 + $0x38] sm:$0xff]
    %v3038 = vld [vmem:[%s3029 + $0x40] sm:$0xff]
    %v3039 = vld [vmem:[%s3029 + $0x48] sm:$0xff]
    %v3040 = vld [vmem:[%s3029 + $0x50] sm:$0xff]
    %v3041 = vld [vmem:[%s3029 + $0x58] sm:$0xff]
    %v3042 = vld [vmem:[%s3029 + $0x60] sm:$0xff]
    %v3043 = vld [vmem:[%s3029 + $0x68] sm:$0xff]
    %v3044 = vld [vmem:[%s3029 + $0x70] sm:$0xff]
    %v3045 = vld [vmem:[%s3029 + $0x78] sm:$0xff]
    %v3046 = vlaneseq
    %v3047 = vshrl.u32 %v3046, 7
    %v3048 = vsub.s32 0, %v3047
    %v3049 = vrot.slane %v141, %v3048
    %v3051 = vsel %vm175, %v3018, 0
    %v3054 = vsel %vm175, %v3019, 0
    %3056 = vmatprep.subr.mxu0 0.0
    %3057 = vmatpush1.msra.mxu0 %v3021
    %3058 = vmatprep.subr.mxu0 0.0
    %3059 = vmatpush1.msra.mxu0 %v3023
    %3060 = vmatprep.subr.mxu0 0.0
    %3061 = vmatpush1.msra.mxu0 %v3025
    %3062 = vmatprep.subr.mxu0 0.0
    %3063 = vmatpush1.msra.mxu0 %v3027
    %3064 = vmatprep.subr.mxu0 0.0
    %3065 = vmatpush1.msra.mxu0 0.0
    %3066 = vmatprep.subr.mxu0 0.0
    %3067 = vmatpush1.msra.mxu0 0.0
    %3068 = vmatprep.subr.mxu0 0.0
    %3069 = vmatpush1.msra.mxu0 0.0
    %3070 = vmatprep.subr.mxu0 0.0
    %3071 = vmatpush1.msra.mxu0 0.0
    %3072 = vmatprep.subr.mxu0 0.0
    %3073 = vmatpush1.msra.mxu0 0.0
    %3074 = vmatprep.subr.mxu0 0.0
    %3075 = vmatpush1.msra.mxu0 0.0
    %3076 = vmatprep.subr.mxu0 0.0
    %3077 = vmatpush1.msra.mxu0 0.0
    %3078 = vmatprep.subr.mxu0 0.0
    %3079 = vmatpush1.msra.mxu0 0.0
    %3080 = vmatprep.subr.mxu0 0.0
    %3081 = vmatpush1.msra.mxu0 0.0
    %3082 = vmatprep.subr.mxu0 0.0
    %3083 = vmatpush1.msra.mxu0 0.0
    %3084 = vmatprep.subr.mxu0 0.0
    %3085 = vmatpush1.msra.mxu0 0.0
    %3086 = vmatprep.subr.mxu0 0.0
    %3087 = vmatpush1.msra.mxu0 0.0
    %3088 = vmatprep.subr.mxu0 0.0
    %3089 = vmatpush1.msra.mxu0 0.0
    %3090 = vmatprep.subr.mxu0 0.0
    %3091 = vmatpush1.msra.mxu0 0.0
    %3092 = vmatprep.subr.mxu0 0.0
    %3093 = vmatpush1.msra.mxu0 0.0
    %3094 = vmatprep.subr.mxu0 0.0
    %3095 = vmatpush1.msra.mxu0 0.0
    %3096 = vmatprep.subr.mxu0 0.0
    %3097 = vmatpush1.msra.mxu0 0.0
    %3098 = vmatprep.subr.mxu0 0.0
    %3099 = vmatpush1.msra.mxu0 0.0
    %3100 = vmatprep.subr.mxu0 0.0
    %3101 = vmatpush1.msra.mxu0 0.0
    %3102 = vmatprep.subr.mxu0 0.0
    %3103 = vmatpush1.msra.mxu0 0.0
    %3104 = vmatprep.subr.mxu0 0.0
    %3105 = vmatpush1.msra.mxu0 0.0
    %3106 = vmatprep.subr.mxu0 0.0
    %3107 = vmatpush1.msra.mxu0 0.0
    %3108 = vmatprep.subr.mxu0 0.0
    %3109 = vmatpush1.msra.mxu0 0.0
    %3110 = vmatprep.subr.mxu0 0.0
    %3111 = vmatpush1.msra.mxu0 0.0
    %3112 = vmatprep.subr.mxu0 0.0
    %3113 = vmatpush1.msra.mxu0 0.0
    %3114 = vmatprep.subr.mxu0 0.0
    %3115 = vmatpush1.msra.mxu0 0.0
    %3116 = vmatprep.subr.mxu0 0.0
    %3117 = vmatpush1.msra.mxu0 0.0
    %3118 = vmatprep.subr.mxu0 0.0
    %3119 = vmatpush1.msra.mxu0 0.0
    %3120 = vmatprep.mubr.f32.mxu0 0.0
    %3121 = vmatmul.mubr.f32.gmra.mrb[0].mxu0 %v3051
    %v3122 = vpop.f32.mrb[0].mxu0
    %v3123 = vadd.f32 %v3049, %v3122
    %v3124 = vpop.f32.mrb[0].mxu0
    %3125 = vmatprep.mubr.f32.mxu0 0.0
    %3126 = vmatmul.mubr.f32.gmra.mrb[0].mxu0 %v3054
    %v3127 = vpop.f32.mrb[0].mxu0
    %v3128 = vadd.f32 %v3049, %v3127
    %v3129 = vpop.f32.mrb[0].mxu0
    %3130 = vdwg.mxu0
    %3132 = vrot.lane.b32.xlu0 %v3123, 120
    %v3133 = vpop.permute.xlu0 %3132
    %3134 = vrot.lane.b32.xlu0 %v3123, 112
    %v3135 = vpop.permute.xlu0 %3134
    %3136 = vrot.lane.b32.xlu0 %v3123, 104
    %v3137 = vpop.permute.xlu0 %3136
    %3138 = vrot.lane.b32.xlu0 %v3123, 96
    %v3139 = vpop.permute.xlu0 %3138
    %3140 = vrot.lane.b32.xlu0 %v3133, 96
    %v3141 = vpop.permute.xlu0 %3140
    %3142 = vrot.lane.b32.xlu0 %v3135, 96
    %v3143 = vpop.permute.xlu0 %3142
    %3144 = vrot.lane.b32.xlu0 %v3137, 96
    %v3145 = vpop.permute.xlu0 %3144
    %3150 = vxpose.xlu0.b32.start [1/16] %v3139, 128
    %3151 = vxpose.xlu0.b32.cont [2/16] 0.0, 128
    %3152 = vxpose.xlu0.b32.cont [3/16] 0.0, 128
    %3153 = vxpose.xlu0.b32.cont [4/16] 0.0, 128
    %3154 = vxpose.xlu0.b32.cont [5/16] 0.0, 128
    %3155 = vxpose.xlu0.b32.cont [6/16] 0.0, 128
    %3156 = vxpose.xlu0.b32.cont [7/16] 0.0, 128
    %3157 = vxpose.xlu0.b32.cont [8/16] 0.0, 128
    %3158 = vxpose.xlu0.b32.cont [9/16] 0.0, 128
    %3159 = vxpose.xlu0.b32.cont [10/16] 0.0, 128
    %3160 = vxpose.xlu0.b32.cont [11/16] 0.0, 128
    %3161 = vxpose.xlu0.b32.cont [12/16] 0.0, 128
    %3162 = vxpose.xlu0.b32.cont [13/16] 0.0, 128
    %3163 = vxpose.xlu0.b32.cont [14/16] 0.0, 128
    %3164 = vxpose.xlu0.b32.cont [15/16] 0.0, 128
    %3165 = vxpose.xlu0.b32.end [16/16] 0.0, 128
    %v3166 = vpop.trf.xlu0
    %v3167 = vpop.trf.xlu0
    %v3168 = vpop.trf.xlu0
    %v3169 = vpop.trf.xlu0
    %v3170 = vpop.trf.xlu0
    %v3171 = vpop.trf.xlu0
    %v3172 = vpop.trf.xlu0
    %v3173 = vpop.trf.xlu0
    %v3174 = vpop.trf.xlu0
    %v3175 = vpop.trf.xlu0
    %v3176 = vpop.trf.xlu0
    %v3177 = vpop.trf.xlu0
    %v3178 = vpop.trf.xlu0
    %v3179 = vpop.trf.xlu0
    %v3180 = vpop.trf.xlu0
    %v3181 = vpop.trf.xlu0
    %3182 = vxpose.xlu0.b32.start [1/16] %v3141, 128
    %3183 = vxpose.xlu0.b32.cont [2/16] 0.0, 128
    %3184 = vxpose.xlu0.b32.cont [3/16] 0.0, 128
    %3185 = vxpose.xlu0.b32.cont [4/16] 0.0, 128
    %3186 = vxpose.xlu0.b32.cont [5/16] 0.0, 128
    %3187 = vxpose.xlu0.b32.cont [6/16] 0.0, 128
    %3188 = vxpose.xlu0.b32.cont [7/16] 0.0, 128
    %3189 = vxpose.xlu0.b32.cont [8/16] 0.0, 128
    %3190 = vxpose.xlu0.b32.cont [9/16] 0.0, 128
    %3191 = vxpose.xlu0.b32.cont [10/16] 0.0, 128
    %3192 = vxpose.xlu0.b32.cont [11/16] 0.0, 128
    %3193 = vxpose.xlu0.b32.cont [12/16] 0.0, 128
    %3194 = vxpose.xlu0.b32.cont [13/16] 0.0, 128
    %3195 = vxpose.xlu0.b32.cont [14/16] 0.0, 128
    %3196 = vxpose.xlu0.b32.cont [15/16] 0.0, 128
    %3197 = vxpose.xlu0.b32.end [16/16] 0.0, 128
    %v3198 = vpop.trf.xlu0
    %v3199 = vpop.trf.xlu0
    %v3200 = vpop.trf.xlu0
    %v3201 = vpop.trf.xlu0
    %v3202 = vpop.trf.xlu0
    %v3203 = vpop.trf.xlu0
    %v3204 = vpop.trf.xlu0
    %v3205 = vpop.trf.xlu0
    %v3206 = vpop.trf.xlu0
    %v3207 = vpop.trf.xlu0
    %v3208 = vpop.trf.xlu0
    %v3209 = vpop.trf.xlu0
    %v3210 = vpop.trf.xlu0
    %v3211 = vpop.trf.xlu0
    %v3212 = vpop.trf.xlu0
    %v3213 = vpop.trf.xlu0
    %3214 = vxpose.xlu0.b32.start [1/16] %v3143, 128
    %3215 = vxpose.xlu0.b32.cont [2/16] 0.0, 128
    %3216 = vxpose.xlu0.b32.cont [3/16] 0.0, 128
    %3217 = vxpose.xlu0.b32.cont [4/16] 0.0, 128
    %3218 = vxpose.xlu0.b32.cont [5/16] 0.0, 128
    %3219 = vxpose.xlu0.b32.cont [6/16] 0.0, 128
    %3220 = vxpose.xlu0.b32.cont [7/16] 0.0, 128
    %3221 = vxpose.xlu0.b32.cont [8/16] 0.0, 128
    %3222 = vxpose.xlu0.b32.cont [9/16] 0.0, 128
    %3223 = vxpose.xlu0.b32.cont [10/16] 0.0, 128
    %3224 = vxpose.xlu0.b32.cont [11/16] 0.0, 128
    %3225 = vxpose.xlu0.b32.cont [12/16] 0.0, 128
    %3226 = vxpose.xlu0.b32.cont [13/16] 0.0, 128
    %3227 = vxpose.xlu0.b32.cont [14/16] 0.0, 128
    %3228 = vxpose.xlu0.b32.cont [15/16] 0.0, 128
    %3229 = vxpose.xlu0.b32.end [16/16] 0.0, 128
    %v3230 = vpop.trf.xlu0
    %v3231 = vpop.trf.xlu0
    %v3232 = vpop.trf.xlu0
    %v3233 = vpop.trf.xlu0
    %v3234 = vpop.trf.xlu0
    %v3235 = vpop.trf.xlu0
    %v3236 = vpop.trf.xlu0
    %v3237 = vpop.trf.xlu0
    %v3238 = vpop.trf.xlu0
    %v3239 = vpop.trf.xlu0
    %v3240 = vpop.trf.xlu0
    %v3241 = vpop.trf.xlu0
    %v3242 = vpop.trf.xlu0
    %v3243 = vpop.trf.xlu0
    %v3244 = vpop.trf.xlu0
    %v3245 = vpop.trf.xlu0
    %3246 = vxpose.xlu0.b32.start [1/16] %v3145, 128
    %3247 = vxpose.xlu0.b32.cont [2/16] 0.0, 128
    %3248 = vxpose.xlu0.b32.cont [3/16] 0.0, 128
    %3249 = vxpose.xlu0.b32.cont [4/16] 0.0, 128
    %3250 = vxpose.xlu0.b32.cont [5/16] 0.0, 128
    %3251 = vxpose.xlu0.b32.cont [6/16] 0.0, 128
    %3252 = vxpose.xlu0.b32.cont [7/16] 0.0, 128
    %3253 = vxpose.xlu0.b32.cont [8/16] 0.0, 128
    %3254 = vxpose.xlu0.b32.cont [9/16] 0.0, 128
    %3255 = vxpose.xlu0.b32.cont [10/16] 0.0, 128
    %3256 = vxpose.xlu0.b32.cont [11/16] 0.0, 128
    %3257 = vxpose.xlu0.b32.cont [12/16] 0.0, 128
    %3258 = vxpose.xlu0.b32.cont [13/16] 0.0, 128
    %3259 = vxpose.xlu0.b32.cont [14/16] 0.0, 128
    %3260 = vxpose.xlu0.b32.cont [15/16] 0.0, 128
    %3261 = vxpose.xlu0.b32.end [16/16] 0.0, 128
    %v3262 = vpop.trf.xlu0
    %v3263 = vpop.trf.xlu0
    %v3264 = vpop.trf.xlu0
    %v3265 = vpop.trf.xlu0
    %v3266 = vpop.trf.xlu0
    %v3267 = vpop.trf.xlu0
    %v3268 = vpop.trf.xlu0
    %v3269 = vpop.trf.xlu0
    %v3270 = vpop.trf.xlu0
    %v3271 = vpop.trf.xlu0
    %v3272 = vpop.trf.xlu0
    %v3273 = vpop.trf.xlu0
    %v3274 = vpop.trf.xlu0
    %v3275 = vpop.trf.xlu0
    %v3276 = vpop.trf.xlu0
    %v3277 = vpop.trf.xlu0
    %v3278 = vsel %vm408, %v3123, 0
    %3280 = vmatprep.subr.mxu0 0.0
    %3281 = vmatpush1.msra.mxu0 %v3166
    %3282 = vmatprep.subr.mxu0 0.0
    %3283 = vmatpush1.msra.mxu0 0.0
    %3284 = vmatprep.subr.mxu0 0.0
    %3285 = vmatpush1.msra.mxu0 0.0
    %3286 = vmatprep.subr.mxu0 0.0
    %3287 = vmatpush1.msra.mxu0 0.0
    %3288 = vmatprep.subr.mxu0 0.0
    %3289 = vmatpush1.msra.mxu0 0.0
    %3290 = vmatprep.subr.mxu0 0.0
    %3291 = vmatpush1.msra.mxu0 0.0
    %3292 = vmatprep.subr.mxu0 0.0
    %3293 = vmatpush1.msra.mxu0 0.0
    %3294 = vmatprep.subr.mxu0 0.0
    %3295 = vmatpush1.msra.mxu0 0.0
    %3296 = vmatprep.subr.mxu0 0.0
    %3297 = vmatpush1.msra.mxu0 0.0
    %3298 = vmatprep.subr.mxu0 0.0
    %3299 = vmatpush1.msra.mxu0 0.0
    %3300 = vmatprep.subr.mxu0 0.0
    %3301 = vmatpush1.msra.mxu0 0.0
    %3302 = vmatprep.subr.mxu0 0.0
    %3303 = vmatpush1.msra.mxu0 0.0
    %3304 = vmatprep.subr.mxu0 0.0
    %3305 = vmatpush1.msra.mxu0 0.0
    %3306 = vmatprep.subr.mxu0 0.0
    %3307 = vmatpush1.msra.mxu0 0.0
    %3308 = vmatprep.subr.mxu0 0.0
    %3309 = vmatpush1.msra.mxu0 0.0
    %3310 = vmatprep.subr.mxu0 0.0
    %3311 = vmatpush1.msra.mxu0 0.0
    %3312 = vmatprep.subr.mxu0 0.0
    %3313 = vmatpush1.msra.mxu0 0.0
    %3314 = vmatprep.subr.mxu0 0.0
    %3315 = vmatpush1.msra.mxu0 0.0
    %3316 = vmatprep.subr.mxu0 0.0
    %3317 = vmatpush1.msra.mxu0 0.0
    %3318 = vmatprep.subr.mxu0 0.0
    %3319 = vmatpush1.msra.mxu0 0.0
    %3320 = vmatprep.subr.mxu0 0.0
    %3321 = vmatpush1.msra.mxu0 0.0
    %3322 = vmatprep.subr.mxu0 0.0
    %3323 = vmatpush1.msra.mxu0 0.0
    %3324 = vmatprep.subr.mxu0 0.0
    %3325 = vmatpush1.msra.mxu0 0.0
    %3326 = vmatprep.subr.mxu0 0.0
    %3327 = vmatpush1.msra.mxu0 0.0
    %3328 = vmatprep.subr.mxu0 0.0
    %3329 = vmatpush1.msra.mxu0 0.0
    %3330 = vmatprep.subr.mxu0 0.0
    %3331 = vmatpush1.msra.mxu0 0.0
    %3332 = vmatprep.subr.mxu0 0.0
    %3333 = vmatpush1.msra.mxu0 0.0
    %3334 = vmatprep.subr.mxu0 0.0
    %3335 = vmatpush1.msra.mxu0 0.0
    %3336 = vmatprep.subr.mxu0 0.0
    %3337 = vmatpush1.msra.mxu0 0.0
    %3338 = vmatprep.subr.mxu0 0.0
    %3339 = vmatpush1.msra.mxu0 0.0
    %3340 = vmatprep.subr.mxu0 0.0
    %3341 = vmatpush1.msra.mxu0 0.0
    %3342 = vmatprep.subr.mxu0 0.0
    %3343 = vmatpush1.msra.mxu0 0.0
    %3344 = vmatprep.mubr.f32.mxu0 0.0
    %3345 = vmatmul.mubr.f32.gmra.mrb[0].mxu0 %v3278
    %v3346 = vpop.f32.mrb[0].mxu0
    %v3347 = vadd.f32 %v267, %v3346
    %v3348 = vpop.f32.mrb[0].mxu0
    %3349 = vdwg.mxu0
    %v3350 = vsel %vm408, %v3133, 0
    %3352 = vmatprep.subr.mxu0 0.0
    %3353 = vmatpush1.msra.mxu0 %v3198
    %3354 = vmatprep.subr.mxu0 0.0
    %3355 = vmatpush1.msra.mxu0 0.0
    %3356 = vmatprep.subr.mxu0 0.0
    %3357 = vmatpush1.msra.mxu0 0.0
    %3358 = vmatprep.subr.mxu0 0.0
    %3359 = vmatpush1.msra.mxu0 0.0
    %3360 = vmatprep.subr.mxu0 0.0
    %3361 = vmatpush1.msra.mxu0 0.0
    %3362 = vmatprep.subr.mxu0 0.0
    %3363 = vmatpush1.msra.mxu0 0.0
    %3364 = vmatprep.subr.mxu0 0.0
    %3365 = vmatpush1.msra.mxu0 0.0
    %3366 = vmatprep.subr.mxu0 0.0
    %3367 = vmatpush1.msra.mxu0 0.0
    %3368 = vmatprep.subr.mxu0 0.0
    %3369 = vmatpush1.msra.mxu0 0.0
    %3370 = vmatprep.subr.mxu0 0.0
    %3371 = vmatpush1.msra.mxu0 0.0
    %3372 = vmatprep.subr.mxu0 0.0
    %3373 = vmatpush1.msra.mxu0 0.0
    %3374 = vmatprep.subr.mxu0 0.0
    %3375 = vmatpush1.msra.mxu0 0.0
    %3376 = vmatprep.subr.mxu0 0.0
    %3377 = vmatpush1.msra.mxu0 0.0
    %3378 = vmatprep.subr.mxu0 0.0
    %3379 = vmatpush1.msra.mxu0 0.0
    %3380 = vmatprep.subr.mxu0 0.0
    %3381 = vmatpush1.msra.mxu0 0.0
    %3382 = vmatprep.subr.mxu0 0.0
    %3383 = vmatpush1.msra.mxu0 0.0
    %3384 = vmatprep.subr.mxu0 0.0
    %3385 = vmatpush1.msra.mxu0 0.0
    %3386 = vmatprep.subr.mxu0 0.0
    %3387 = vmatpush1.msra.mxu0 0.0
    %3388 = vmatprep.subr.mxu0 0.0
    %3389 = vmatpush1.msra.mxu0 0.0
    %3390 = vmatprep.subr.mxu0 0.0
    %3391 = vmatpush1.msra.mxu0 0.0
    %3392 = vmatprep.subr.mxu0 0.0
    %3393 = vmatpush1.msra.mxu0 0.0
    %3394 = vmatprep.subr.mxu0 0.0
    %3395 = vmatpush1.msra.mxu0 0.0
    %3396 = vmatprep.subr.mxu0 0.0
    %3397 = vmatpush1.msra.mxu0 0.0
    %3398 = vmatprep.subr.mxu0 0.0
    %3399 = vmatpush1.msra.mxu0 0.0
    %3400 = vmatprep.subr.mxu0 0.0
    %3401 = vmatpush1.msra.mxu0 0.0
    %3402 = vmatprep.subr.mxu0 0.0
    %3403 = vmatpush1.msra.mxu0 0.0
    %3404 = vmatprep.subr.mxu0 0.0
    %3405 = vmatpush1.msra.mxu0 0.0
    %3406 = vmatprep.subr.mxu0 0.0
    %3407 = vmatpush1.msra.mxu0 0.0
    %3408 = vmatprep.subr.mxu0 0.0
    %3409 = vmatpush1.msra.mxu0 0.0
    %3410 = vmatprep.subr.mxu0 0.0
    %3411 = vmatpush1.msra.mxu0 0.0
    %3412 = vmatprep.subr.mxu0 0.0
    %3413 = vmatpush1.msra.mxu0 0.0
    %3414 = vmatprep.subr.mxu0 0.0
    %3415 = vmatpush1.msra.mxu0 0.0
    %3416 = vmatprep.mubr.f32.mxu0 0.0
    %3417 = vmatmul.mubr.f32.gmra.mrb[0].mxu0 %v3350
    %v3418 = vpop.f32.mrb[0].mxu0
    %v3419 = vadd.f32 %v267, %v3418
    %v3420 = vpop.f32.mrb[0].mxu0
    %3421 = vdwg.mxu0
    %v3422 = vsel %vm408, %v3135, 0
    %3424 = vmatprep.subr.mxu0 0.0
    %3425 = vmatpush1.msra.mxu0 %v3230
    %3426 = vmatprep.subr.mxu0 0.0
    %3427 = vmatpush1.msra.mxu0 0.0
    %3428 = vmatprep.subr.mxu0 0.0
    %3429 = vmatpush1.msra.mxu0 0.0
    %3430 = vmatprep.subr.mxu0 0.0
    %3431 = vmatpush1.msra.mxu0 0.0
    %3432 = vmatprep.subr.mxu0 0.0
    %3433 = vmatpush1.msra.mxu0 0.0
    %3434 = vmatprep.subr.mxu0 0.0
    %3435 = vmatpush1.msra.mxu0 0.0
    %3436 = vmatprep.subr.mxu0 0.0
    %3437 = vmatpush1.msra.mxu0 0.0
    %3438 = vmatprep.subr.mxu0 0.0
    %3439 = vmatpush1.msra.mxu0 0.0
    %3440 = vmatprep.subr.mxu0 0.0
    %3441 = vmatpush1.msra.mxu0 0.0
    %3442 = vmatprep.subr.mxu0 0.0
    %3443 = vmatpush1.msra.mxu0 0.0
    %3444 = vmatprep.subr.mxu0 0.0
    %3445 = vmatpush1.msra.mxu0 0.0
    %3446 = vmatprep.subr.mxu0 0.0
    %3447 = vmatpush1.msra.mxu0 0.0
    %3448 = vmatprep.subr.mxu0 0.0
    %3449 = vmatpush1.msra.mxu0 0.0
    %3450 = vmatprep.subr.mxu0 0.0
    %3451 = vmatpush1.msra.mxu0 0.0
    %3452 = vmatprep.subr.mxu0 0.0
    %3453 = vmatpush1.msra.mxu0 0.0
    %3454 = vmatprep.subr.mxu0 0.0
    %3455 = vmatpush1.msra.mxu0 0.0
    %3456 = vmatprep.subr.mxu0 0.0
    %3457 = vmatpush1.msra.mxu0 0.0
    %3458 = vmatprep.subr.mxu0 0.0
    %3459 = vmatpush1.msra.mxu0 0.0
    %3460 = vmatprep.subr.mxu0 0.0
    %3461 = vmatpush1.msra.mxu0 0.0
    %3462 = vmatprep.subr.mxu0 0.0
    %3463 = vmatpush1.msra.mxu0 0.0
    %3464 = vmatprep.subr.mxu0 0.0
    %3465 = vmatpush1.msra.mxu0 0.0
    %3466 = vmatprep.subr.mxu0 0.0
    %3467 = vmatpush1.msra.mxu0 0.0
    %3468 = vmatprep.subr.mxu0 0.0
    %3469 = vmatpush1.msra.mxu0 0.0
    %3470 = vmatprep.subr.mxu0 0.0
    %3471 = vmatpush1.msra.mxu0 0.0
    %3472 = vmatprep.subr.mxu0 0.0
    %3473 = vmatpush1.msra.mxu0 0.0
    %3474 = vmatprep.subr.mxu0 0.0
    %3475 = vmatpush1.msra.mxu0 0.0
    %3476 = vmatprep.subr.mxu0 0.0
    %3477 = vmatpush1.msra.mxu0 0.0
    %3478 = vmatprep.subr.mxu0 0.0
    %3479 = vmatpush1.msra.mxu0 0.0
    %3480 = vmatprep.subr.mxu0 0.0
    %3481 = vmatpush1.msra.mxu0 0.0
    %3482 = vmatprep.subr.mxu0 0.0
    %3483 = vmatpush1.msra.mxu0 0.0
    %3484 = vmatprep.subr.mxu0 0.0
    %3485 = vmatpush1.msra.mxu0 0.0
    %3486 = vmatprep.subr.mxu0 0.0
    %3487 = vmatpush1.msra.mxu0 0.0
    %3488 = vmatprep.mubr.f32.mxu0 0.0
    %3489 = vmatmul.mubr.f32.gmra.mrb[0].mxu0 %v3422
    %v3490 = vpop.f32.mrb[0].mxu0
    %v3491 = vadd.f32 %v267, %v3490
    %v3492 = vpop.f32.mrb[0].mxu0
    %3493 = vdwg.mxu0
    %v3494 = vsel %vm408, %v3137, 0
    %3496 = vmatprep.subr.mxu0 0.0
    %3497 = vmatpush1.msra.mxu0 %v3262
    %3498 = vmatprep.subr.mxu0 0.0
    %3499 = vmatpush1.msra.mxu0 0.0
    %3500 = vmatprep.subr.mxu0 0.0
    %3501 = vmatpush1.msra.mxu0 0.0
    %3502 = vmatprep.subr.mxu0 0.0
    %3503 = vmatpush1.msra.mxu0 0.0
    %3504 = vmatprep.subr.mxu0 0.0
    %3505 = vmatpush1.msra.mxu0 0.0
    %3506 = vmatprep.subr.mxu0 0.0
    %3507 = vmatpush1.msra.mxu0 0.0
    %3508 = vmatprep.subr.mxu0 0.0
    %3509 = vmatpush1.msra.mxu0 0.0
    %3510 = vmatprep.subr.mxu0 0.0
    %3511 = vmatpush1.msra.mxu0 0.0
    %3512 = vmatprep.subr.mxu0 0.0
    %3513 = vmatpush1.msra.mxu0 0.0
    %3514 = vmatprep.subr.mxu0 0.0
    %3515 = vmatpush1.msra.mxu0 0.0
    %3516 = vmatprep.subr.mxu0 0.0
    %3517 = vmatpush1.msra.mxu0 0.0
    %3518 = vmatprep.subr.mxu0 0.0
    %3519 = vmatpush1.msra.mxu0 0.0
    %3520 = vmatprep.subr.mxu0 0.0
    %3521 = vmatpush1.msra.mxu0 0.0
    %3522 = vmatprep.subr.mxu0 0.0
    %3523 = vmatpush1.msra.mxu0 0.0
    %3524 = vmatprep.subr.mxu0 0.0
    %3525 = vmatpush1.msra.mxu0 0.0
    %3526 = vmatprep.subr.mxu0 0.0
    %3527 = vmatpush1.msra.mxu0 0.0
    %3528 = vmatprep.subr.mxu0 0.0
    %3529 = vmatpush1.msra.mxu0 0.0
    %3530 = vmatprep.subr.mxu0 0.0
    %3531 = vmatpush1.msra.mxu0 0.0
    %3532 = vmatprep.subr.mxu0 0.0
    %3533 = vmatpush1.msra.mxu0 0.0
    %3534 = vmatprep.subr.mxu0 0.0
    %3535 = vmatpush1.msra.mxu0 0.0
    %3536 = vmatprep.subr.mxu0 0.0
    %3537 = vmatpush1.msra.mxu0 0.0
    %3538 = vmatprep.subr.mxu0 0.0
    %3539 = vmatpush1.msra.mxu0 0.0
    %3540 = vmatprep.subr.mxu0 0.0
    %3541 = vmatpush1.msra.mxu0 0.0
    %3542 = vmatprep.subr.mxu0 0.0
    %3543 = vmatpush1.msra.mxu0 0.0
    %3544 = vmatprep.subr.mxu0 0.0
    %3545 = vmatpush1.msra.mxu0 0.0
    %3546 = vmatprep.subr.mxu0 0.0
    %3547 = vmatpush1.msra.mxu0 0.0
    %3548 = vmatprep.subr.mxu0 0.0
    %3549 = vmatpush1.msra.mxu0 0.0
    %3550 = vmatprep.subr.mxu0 0.0
    %3551 = vmatpush1.msra.mxu0 0.0
    %3552 = vmatprep.subr.mxu0 0.0
    %3553 = vmatpush1.msra.mxu0 0.0
    %3554 = vmatprep.subr.mxu0 0.0
    %3555 = vmatpush1.msra.mxu0 0.0
    %3556 = vmatprep.subr.mxu0 0.0
    %3557 = vmatpush1.msra.mxu0 0.0
    %3558 = vmatprep.subr.mxu0 0.0
    %3559 = vmatpush1.msra.mxu0 0.0
    %3560 = vmatprep.mubr.f32.mxu0 0.0
    %3561 = vmatmul.mubr.f32.gmra.mrb[0].mxu0 %v3494
    %v3562 = vpop.f32.mrb[0].mxu0
    %v3563 = vadd.f32 %v267, %v3562
    %v3564 = vpop.f32.mrb[0].mxu0
    %3565 = vdwg.mxu0
    %v3566 = vsel %vm408, %v3347, -inf
    %3567 = vmax.xlane.f32.xlu0 %v3566
    %v3568 = vpop.xlane.xlu0 %3567
    %v3569 = vsel %vm408, %v3419, -inf
    %3570 = vmax.xlane.f32.xlu0 %v3569
    %v3571 = vpop.xlane.xlu0 %3570
    %v3572 = vsel %vm408, %v3491, -inf
    %3573 = vmax.xlane.f32.xlu0 %v3572
    %v3574 = vpop.xlane.xlu0 %3573
    %v3575 = vsel %vm408, %v3563, -inf
    %3576 = vmax.xlane.f32.xlu0 %v3575
    %v3577 = vpop.xlane.xlu0 %3576
    %v3578 = vsub.f32 %v3347, %v3568
    %v3579 = vsub.f32 %v3419, %v3571
    %v3580 = vsub.f32 %v3491, %v3574
    %v3581 = vsub.f32 %v3563, %v3577
    %v3582 = vmul.f32 %v3578, 1.442695
    %v3583 = vpow.pop %v3582
    %v3584 = vmul.f32 %v3579, 1.442695
    %v3585 = vpow.pop %v3584
    %v3586 = vmul.f32 %v3580, 1.442695
    %v3587 = vpow.pop %v3586
    %v3588 = vmul.f32 %v3581, 1.442695
    %v3589 = vpow.pop %v3588
    %v3590 = vsel %vm408, %v3583, 0.0
    %3591 = vadd.xlane.f32.xlu0 %v3590
    %v3592 = vpop.xlane.xlu0 %3591
    %v3593 = vsel %vm408, %v3585, 0.0
    %3594 = vadd.xlane.f32.xlu0 %v3593
    %v3595 = vpop.xlane.xlu0 %3594
    %v3596 = vsel %vm408, %v3587, 0.0
    %3597 = vadd.xlane.f32.xlu0 %v3596
    %v3598 = vpop.xlane.xlu0 %3597
    %v3599 = vsel %vm408, %v3589, 0.0
    %3600 = vadd.xlane.f32.xlu0 %v3599
    %v3601 = vpop.xlane.xlu0 %3600
    %v3602 = vrcp.pop %v3592
    %v3603 = vrcp.pop %v3595
    %v3604 = vrcp.pop %v3598
    %v3605 = vrcp.pop %v3601
    %v3606 = vmul.f32 %v3583, %v3602
    %v3607 = vmul.f32 %v3585, %v3603
    %v3608 = vmul.f32 %v3587, %v3604
    %v3609 = vmul.f32 %v3589, %v3605
    %3610 = vrot.lane.b32.xlu0 %v3123, 64
    %v3611 = vpop.permute.xlu0 %3610
    %3612 = vrot.lane.b32.xlu0 %v3133, 64
    %v3613 = vpop.permute.xlu0 %3612
    %3614 = vrot.lane.b32.xlu0 %v3135, 64
    %v3615 = vpop.permute.xlu0 %3614
    %3616 = vrot.lane.b32.xlu0 %v3137, 64
    %v3617 = vpop.permute.xlu0 %3616
    %3622 = vxpose.xlu0.b32.start [1/16] %v3611, 128
    %3623 = vxpose.xlu0.b32.cont [2/16] 0.0, 128
    %3624 = vxpose.xlu0.b32.cont [3/16] 0.0, 128
    %3625 = vxpose.xlu0.b32.cont [4/16] 0.0, 128
    %3626 = vxpose.xlu0.b32.cont [5/16] 0.0, 128
    %3627 = vxpose.xlu0.b32.cont [6/16] 0.0, 128
    %3628 = vxpose.xlu0.b32.cont [7/16] 0.0, 128
    %3629 = vxpose.xlu0.b32.cont [8/16] 0.0, 128
    %3630 = vxpose.xlu0.b32.cont [9/16] 0.0, 128
    %3631 = vxpose.xlu0.b32.cont [10/16] 0.0, 128
    %3632 = vxpose.xlu0.b32.cont [11/16] 0.0, 128
    %3633 = vxpose.xlu0.b32.cont [12/16] 0.0, 128
    %3634 = vxpose.xlu0.b32.cont [13/16] 0.0, 128
    %3635 = vxpose.xlu0.b32.cont [14/16] 0.0, 128
    %3636 = vxpose.xlu0.b32.cont [15/16] 0.0, 128
    %3637 = vxpose.xlu0.b32.end [16/16] 0.0, 128
    %v3638 = vpop.trf.xlu0
    %v3639 = vpop.trf.xlu0
    %v3640 = vpop.trf.xlu0
    %v3641 = vpop.trf.xlu0
    %v3642 = vpop.trf.xlu0
    %v3643 = vpop.trf.xlu0
    %v3644 = vpop.trf.xlu0
    %v3645 = vpop.trf.xlu0
    %v3646 = vpop.trf.xlu0
    %v3647 = vpop.trf.xlu0
    %v3648 = vpop.trf.xlu0
    %v3649 = vpop.trf.xlu0
    %v3650 = vpop.trf.xlu0
    %v3651 = vpop.trf.xlu0
    %v3652 = vpop.trf.xlu0
    %v3653 = vpop.trf.xlu0
    %3654 = vxpose.xlu0.b32.start [1/16] %v3613, 128
    %3655 = vxpose.xlu0.b32.cont [2/16] 0.0, 128
    %3656 = vxpose.xlu0.b32.cont [3/16] 0.0, 128
    %3657 = vxpose.xlu0.b32.cont [4/16] 0.0, 128
    %3658 = vxpose.xlu0.b32.cont [5/16] 0.0, 128
    %3659 = vxpose.xlu0.b32.cont [6/16] 0.0, 128
    %3660 = vxpose.xlu0.b32.cont [7/16] 0.0, 128
    %3661 = vxpose.xlu0.b32.cont [8/16] 0.0, 128
    %3662 = vxpose.xlu0.b32.cont [9/16] 0.0, 128
    %3663 = vxpose.xlu0.b32.cont [10/16] 0.0, 128
    %3664 = vxpose.xlu0.b32.cont [11/16] 0.0, 128
    %3665 = vxpose.xlu0.b32.cont [12/16] 0.0, 128
    %3666 = vxpose.xlu0.b32.cont [13/16] 0.0, 128
    %3667 = vxpose.xlu0.b32.cont [14/16] 0.0, 128
    %3668 = vxpose.xlu0.b32.cont [15/16] 0.0, 128
    %3669 = vxpose.xlu0.b32.end [16/16] 0.0, 128
    %v3670 = vpop.trf.xlu0
    %v3671 = vpop.trf.xlu0
    %v3672 = vpop.trf.xlu0
    %v3673 = vpop.trf.xlu0
    %v3674 = vpop.trf.xlu0
    %v3675 = vpop.trf.xlu0
    %v3676 = vpop.trf.xlu0
    %v3677 = vpop.trf.xlu0
    %v3678 = vpop.trf.xlu0
    %v3679 = vpop.trf.xlu0
    %v3680 = vpop.trf.xlu0
    %v3681 = vpop.trf.xlu0
    %v3682 = vpop.trf.xlu0
    %v3683 = vpop.trf.xlu0
    %v3684 = vpop.trf.xlu0
    %v3685 = vpop.trf.xlu0
    %3686 = vxpose.xlu0.b32.start [1/16] %v3615, 128
    %3687 = vxpose.xlu0.b32.cont [2/16] 0.0, 128
    %3688 = vxpose.xlu0.b32.cont [3/16] 0.0, 128
    %3689 = vxpose.xlu0.b32.cont [4/16] 0.0, 128
    %3690 = vxpose.xlu0.b32.cont [5/16] 0.0, 128
    %3691 = vxpose.xlu0.b32.cont [6/16] 0.0, 128
    %3692 = vxpose.xlu0.b32.cont [7/16] 0.0, 128
    %3693 = vxpose.xlu0.b32.cont [8/16] 0.0, 128
    %3694 = vxpose.xlu0.b32.cont [9/16] 0.0, 128
    %3695 = vxpose.xlu0.b32.cont [10/16] 0.0, 128
    %3696 = vxpose.xlu0.b32.cont [11/16] 0.0, 128
    %3697 = vxpose.xlu0.b32.cont [12/16] 0.0, 128
    %3698 = vxpose.xlu0.b32.cont [13/16] 0.0, 128
    %3699 = vxpose.xlu0.b32.cont [14/16] 0.0, 128
    %3700 = vxpose.xlu0.b32.cont [15/16] 0.0, 128
    %3701 = vxpose.xlu0.b32.end [16/16] 0.0, 128
    %v3702 = vpop.trf.xlu0
    %v3703 = vpop.trf.xlu0
    %v3704 = vpop.trf.xlu0
    %v3705 = vpop.trf.xlu0
    %v3706 = vpop.trf.xlu0
    %v3707 = vpop.trf.xlu0
    %v3708 = vpop.trf.xlu0
    %v3709 = vpop.trf.xlu0
    %v3710 = vpop.trf.xlu0
    %v3711 = vpop.trf.xlu0
    %v3712 = vpop.trf.xlu0
    %v3713 = vpop.trf.xlu0
    %v3714 = vpop.trf.xlu0
    %v3715 = vpop.trf.xlu0
    %v3716 = vpop.trf.xlu0
    %v3717 = vpop.trf.xlu0
    %3718 = vxpose.xlu0.b32.start [1/16] %v3617, 128
    %3719 = vxpose.xlu0.b32.cont [2/16] 0.0, 128
    %3720 = vxpose.xlu0.b32.cont [3/16] 0.0, 128
    %3721 = vxpose.xlu0.b32.cont [4/16] 0.0, 128
    %3722 = vxpose.xlu0.b32.cont [5/16] 0.0, 128
    %3723 = vxpose.xlu0.b32.cont [6/16] 0.0, 128
    %3724 = vxpose.xlu0.b32.cont [7/16] 0.0, 128
    %3725 = vxpose.xlu0.b32.cont [8/16] 0.0, 128
    %3726 = vxpose.xlu0.b32.cont [9/16] 0.0, 128
    %3727 = vxpose.xlu0.b32.cont [10/16] 0.0, 128
    %3728 = vxpose.xlu0.b32.cont [11/16] 0.0, 128
    %3729 = vxpose.xlu0.b32.cont [12/16] 0.0, 128
    %3730 = vxpose.xlu0.b32.cont [13/16] 0.0, 128
    %3731 = vxpose.xlu0.b32.cont [14/16] 0.0, 128
    %3732 = vxpose.xlu0.b32.cont [15/16] 0.0, 128
    %3733 = vxpose.xlu0.b32.end [16/16] 0.0, 128
    %v3734 = vpop.trf.xlu0
    %v3735 = vpop.trf.xlu0
    %v3736 = vpop.trf.xlu0
    %v3737 = vpop.trf.xlu0
    %v3738 = vpop.trf.xlu0
    %v3739 = vpop.trf.xlu0
    %v3740 = vpop.trf.xlu0
    %v3741 = vpop.trf.xlu0
    %v3742 = vpop.trf.xlu0
    %v3743 = vpop.trf.xlu0
    %v3744 = vpop.trf.xlu0
    %v3745 = vpop.trf.xlu0
    %v3746 = vpop.trf.xlu0
    %v3747 = vpop.trf.xlu0
    %v3748 = vpop.trf.xlu0
    %v3749 = vpop.trf.xlu0
    %v3751 = vsel %vm408, %v3638, 0
    %v3754 = vsel %vm408, %v3606, 0
    %3756 = vmatprep.subr.mxu0 0.0
    %3757 = vmatpush1.xpose.msra.mxu0 %v3754
    %3758 = vmatprep.subr.mxu0 0.0
    %3759 = vmatpush1.xpose.msra.mxu0 0.0
    %3760 = vmatprep.subr.mxu0 0.0
    %3761 = vmatpush1.xpose.msra.mxu0 0.0
    %3762 = vmatprep.subr.mxu0 0.0
    %3763 = vmatpush1.xpose.msra.mxu0 0.0
    %3764 = vmatprep.subr.mxu0 0.0
    %3765 = vmatpush1.xpose.msra.mxu0 0.0
    %3766 = vmatprep.subr.mxu0 0.0
    %3767 = vmatpush1.xpose.msra.mxu0 0.0
    %3768 = vmatprep.subr.mxu0 0.0
    %3769 = vmatpush1.xpose.msra.mxu0 0.0
    %3770 = vmatprep.subr.mxu0 0.0
    %3771 = vmatpush1.xpose.msra.mxu0 0.0
    %3772 = vmatprep.subr.mxu0 0.0
    %3773 = vmatpush1.xpose.msra.mxu0 0.0
    %3774 = vmatprep.subr.mxu0 0.0
    %3775 = vmatpush1.xpose.msra.mxu0 0.0
    %3776 = vmatprep.subr.mxu0 0.0
    %3777 = vmatpush1.xpose.msra.mxu0 0.0
    %3778 = vmatprep.subr.mxu0 0.0
    %3779 = vmatpush1.xpose.msra.mxu0 0.0
    %3780 = vmatprep.subr.mxu0 0.0
    %3781 = vmatpush1.xpose.msra.mxu0 0.0
    %3782 = vmatprep.subr.mxu0 0.0
    %3783 = vmatpush1.xpose.msra.mxu0 0.0
    %3784 = vmatprep.subr.mxu0 0.0
    %3785 = vmatpush1.xpose.msra.mxu0 0.0
    %3786 = vmatprep.subr.mxu0 0.0
    %3787 = vmatpush1.xpose.msra.mxu0 0.0
    %3788 = vmatprep.subr.mxu0 0.0
    %3789 = vmatpush1.xpose.msra.mxu0 0.0
    %3790 = vmatprep.subr.mxu0 0.0
    %3791 = vmatpush1.xpose.msra.mxu0 0.0
    %3792 = vmatprep.subr.mxu0 0.0
    %3793 = vmatpush1.xpose.msra.mxu0 0.0
    %3794 = vmatprep.subr.mxu0 0.0
    %3795 = vmatpush1.xpose.msra.mxu0 0.0
    %3796 = vmatprep.subr.mxu0 0.0
    %3797 = vmatpush1.xpose.msra.mxu0 0.0
    %3798 = vmatprep.subr.mxu0 0.0
    %3799 = vmatpush1.xpose.msra.mxu0 0.0
    %3800 = vmatprep.subr.mxu0 0.0
    %3801 = vmatpush1.xpose.msra.mxu0 0.0
    %3802 = vmatprep.subr.mxu0 0.0
    %3803 = vmatpush1.xpose.msra.mxu0 0.0
    %3804 = vmatprep.subr.mxu0 0.0
    %3805 = vmatpush1.xpose.msra.mxu0 0.0
    %3806 = vmatprep.subr.mxu0 0.0
    %3807 = vmatpush1.xpose.msra.mxu0 0.0
    %3808 = vmatprep.subr.mxu0 0.0
    %3809 = vmatpush1.xpose.msra.mxu0 0.0
    %3810 = vmatprep.subr.mxu0 0.0
    %3811 = vmatpush1.xpose.msra.mxu0 0.0
    %3812 = vmatprep.subr.mxu0 0.0
    %3813 = vmatpush1.xpose.msra.mxu0 0.0
    %3814 = vmatprep.subr.mxu0 0.0
    %3815 = vmatpush1.xpose.msra.mxu0 0.0
    %3816 = vmatprep.subr.mxu0 0.0
    %3817 = vmatpush1.xpose.msra.mxu0 0.0
    %3818 = vmatprep.subr.mxu0 0.0
    %3819 = vmatpush1.xpose.msra.mxu0 0.0
    %3820 = vmatprep.mubr.f32.mxu0 0.0
    %3821 = vmatmul.mubr.f32.gmra.mrb[0].mxu0 %v3751
    %v3822 = vpop.f32.mrb[0].mxu0
    %v3823 = vadd.f32 0.0, %v3822
    %v3824 = vpop.f32.mrb[0].mxu0
    %3825 = vdwg.mxu0
    %v3827 = vsel %vm408, %v3670, 0
    %v3830 = vsel %vm408, %v3607, 0
    %3832 = vmatprep.subr.mxu0 0.0
    %3833 = vmatpush1.xpose.msra.mxu0 %v3830
    %3834 = vmatprep.subr.mxu0 0.0
    %3835 = vmatpush1.xpose.msra.mxu0 0.0
    %3836 = vmatprep.subr.mxu0 0.0
    %3837 = vmatpush1.xpose.msra.mxu0 0.0
    %3838 = vmatprep.subr.mxu0 0.0
    %3839 = vmatpush1.xpose.msra.mxu0 0.0
    %3840 = vmatprep.subr.mxu0 0.0
    %3841 = vmatpush1.xpose.msra.mxu0 0.0
    %3842 = vmatprep.subr.mxu0 0.0
    %3843 = vmatpush1.xpose.msra.mxu0 0.0
    %3844 = vmatprep.subr.mxu0 0.0
    %3845 = vmatpush1.xpose.msra.mxu0 0.0
    %3846 = vmatprep.subr.mxu0 0.0
    %3847 = vmatpush1.xpose.msra.mxu0 0.0
    %3848 = vmatprep.subr.mxu0 0.0
    %3849 = vmatpush1.xpose.msra.mxu0 0.0
    %3850 = vmatprep.subr.mxu0 0.0
    %3851 = vmatpush1.xpose.msra.mxu0 0.0
    %3852 = vmatprep.subr.mxu0 0.0
    %3853 = vmatpush1.xpose.msra.mxu0 0.0
    %3854 = vmatprep.subr.mxu0 0.0
    %3855 = vmatpush1.xpose.msra.mxu0 0.0
    %3856 = vmatprep.subr.mxu0 0.0
    %3857 = vmatpush1.xpose.msra.mxu0 0.0
    %3858 = vmatprep.subr.mxu0 0.0
    %3859 = vmatpush1.xpose.msra.mxu0 0.0
    %3860 = vmatprep.subr.mxu0 0.0
    %3861 = vmatpush1.xpose.msra.mxu0 0.0
    %3862 = vmatprep.subr.mxu0 0.0
    %3863 = vmatpush1.xpose.msra.mxu0 0.0
    %3864 = vmatprep.subr.mxu0 0.0
    %3865 = vmatpush1.xpose.msra.mxu0 0.0
    %3866 = vmatprep.subr.mxu0 0.0
    %3867 = vmatpush1.xpose.msra.mxu0 0.0
    %3868 = vmatprep.subr.mxu0 0.0
    %3869 = vmatpush1.xpose.msra.mxu0 0.0
    %3870 = vmatprep.subr.mxu0 0.0
    %3871 = vmatpush1.xpose.msra.mxu0 0.0
    %3872 = vmatprep.subr.mxu0 0.0
    %3873 = vmatpush1.xpose.msra.mxu0 0.0
    %3874 = vmatprep.subr.mxu0 0.0
    %3875 = vmatpush1.xpose.msra.mxu0 0.0
    %3876 = vmatprep.subr.mxu0 0.0
    %3877 = vmatpush1.xpose.msra.mxu0 0.0
    %3878 = vmatprep.subr.mxu0 0.0
    %3879 = vmatpush1.xpose.msra.mxu0 0.0
    %3880 = vmatprep.subr.mxu0 0.0
    %3881 = vmatpush1.xpose.msra.mxu0 0.0
    %3882 = vmatprep.subr.mxu0 0.0
    %3883 = vmatpush1.xpose.msra.mxu0 0.0
    %3884 = vmatprep.subr.mxu0 0.0
    %3885 = vmatpush1.xpose.msra.mxu0 0.0
    %3886 = vmatprep.subr.mxu0 0.0
    %3887 = vmatpush1.xpose.msra.mxu0 0.0
    %3888 = vmatprep.subr.mxu0 0.0
    %3889 = vmatpush1.xpose.msra.mxu0 0.0
    %3890 = vmatprep.subr.mxu0 0.0
    %3891 = vmatpush1.xpose.msra.mxu0 0.0
    %3892 = vmatprep.subr.mxu0 0.0
    %3893 = vmatpush1.xpose.msra.mxu0 0.0
    %3894 = vmatprep.subr.mxu0 0.0
    %3895 = vmatpush1.xpose.msra.mxu0 0.0
    %3896 = vmatprep.mubr.f32.mxu0 0.0
    %3897 = vmatmul.mubr.f32.gmra.mrb[0].mxu0 %v3827
    %v3898 = vpop.f32.mrb[0].mxu0
    %v3899 = vadd.f32 0.0, %v3898
    %v3900 = vpop.f32.mrb[0].mxu0
    %3901 = vdwg.mxu0
    %v3903 = vsel %vm408, %v3702, 0
    %v3906 = vsel %vm408, %v3608, 0
    %3908 = vmatprep.subr.mxu0 0.0
    %3909 = vmatpush1.xpose.msra.mxu0 %v3906
    %3910 = vmatprep.subr.mxu0 0.0
    %3911 = vmatpush1.xpose.msra.mxu0 0.0
    %3912 = vmatprep.subr.mxu0 0.0
    %3913 = vmatpush1.xpose.msra.mxu0 0.0
    %3914 = vmatprep.subr.mxu0 0.0
    %3915 = vmatpush1.xpose.msra.mxu0 0.0
    %3916 = vmatprep.subr.mxu0 0.0
    %3917 = vmatpush1.xpose.msra.mxu0 0.0
    %3918 = vmatprep.subr.mxu0 0.0
    %3919 = vmatpush1.xpose.msra.mxu0 0.0
    %3920 = vmatprep.subr.mxu0 0.0
    %3921 = vmatpush1.xpose.msra.mxu0 0.0
    %3922 = vmatprep.subr.mxu0 0.0
    %3923 = vmatpush1.xpose.msra.mxu0 0.0
    %3924 = vmatprep.subr.mxu0 0.0
    %3925 = vmatpush1.xpose.msra.mxu0 0.0
    %3926 = vmatprep.subr.mxu0 0.0
    %3927 = vmatpush1.xpose.msra.mxu0 0.0
    %3928 = vmatprep.subr.mxu0 0.0
    %3929 = vmatpush1.xpose.msra.mxu0 0.0
    %3930 = vmatprep.subr.mxu0 0.0
    %3931 = vmatpush1.xpose.msra.mxu0 0.0
    %3932 = vmatprep.subr.mxu0 0.0
    %3933 = vmatpush1.xpose.msra.mxu0 0.0
    %3934 = vmatprep.subr.mxu0 0.0
    %3935 = vmatpush1.xpose.msra.mxu0 0.0
    %3936 = vmatprep.subr.mxu0 0.0
    %3937 = vmatpush1.xpose.msra.mxu0 0.0
    %3938 = vmatprep.subr.mxu0 0.0
    %3939 = vmatpush1.xpose.msra.mxu0 0.0
    %3940 = vmatprep.subr.mxu0 0.0
    %3941 = vmatpush1.xpose.msra.mxu0 0.0
    %3942 = vmatprep.subr.mxu0 0.0
    %3943 = vmatpush1.xpose.msra.mxu0 0.0
    %3944 = vmatprep.subr.mxu0 0.0
    %3945 = vmatpush1.xpose.msra.mxu0 0.0
    %3946 = vmatprep.subr.mxu0 0.0
    %3947 = vmatpush1.xpose.msra.mxu0 0.0
    %3948 = vmatprep.subr.mxu0 0.0
    %3949 = vmatpush1.xpose.msra.mxu0 0.0
    %3950 = vmatprep.subr.mxu0 0.0
    %3951 = vmatpush1.xpose.msra.mxu0 0.0
    %3952 = vmatprep.subr.mxu0 0.0
    %3953 = vmatpush1.xpose.msra.mxu0 0.0
    %3954 = vmatprep.subr.mxu0 0.0
    %3955 = vmatpush1.xpose.msra.mxu0 0.0
    %3956 = vmatprep.subr.mxu0 0.0
    %3957 = vmatpush1.xpose.msra.mxu0 0.0
    %3958 = vmatprep.subr.mxu0 0.0
    %3959 = vmatpush1.xpose.msra.mxu0 0.0
    %3960 = vmatprep.subr.mxu0 0.0
    %3961 = vmatpush1.xpose.msra.mxu0 0.0
    %3962 = vmatprep.subr.mxu0 0.0
    %3963 = vmatpush1.xpose.msra.mxu0 0.0
    %3964 = vmatprep.subr.mxu0 0.0
    %3965 = vmatpush1.xpose.msra.mxu0 0.0
    %3966 = vmatprep.subr.mxu0 0.0
    %3967 = vmatpush1.xpose.msra.mxu0 0.0
    %3968 = vmatprep.subr.mxu0 0.0
    %3969 = vmatpush1.xpose.msra.mxu0 0.0
    %3970 = vmatprep.subr.mxu0 0.0
    %3971 = vmatpush1.xpose.msra.mxu0 0.0
    %3972 = vmatprep.mubr.f32.mxu0 0.0
    %3973 = vmatmul.mubr.f32.gmra.mrb[0].mxu0 %v3903
    %v3974 = vpop.f32.mrb[0].mxu0
    %v3975 = vadd.f32 0.0, %v3974
    %v3976 = vpop.f32.mrb[0].mxu0
    %3977 = vdwg.mxu0
    %v3979 = vsel %vm408, %v3734, 0
    %v3982 = vsel %vm408, %v3609, 0
    %3984 = vmatprep.subr.mxu0 0.0
    %3985 = vmatpush1.xpose.msra.mxu0 %v3982
    %3986 = vmatprep.subr.mxu0 0.0
    %3987 = vmatpush1.xpose.msra.mxu0 0.0
    %3988 = vmatprep.subr.mxu0 0.0
    %3989 = vmatpush1.xpose.msra.mxu0 0.0
    %3990 = vmatprep.subr.mxu0 0.0
    %3991 = vmatpush1.xpose.msra.mxu0 0.0
    %3992 = vmatprep.subr.mxu0 0.0
    %3993 = vmatpush1.xpose.msra.mxu0 0.0
    %3994 = vmatprep.subr.mxu0 0.0
    %3995 = vmatpush1.xpose.msra.mxu0 0.0
    %3996 = vmatprep.subr.mxu0 0.0
    %3997 = vmatpush1.xpose.msra.mxu0 0.0
    %3998 = vmatprep.subr.mxu0 0.0
    %3999 = vmatpush1.xpose.msra.mxu0 0.0
    %4000 = vmatprep.subr.mxu0 0.0
    %4001 = vmatpush1.xpose.msra.mxu0 0.0
    %4002 = vmatprep.subr.mxu0 0.0
    %4003 = vmatpush1.xpose.msra.mxu0 0.0
    %4004 = vmatprep.subr.mxu0 0.0
    %4005 = vmatpush1.xpose.msra.mxu0 0.0
    %4006 = vmatprep.subr.mxu0 0.0
    %4007 = vmatpush1.xpose.msra.mxu0 0.0
    %4008 = vmatprep.subr.mxu0 0.0
    %4009 = vmatpush1.xpose.msra.mxu0 0.0
    %4010 = vmatprep.subr.mxu0 0.0
    %4011 = vmatpush1.xpose.msra.mxu0 0.0
    %4012 = vmatprep.subr.mxu0 0.0
    %4013 = vmatpush1.xpose.msra.mxu0 0.0
    %4014 = vmatprep.subr.mxu0 0.0
    %4015 = vmatpush1.xpose.msra.mxu0 0.0
    %4016 = vmatprep.subr.mxu0 0.0
    %4017 = vmatpush1.xpose.msra.mxu0 0.0
    %4018 = vmatprep.subr.mxu0 0.0
    %4019 = vmatpush1.xpose.msra.mxu0 0.0
    %4020 = vmatprep.subr.mxu0 0.0
    %4021 = vmatpush1.xpose.msra.mxu0 0.0
    %4022 = vmatprep.subr.mxu0 0.0
    %4023 = vmatpush1.xpose.msra.mxu0 0.0
    %4024 = vmatprep.subr.mxu0 0.0
    %4025 = vmatpush1.xpose.msra.mxu0 0.0
    %4026 = vmatprep.subr.mxu0 0.0
    %4027 = vmatpush1.xpose.msra.mxu0 0.0
    %4028 = vmatprep.subr.mxu0 0.0
    %4029 = vmatpush1.xpose.msra.mxu0 0.0
    %4030 = vmatprep.subr.mxu0 0.0
    %4031 = vmatpush1.xpose.msra.mxu0 0.0
    %4032 = vmatprep.subr.mxu0 0.0
    %4033 = vmatpush1.xpose.msra.mxu0 0.0
    %4034 = vmatprep.subr.mxu0 0.0
    %4035 = vmatpush1.xpose.msra.mxu0 0.0
    %4036 = vmatprep.subr.mxu0 0.0
    %4037 = vmatpush1.xpose.msra.mxu0 0.0
    %4038 = vmatprep.subr.mxu0 0.0
    %4039 = vmatpush1.xpose.msra.mxu0 0.0
    %4040 = vmatprep.subr.mxu0 0.0
    %4041 = vmatpush1.xpose.msra.mxu0 0.0
    %4042 = vmatprep.subr.mxu0 0.0
    %4043 = vmatpush1.xpose.msra.mxu0 0.0
    %4044 = vmatprep.subr.mxu0 0.0
    %4045 = vmatpush1.xpose.msra.mxu0 0.0
    %4046 = vmatprep.subr.mxu0 0.0
    %4047 = vmatpush1.xpose.msra.mxu0 0.0
    %4048 = vmatprep.mubr.f32.mxu0 0.0
    %4049 = vmatmul.mubr.f32.gmra.mrb[0].mxu0 %v3979
    %v4050 = vpop.f32.mrb[0].mxu0
    %v4051 = vadd.f32 0.0, %v4050
    %v4052 = vpop.f32.mrb[0].mxu0
    %4053 = vdwg.mxu0
    %4054 = vxpose.xlu0.b32.start [1/16] %v3823, 128
    %4055 = vxpose.xlu0.b32.cont [2/16] 0.0, 128
    %4056 = vxpose.xlu0.b32.cont [3/16] 0.0, 128
    %4057 = vxpose.xlu0.b32.cont [4/16] 0.0, 128
    %4058 = vxpose.xlu0.b32.cont [5/16] 0.0, 128
    %4059 = vxpose.xlu0.b32.cont [6/16] 0.0, 128
    %4060 = vxpose.xlu0.b32.cont [7/16] 0.0, 128
    %4061 = vxpose.xlu0.b32.cont [8/16] 0.0, 128
    %4062 = vxpose.xlu0.b32.cont [9/16] 0.0, 128
    %4063 = vxpose.xlu0.b32.cont [10/16] 0.0, 128
    %4064 = vxpose.xlu0.b32.cont [11/16] 0.0, 128
    %4065 = vxpose.xlu0.b32.cont [12/16] 0.0, 128
    %4066 = vxpose.xlu0.b32.cont [13/16] 0.0, 128
    %4067 = vxpose.xlu0.b32.cont [14/16] 0.0, 128
    %4068 = vxpose.xlu0.b32.cont [15/16] 0.0, 128
    %4069 = vxpose.xlu0.b32.end [16/16] 0.0, 128
    %v4070 = vpop.trf.xlu0
    %v4071 = vpop.trf.xlu0
    %v4072 = vpop.trf.xlu0
    %v4073 = vpop.trf.xlu0
    %v4074 = vpop.trf.xlu0
    %v4075 = vpop.trf.xlu0
    %v4076 = vpop.trf.xlu0
    %v4077 = vpop.trf.xlu0
    %v4078 = vpop.trf.xlu0
    %v4079 = vpop.trf.xlu0
    %v4080 = vpop.trf.xlu0
    %v4081 = vpop.trf.xlu0
    %v4082 = vpop.trf.xlu0
    %v4083 = vpop.trf.xlu0
    %v4084 = vpop.trf.xlu0
    %v4085 = vpop.trf.xlu0
    %4086 = vxpose.xlu0.b32.start [1/16] %v3899, 128
    %4087 = vxpose.xlu0.b32.cont [2/16] 0.0, 128
    %4088 = vxpose.xlu0.b32.cont [3/16] 0.0, 128
    %4089 = vxpose.xlu0.b32.cont [4/16] 0.0, 128
    %4090 = vxpose.xlu0.b32.cont [5/16] 0.0, 128
    %4091 = vxpose.xlu0.b32.cont [6/16] 0.0, 128
    %4092 = vxpose.xlu0.b32.cont [7/16] 0.0, 128
    %4093 = vxpose.xlu0.b32.cont [8/16] 0.0, 128
    %4094 = vxpose.xlu0.b32.cont [9/16] 0.0, 128
    %4095 = vxpose.xlu0.b32.cont [10/16] 0.0, 128
    %4096 = vxpose.xlu0.b32.cont [11/16] 0.0, 128
    %4097 = vxpose.xlu0.b32.cont [12/16] 0.0, 128
    %4098 = vxpose.xlu0.b32.cont [13/16] 0.0, 128
    %4099 = vxpose.xlu0.b32.cont [14/16] 0.0, 128
    %4100 = vxpose.xlu0.b32.cont [15/16] 0.0, 128
    %4101 = vxpose.xlu0.b32.end [16/16] 0.0, 128
    %v4102 = vpop.trf.xlu0
    %v4103 = vpop.trf.xlu0
    %v4104 = vpop.trf.xlu0
    %v4105 = vpop.trf.xlu0
    %v4106 = vpop.trf.xlu0
    %v4107 = vpop.trf.xlu0
    %v4108 = vpop.trf.xlu0
    %v4109 = vpop.trf.xlu0
    %v4110 = vpop.trf.xlu0
    %v4111 = vpop.trf.xlu0
    %v4112 = vpop.trf.xlu0
    %v4113 = vpop.trf.xlu0
    %v4114 = vpop.trf.xlu0
    %v4115 = vpop.trf.xlu0
    %v4116 = vpop.trf.xlu0
    %v4117 = vpop.trf.xlu0
    %4118 = vxpose.xlu0.b32.start [1/16] %v3975, 128
    %4119 = vxpose.xlu0.b32.cont [2/16] 0.0, 128
    %4120 = vxpose.xlu0.b32.cont [3/16] 0.0, 128
    %4121 = vxpose.xlu0.b32.cont [4/16] 0.0, 128
    %4122 = vxpose.xlu0.b32.cont [5/16] 0.0, 128
    %4123 = vxpose.xlu0.b32.cont [6/16] 0.0, 128
    %4124 = vxpose.xlu0.b32.cont [7/16] 0.0, 128
    %4125 = vxpose.xlu0.b32.cont [8/16] 0.0, 128
    %4126 = vxpose.xlu0.b32.cont [9/16] 0.0, 128
    %4127 = vxpose.xlu0.b32.cont [10/16] 0.0, 128
    %4128 = vxpose.xlu0.b32.cont [11/16] 0.0, 128
    %4129 = vxpose.xlu0.b32.cont [12/16] 0.0, 128
    %4130 = vxpose.xlu0.b32.cont [13/16] 0.0, 128
    %4131 = vxpose.xlu0.b32.cont [14/16] 0.0, 128
    %4132 = vxpose.xlu0.b32.cont [15/16] 0.0, 128
    %4133 = vxpose.xlu0.b32.end [16/16] 0.0, 128
    %v4134 = vpop.trf.xlu0
    %v4135 = vpop.trf.xlu0
    %v4136 = vpop.trf.xlu0
    %v4137 = vpop.trf.xlu0
    %v4138 = vpop.trf.xlu0
    %v4139 = vpop.trf.xlu0
    %v4140 = vpop.trf.xlu0
    %v4141 = vpop.trf.xlu0
    %v4142 = vpop.trf.xlu0
    %v4143 = vpop.trf.xlu0
    %v4144 = vpop.trf.xlu0
    %v4145 = vpop.trf.xlu0
    %v4146 = vpop.trf.xlu0
    %v4147 = vpop.trf.xlu0
    %v4148 = vpop.trf.xlu0
    %v4149 = vpop.trf.xlu0
    %4150 = vxpose.xlu0.b32.start [1/16] %v4051, 128
    %4151 = vxpose.xlu0.b32.cont [2/16] 0.0, 128
    %4152 = vxpose.xlu0.b32.cont [3/16] 0.0, 128
    %4153 = vxpose.xlu0.b32.cont [4/16] 0.0, 128
    %4154 = vxpose.xlu0.b32.cont [5/16] 0.0, 128
    %4155 = vxpose.xlu0.b32.cont [6/16] 0.0, 128
    %4156 = vxpose.xlu0.b32.cont [7/16] 0.0, 128
    %4157 = vxpose.xlu0.b32.cont [8/16] 0.0, 128
    %4158 = vxpose.xlu0.b32.cont [9/16] 0.0, 128
    %4159 = vxpose.xlu0.b32.cont [10/16] 0.0, 128
    %4160 = vxpose.xlu0.b32.cont [11/16] 0.0, 128
    %4161 = vxpose.xlu0.b32.cont [12/16] 0.0, 128
    %4162 = vxpose.xlu0.b32.cont [13/16] 0.0, 128
    %4163 = vxpose.xlu0.b32.cont [14/16] 0.0, 128
    %4164 = vxpose.xlu0.b32.cont [15/16] 0.0, 128
    %4165 = vxpose.xlu0.b32.end [16/16] 0.0, 128
    %v4166 = vpop.trf.xlu0
    %v4167 = vpop.trf.xlu0
    %v4168 = vpop.trf.xlu0
    %v4169 = vpop.trf.xlu0
    %v4170 = vpop.trf.xlu0
    %v4171 = vpop.trf.xlu0
    %v4172 = vpop.trf.xlu0
    %v4173 = vpop.trf.xlu0
    %v4174 = vpop.trf.xlu0
    %v4175 = vpop.trf.xlu0
    %v4176 = vpop.trf.xlu0
    %v4177 = vpop.trf.xlu0
    %v4178 = vpop.trf.xlu0
    %v4179 = vpop.trf.xlu0
    %v4180 = vpop.trf.xlu0
    %v4181 = vpop.trf.xlu0
    %v4182 = vcombine.low %v4070, %v4134
    %v4183 = vcombine.high %v4070, %v4134
    %v4185 = vunpack.c.l.s4 1983009808
    %v4186 = vunpack.c.0.s8 %v4185
    %v4187 = vlaneseq
    %v4188 = vshrl.u32 %v4187, 7
    %v4189 = vsub.s32 %v4186, %v4188
    %v4190 = vrot.slane %v4182, %v4189
    %v4192 = vunpack.c.l.s4 1983009808
    %v4193 = vunpack.c.0.s8 %v4192
    %v4194 = vlaneseq
    %v4195 = vshrl.u32 %v4194, 7
    %v4196 = vsub.s32 %v4193, %v4195
    %v4197 = vrot.slane %v4183, %v4196
    %v4198 = vcombine.low %v4102, %v4166
    %v4199 = vcombine.high %v4102, %v4166
    %v4201 = vunpack.c.l.s4 1983009808
    %v4202 = vunpack.c.0.s8 %v4201
    %v4203 = vlaneseq
    %v4204 = vshrl.u32 %v4203, 7
    %v4205 = vsub.s32 %v4202, %v4204
    %v4206 = vrot.slane %v4198, %v4205
    %v4208 = vunpack.c.l.s4 1983009808
    %v4209 = vunpack.c.0.s8 %v4208
    %v4210 = vlaneseq
    %v4211 = vshrl.u32 %v4210, 7
    %v4212 = vsub.s32 %v4209, %v4211
    %v4213 = vrot.slane %v4199, %v4212
    %v4214 = vcombine.low %v4190, %v4206
    %v4215 = vcombine.high %v4190, %v4206
    %v4217 = vunpack.c.l.s4 1934713408
    %v4218 = vunpack.c.0.s8 %v4217
    %v4219 = vlaneseq
    %v4220 = vshrl.u32 %v4219, 7
    %v4221 = vsub.s32 %v4218, %v4220
    %v4222 = vrot.slane %v4214, %v4221
    %v4224 = vunpack.c.l.s4 1934713408
    %v4225 = vunpack.c.0.s8 %v4224
    %v4226 = vlaneseq
    %v4227 = vshrl.u32 %v4226, 7
    %v4228 = vsub.s32 %v4225, %v4227
    %v4229 = vrot.slane %v4215, %v4228
    %v4230 = vcombine.low %v4197, %v4213
    %v4231 = vcombine.high %v4197, %v4213
    %v4233 = vunpack.c.l.s4 1934713408
    %v4234 = vunpack.c.0.s8 %v4233
    %v4235 = vlaneseq
    %v4236 = vshrl.u32 %v4235, 7
    %v4237 = vsub.s32 %v4234, %v4236
    %v4238 = vrot.slane %v4230, %v4237
    %v4240 = vunpack.c.l.s4 1934713408
    %v4241 = vunpack.c.0.s8 %v4240
    %v4242 = vlaneseq
    %v4243 = vshrl.u32 %v4242, 7
    %v4244 = vsub.s32 %v4241, %v4243
    %v4245 = vrot.slane %v4231, %v4244
    %v4246 = vcombine.high %v4222, 0.0
    %v4247 = vcombine.high %v4229, 0.0
    %v4248 = vcombine.high %v4238, 0.0
    %v4249 = vcombine.high %v4245, 0.0
    %v4250 = vcombine.low %v4222, %v4229
    %v4252 = vunpack.c.l.s4 1983009808
    %v4253 = vunpack.c.0.s8 %v4252
    %v4254 = vlaneseq
    %v4255 = vshrl.u32 %v4254, 7
    %v4256 = vsub.s32 %v4253, %v4255
    %v4257 = vrot.slane %v4250, %v4256
    %v4258 = vcombine.low %v4246, %v4247
    %v4260 = vunpack.c.l.s4 1983009808
    %v4261 = vunpack.c.0.s8 %v4260
    %v4262 = vlaneseq
    %v4263 = vshrl.u32 %v4262, 7
    %v4264 = vsub.s32 %v4261, %v4263
    %v4265 = vrot.slane %v4258, %v4264
    %v4266 = vcombine.low %v4238, %v4245
    %v4268 = vunpack.c.l.s4 1983009808
    %v4269 = vunpack.c.0.s8 %v4268
    %v4270 = vlaneseq
    %v4271 = vshrl.u32 %v4270, 7
    %v4272 = vsub.s32 %v4269, %v4271
    %v4273 = vrot.slane %v4266, %v4272
    %v4274 = vcombine.low %v4248, %v4249
    %v4276 = vunpack.c.l.s4 1983009808
    %v4277 = vunpack.c.0.s8 %v4276
    %v4278 = vlaneseq
    %v4279 = vshrl.u32 %v4278, 7
    %v4280 = vsub.s32 %v4277, %v4279
    %v4281 = vrot.slane %v4274, %v4280
    %v4282 = vcombine.low %v4257, %v4265
    %v4283 = vcombine.high %v4257, %v4265
    %v4285 = vunpack.c.l.s4 1934713408
    %v4286 = vunpack.c.0.s8 %v4285
    %v4287 = vlaneseq
    %v4288 = vshrl.u32 %v4287, 7
    %v4289 = vsub.s32 %v4286, %v4288
    %v4290 = vrot.slane %v4282, %v4289
    %v4292 = vunpack.c.l.s4 1934713408
    %v4293 = vunpack.c.0.s8 %v4292
    %v4294 = vlaneseq
    %v4295 = vshrl.u32 %v4294, 7
    %v4296 = vsub.s32 %v4293, %v4295
    %v4297 = vrot.slane %v4283, %v4296
    %v4298 = vcombine.low %v4273, %v4281
    %v4299 = vcombine.high %v4273, %v4281
    %v4301 = vunpack.c.l.s4 1934713408
    %v4302 = vunpack.c.0.s8 %v4301
    %v4303 = vlaneseq
    %v4304 = vshrl.u32 %v4303, 7
    %v4305 = vsub.s32 %v4302, %v4304
    %v4306 = vrot.slane %v4298, %v4305
    %v4308 = vunpack.c.l.s4 1934713408
    %v4309 = vunpack.c.0.s8 %v4308
    %v4310 = vlaneseq
    %v4311 = vshrl.u32 %v4310, 7
    %v4312 = vsub.s32 %v4309, %v4311
    %v4313 = vrot.slane %v4299, %v4312
    %v4314 = vcombine.low %v4290, %v4306
    %v4315 = vcombine.high %v4290, %v4306
    %v4316 = vcombine.low %v4297, %v4313
    %v4317 = vcombine.high %v4297, %v4313
    %4319 = vrot.lane.b32.xlu0 %v4315, 8
    %v4320 = vpop.permute.xlu0 %4319
    %4323 = vrot.lane.b32.xlu0 %v4316, 16
    %v4324 = vpop.permute.xlu0 %4323
    %4327 = vrot.lane.b32.xlu0 %v4317, 24
    %v4328 = vpop.permute.xlu0 %4327
    %v4330 = vsel %vm408, %v4314, %v4320
    %v4331 = vsel %vm1462, %v4330, %v4324
    %v4332 = vsel %vm1464, %v4331, %v4328
    %4334 = vrot.lane.b32.xlu0 %v3128, 120
    %v4335 = vpop.permute.xlu0 %4334
    %4336 = vrot.lane.b32.xlu0 %v3128, 112
    %v4337 = vpop.permute.xlu0 %4336
    %4338 = vrot.lane.b32.xlu0 %v3128, 104
    %v4339 = vpop.permute.xlu0 %4338
    %4340 = vrot.lane.b32.xlu0 %v3128, 96
    %v4341 = vpop.permute.xlu0 %4340
    %4342 = vrot.lane.b32.xlu0 %v4335, 96
    %v4343 = vpop.permute.xlu0 %4342
    %4344 = vrot.lane.b32.xlu0 %v4337, 96
    %v4345 = vpop.permute.xlu0 %4344
    %4346 = vrot.lane.b32.xlu0 %v4339, 96
    %v4347 = vpop.permute.xlu0 %4346
    %4352 = vxpose.xlu0.b32.start [1/16] %v4341, 128
    %4353 = vxpose.xlu0.b32.cont [2/16] 0.0, 128
    %4354 = vxpose.xlu0.b32.cont [3/16] 0.0, 128
    %4355 = vxpose.xlu0.b32.cont [4/16] 0.0, 128
    %4356 = vxpose.xlu0.b32.cont [5/16] 0.0, 128
    %4357 = vxpose.xlu0.b32.cont [6/16] 0.0, 128
    %4358 = vxpose.xlu0.b32.cont [7/16] 0.0, 128
    %4359 = vxpose.xlu0.b32.cont [8/16] 0.0, 128
    %4360 = vxpose.xlu0.b32.cont [9/16] 0.0, 128
    %4361 = vxpose.xlu0.b32.cont [10/16] 0.0, 128
    %4362 = vxpose.xlu0.b32.cont [11/16] 0.0, 128
    %4363 = vxpose.xlu0.b32.cont [12/16] 0.0, 128
    %4364 = vxpose.xlu0.b32.cont [13/16] 0.0, 128
    %4365 = vxpose.xlu0.b32.cont [14/16] 0.0, 128
    %4366 = vxpose.xlu0.b32.cont [15/16] 0.0, 128
    %4367 = vxpose.xlu0.b32.end [16/16] 0.0, 128
    %v4368 = vpop.trf.xlu0
    %v4369 = vpop.trf.xlu0
    %v4370 = vpop.trf.xlu0
    %v4371 = vpop.trf.xlu0
    %v4372 = vpop.trf.xlu0
    %v4373 = vpop.trf.xlu0
    %v4374 = vpop.trf.xlu0
    %v4375 = vpop.trf.xlu0
    %v4376 = vpop.trf.xlu0
    %v4377 = vpop.trf.xlu0
    %v4378 = vpop.trf.xlu0
    %v4379 = vpop.trf.xlu0
    %v4380 = vpop.trf.xlu0
    %v4381 = vpop.trf.xlu0
    %v4382 = vpop.trf.xlu0
    %v4383 = vpop.trf.xlu0
    %4384 = vxpose.xlu0.b32.start [1/16] %v4343, 128
    %4385 = vxpose.xlu0.b32.cont [2/16] 0.0, 128
    %4386 = vxpose.xlu0.b32.cont [3/16] 0.0, 128
    %4387 = vxpose.xlu0.b32.cont [4/16] 0.0, 128
    %4388 = vxpose.xlu0.b32.cont [5/16] 0.0, 128
    %4389 = vxpose.xlu0.b32.cont [6/16] 0.0, 128
    %4390 = vxpose.xlu0.b32.cont [7/16] 0.0, 128
    %4391 = vxpose.xlu0.b32.cont [8/16] 0.0, 128
    %4392 = vxpose.xlu0.b32.cont [9/16] 0.0, 128
    %4393 = vxpose.xlu0.b32.cont [10/16] 0.0, 128
    %4394 = vxpose.xlu0.b32.cont [11/16] 0.0, 128
    %4395 = vxpose.xlu0.b32.cont [12/16] 0.0, 128
    %4396 = vxpose.xlu0.b32.cont [13/16] 0.0, 128
    %4397 = vxpose.xlu0.b32.cont [14/16] 0.0, 128
    %4398 = vxpose.xlu0.b32.cont [15/16] 0.0, 128
    %4399 = vxpose.xlu0.b32.end [16/16] 0.0, 128
    %v4400 = vpop.trf.xlu0
    %v4401 = vpop.trf.xlu0
    %v4402 = vpop.trf.xlu0
    %v4403 = vpop.trf.xlu0
    %v4404 = vpop.trf.xlu0
    %v4405 = vpop.trf.xlu0
    %v4406 = vpop.trf.xlu0
    %v4407 = vpop.trf.xlu0
    %v4408 = vpop.trf.xlu0
    %v4409 = vpop.trf.xlu0
    %v4410 = vpop.trf.xlu0
    %v4411 = vpop.trf.xlu0
    %v4412 = vpop.trf.xlu0
    %v4413 = vpop.trf.xlu0
    %v4414 = vpop.trf.xlu0
    %v4415 = vpop.trf.xlu0
    %4416 = vxpose.xlu0.b32.start [1/16] %v4345, 128
    %4417 = vxpose.xlu0.b32.cont [2/16] 0.0, 128
    %4418 = vxpose.xlu0.b32.cont [3/16] 0.0, 128
    %4419 = vxpose.xlu0.b32.cont [4/16] 0.0, 128
    %4420 = vxpose.xlu0.b32.cont [5/16] 0.0, 128
    %4421 = vxpose.xlu0.b32.cont [6/16] 0.0, 128
    %4422 = vxpose.xlu0.b32.cont [7/16] 0.0, 128
    %4423 = vxpose.xlu0.b32.cont [8/16] 0.0, 128
    %4424 = vxpose.xlu0.b32.cont [9/16] 0.0, 128
    %4425 = vxpose.xlu0.b32.cont [10/16] 0.0, 128
    %4426 = vxpose.xlu0.b32.cont [11/16] 0.0, 128
    %4427 = vxpose.xlu0.b32.cont [12/16] 0.0, 128
    %4428 = vxpose.xlu0.b32.cont [13/16] 0.0, 128
    %4429 = vxpose.xlu0.b32.cont [14/16] 0.0, 128
    %4430 = vxpose.xlu0.b32.cont [15/16] 0.0, 128
    %4431 = vxpose.xlu0.b32.end [16/16] 0.0, 128
    %v4432 = vpop.trf.xlu0
    %v4433 = vpop.trf.xlu0
    %v4434 = vpop.trf.xlu0
    %v4435 = vpop.trf.xlu0
    %v4436 = vpop.trf.xlu0
    %v4437 = vpop.trf.xlu0
    %v4438 = vpop.trf.xlu0
    %v4439 = vpop.trf.xlu0
    %v4440 = vpop.trf.xlu0
    %v4441 = vpop.trf.xlu0
    %v4442 = vpop.trf.xlu0
    %v4443 = vpop.trf.xlu0
    %v4444 = vpop.trf.xlu0
    %v4445 = vpop.trf.xlu0
    %v4446 = vpop.trf.xlu0
    %v4447 = vpop.trf.xlu0
    %4448 = vxpose.xlu0.b32.start [1/16] %v4347, 128
    %4449 = vxpose.xlu0.b32.cont [2/16] 0.0, 128
    %4450 = vxpose.xlu0.b32.cont [3/16] 0.0, 128
    %4451 = vxpose.xlu0.b32.cont [4/16] 0.0, 128
    %4452 = vxpose.xlu0.b32.cont [5/16] 0.0, 128
    %4453 = vxpose.xlu0.b32.cont [6/16] 0.0, 128
    %4454 = vxpose.xlu0.b32.cont [7/16] 0.0, 128
    %4455 = vxpose.xlu0.b32.cont [8/16] 0.0, 128
    %4456 = vxpose.xlu0.b32.cont [9/16] 0.0, 128
    %4457 = vxpose.xlu0.b32.cont [10/16] 0.0, 128
    %4458 = vxpose.xlu0.b32.cont [11/16] 0.0, 128
    %4459 = vxpose.xlu0.b32.cont [12/16] 0.0, 128
    %4460 = vxpose.xlu0.b32.cont [13/16] 0.0, 128
    %4461 = vxpose.xlu0.b32.cont [14/16] 0.0, 128
    %4462 = vxpose.xlu0.b32.cont [15/16] 0.0, 128
    %4463 = vxpose.xlu0.b32.end [16/16] 0.0, 128
    %v4464 = vpop.trf.xlu0
    %v4465 = vpop.trf.xlu0
    %v4466 = vpop.trf.xlu0
    %v4467 = vpop.trf.xlu0
    %v4468 = vpop.trf.xlu0
    %v4469 = vpop.trf.xlu0
    %v4470 = vpop.trf.xlu0
    %v4471 = vpop.trf.xlu0
    %v4472 = vpop.trf.xlu0
    %v4473 = vpop.trf.xlu0
    %v4474 = vpop.trf.xlu0
    %v4475 = vpop.trf.xlu0
    %v4476 = vpop.trf.xlu0
    %v4477 = vpop.trf.xlu0
    %v4478 = vpop.trf.xlu0
    %v4479 = vpop.trf.xlu0
    %v4480 = vsel %vm408, %v3128, 0
    %4482 = vmatprep.subr.mxu0 0.0
    %4483 = vmatpush1.msra.mxu0 %v4368
    %4484 = vmatprep.subr.mxu0 0.0
    %4485 = vmatpush1.msra.mxu0 0.0
    %4486 = vmatprep.subr.mxu0 0.0
    %4487 = vmatpush1.msra.mxu0 0.0
    %4488 = vmatprep.subr.mxu0 0.0
    %4489 = vmatpush1.msra.mxu0 0.0
    %4490 = vmatprep.subr.mxu0 0.0
    %4491 = vmatpush1.msra.mxu0 0.0
    %4492 = vmatprep.subr.mxu0 0.0
    %4493 = vmatpush1.msra.mxu0 0.0
    %4494 = vmatprep.subr.mxu0 0.0
    %4495 = vmatpush1.msra.mxu0 0.0
    %4496 = vmatprep.subr.mxu0 0.0
    %4497 = vmatpush1.msra.mxu0 0.0
    %4498 = vmatprep.subr.mxu0 0.0
    %4499 = vmatpush1.msra.mxu0 0.0
    %4500 = vmatprep.subr.mxu0 0.0
    %4501 = vmatpush1.msra.mxu0 0.0
    %4502 = vmatprep.subr.mxu0 0.0
    %4503 = vmatpush1.msra.mxu0 0.0
    %4504 = vmatprep.subr.mxu0 0.0
    %4505 = vmatpush1.msra.mxu0 0.0
    %4506 = vmatprep.subr.mxu0 0.0
    %4507 = vmatpush1.msra.mxu0 0.0
    %4508 = vmatprep.subr.mxu0 0.0
    %4509 = vmatpush1.msra.mxu0 0.0
    %4510 = vmatprep.subr.mxu0 0.0
    %4511 = vmatpush1.msra.mxu0 0.0
    %4512 = vmatprep.subr.mxu0 0.0
    %4513 = vmatpush1.msra.mxu0 0.0
    %4514 = vmatprep.subr.mxu0 0.0
    %4515 = vmatpush1.msra.mxu0 0.0
    %4516 = vmatprep.subr.mxu0 0.0
    %4517 = vmatpush1.msra.mxu0 0.0
    %4518 = vmatprep.subr.mxu0 0.0
    %4519 = vmatpush1.msra.mxu0 0.0
    %4520 = vmatprep.subr.mxu0 0.0
    %4521 = vmatpush1.msra.mxu0 0.0
    %4522 = vmatprep.subr.mxu0 0.0
    %4523 = vmatpush1.msra.mxu0 0.0
    %4524 = vmatprep.subr.mxu0 0.0
    %4525 = vmatpush1.msra.mxu0 0.0
    %4526 = vmatprep.subr.mxu0 0.0
    %4527 = vmatpush1.msra.mxu0 0.0
    %4528 = vmatprep.subr.mxu0 0.0
    %4529 = vmatpush1.msra.mxu0 0.0
    %4530 = vmatprep.subr.mxu0 0.0
    %4531 = vmatpush1.msra.mxu0 0.0
    %4532 = vmatprep.subr.mxu0 0.0
    %4533 = vmatpush1.msra.mxu0 0.0
    %4534 = vmatprep.subr.mxu0 0.0
    %4535 = vmatpush1.msra.mxu0 0.0
    %4536 = vmatprep.subr.mxu0 0.0
    %4537 = vmatpush1.msra.mxu0 0.0
    %4538 = vmatprep.subr.mxu0 0.0
    %4539 = vmatpush1.msra.mxu0 0.0
    %4540 = vmatprep.subr.mxu0 0.0
    %4541 = vmatpush1.msra.mxu0 0.0
    %4542 = vmatprep.subr.mxu0 0.0
    %4543 = vmatpush1.msra.mxu0 0.0
    %4544 = vmatprep.subr.mxu0 0.0
    %4545 = vmatpush1.msra.mxu0 0.0
    %4546 = vmatprep.mubr.f32.mxu0 0.0
    %4547 = vmatmul.mubr.f32.gmra.mrb[0].mxu0 %v4480
    %v4548 = vpop.f32.mrb[0].mxu0
    %v4549 = vadd.f32 %v1476, %v4548
    %v4550 = vpop.f32.mrb[0].mxu0
    %4551 = vdwg.mxu0
    %v4552 = vsel %vm408, %v4335, 0
    %4554 = vmatprep.subr.mxu0 0.0
    %4555 = vmatpush1.msra.mxu0 %v4400
    %4556 = vmatprep.subr.mxu0 0.0
    %4557 = vmatpush1.msra.mxu0 0.0
    %4558 = vmatprep.subr.mxu0 0.0
    %4559 = vmatpush1.msra.mxu0 0.0
    %4560 = vmatprep.subr.mxu0 0.0
    %4561 = vmatpush1.msra.mxu0 0.0
    %4562 = vmatprep.subr.mxu0 0.0
    %4563 = vmatpush1.msra.mxu0 0.0
    %4564 = vmatprep.subr.mxu0 0.0
    %4565 = vmatpush1.msra.mxu0 0.0
    %4566 = vmatprep.subr.mxu0 0.0
    %4567 = vmatpush1.msra.mxu0 0.0
    %4568 = vmatprep.subr.mxu0 0.0
    %4569 = vmatpush1.msra.mxu0 0.0
    %4570 = vmatprep.subr.mxu0 0.0
    %4571 = vmatpush1.msra.mxu0 0.0
    %4572 = vmatprep.subr.mxu0 0.0
    %4573 = vmatpush1.msra.mxu0 0.0
    %4574 = vmatprep.subr.mxu0 0.0
    %4575 = vmatpush1.msra.mxu0 0.0
    %4576 = vmatprep.subr.mxu0 0.0
    %4577 = vmatpush1.msra.mxu0 0.0
    %4578 = vmatprep.subr.mxu0 0.0
    %4579 = vmatpush1.msra.mxu0 0.0
    %4580 = vmatprep.subr.mxu0 0.0
    %4581 = vmatpush1.msra.mxu0 0.0
    %4582 = vmatprep.subr.mxu0 0.0
    %4583 = vmatpush1.msra.mxu0 0.0
    %4584 = vmatprep.subr.mxu0 0.0
    %4585 = vmatpush1.msra.mxu0 0.0
    %4586 = vmatprep.subr.mxu0 0.0
    %4587 = vmatpush1.msra.mxu0 0.0
    %4588 = vmatprep.subr.mxu0 0.0
    %4589 = vmatpush1.msra.mxu0 0.0
    %4590 = vmatprep.subr.mxu0 0.0
    %4591 = vmatpush1.msra.mxu0 0.0
    %4592 = vmatprep.subr.mxu0 0.0
    %4593 = vmatpush1.msra.mxu0 0.0
    %4594 = vmatprep.subr.mxu0 0.0
    %4595 = vmatpush1.msra.mxu0 0.0
    %4596 = vmatprep.subr.mxu0 0.0
    %4597 = vmatpush1.msra.mxu0 0.0
    %4598 = vmatprep.subr.mxu0 0.0
    %4599 = vmatpush1.msra.mxu0 0.0
    %4600 = vmatprep.subr.mxu0 0.0
    %4601 = vmatpush1.msra.mxu0 0.0
    %4602 = vmatprep.subr.mxu0 0.0
    %4603 = vmatpush1.msra.mxu0 0.0
    %4604 = vmatprep.subr.mxu0 0.0
    %4605 = vmatpush1.msra.mxu0 0.0
    %4606 = vmatprep.subr.mxu0 0.0
    %4607 = vmatpush1.msra.mxu0 0.0
    %4608 = vmatprep.subr.mxu0 0.0
    %4609 = vmatpush1.msra.mxu0 0.0
    %4610 = vmatprep.subr.mxu0 0.0
    %4611 = vmatpush1.msra.mxu0 0.0
    %4612 = vmatprep.subr.mxu0 0.0
    %4613 = vmatpush1.msra.mxu0 0.0
    %4614 = vmatprep.subr.mxu0 0.0
    %4615 = vmatpush1.msra.mxu0 0.0
    %4616 = vmatprep.subr.mxu0 0.0
    %4617 = vmatpush1.msra.mxu0 0.0
    %4618 = vmatprep.mubr.f32.mxu0 0.0
    %4619 = vmatmul.mubr.f32.gmra.mrb[0].mxu0 %v4552
    %v4620 = vpop.f32.mrb[0].mxu0
    %v4621 = vadd.f32 %v1476, %v4620
    %v4622 = vpop.f32.mrb[0].mxu0
    %4623 = vdwg.mxu0
    %v4624 = vsel %vm408, %v4337, 0
    %4626 = vmatprep.subr.mxu0 0.0
    %4627 = vmatpush1.msra.mxu0 %v4432
    %4628 = vmatprep.subr.mxu0 0.0
    %4629 = vmatpush1.msra.mxu0 0.0
    %4630 = vmatprep.subr.mxu0 0.0
    %4631 = vmatpush1.msra.mxu0 0.0
    %4632 = vmatprep.subr.mxu0 0.0
    %4633 = vmatpush1.msra.mxu0 0.0
    %4634 = vmatprep.subr.mxu0 0.0
    %4635 = vmatpush1.msra.mxu0 0.0
    %4636 = vmatprep.subr.mxu0 0.0
    %4637 = vmatpush1.msra.mxu0 0.0
    %4638 = vmatprep.subr.mxu0 0.0
    %4639 = vmatpush1.msra.mxu0 0.0
    %4640 = vmatprep.subr.mxu0 0.0
    %4641 = vmatpush1.msra.mxu0 0.0
    %4642 = vmatprep.subr.mxu0 0.0
    %4643 = vmatpush1.msra.mxu0 0.0
    %4644 = vmatprep.subr.mxu0 0.0
    %4645 = vmatpush1.msra.mxu0 0.0
    %4646 = vmatprep.subr.mxu0 0.0
    %4647 = vmatpush1.msra.mxu0 0.0
    %4648 = vmatprep.subr.mxu0 0.0
    %4649 = vmatpush1.msra.mxu0 0.0
    %4650 = vmatprep.subr.mxu0 0.0
    %4651 = vmatpush1.msra.mxu0 0.0
    %4652 = vmatprep.subr.mxu0 0.0
    %4653 = vmatpush1.msra.mxu0 0.0
    %4654 = vmatprep.subr.mxu0 0.0
    %4655 = vmatpush1.msra.mxu0 0.0
    %4656 = vmatprep.subr.mxu0 0.0
    %4657 = vmatpush1.msra.mxu0 0.0
    %4658 = vmatprep.subr.mxu0 0.0
    %4659 = vmatpush1.msra.mxu0 0.0
    %4660 = vmatprep.subr.mxu0 0.0
    %4661 = vmatpush1.msra.mxu0 0.0
    %4662 = vmatprep.subr.mxu0 0.0
    %4663 = vmatpush1.msra.mxu0 0.0
    %4664 = vmatprep.subr.mxu0 0.0
    %4665 = vmatpush1.msra.mxu0 0.0
    %4666 = vmatprep.subr.mxu0 0.0
    %4667 = vmatpush1.msra.mxu0 0.0
    %4668 = vmatprep.subr.mxu0 0.0
    %4669 = vmatpush1.msra.mxu0 0.0
    %4670 = vmatprep.subr.mxu0 0.0
    %4671 = vmatpush1.msra.mxu0 0.0
    %4672 = vmatprep.subr.mxu0 0.0
    %4673 = vmatpush1.msra.mxu0 0.0
    %4674 = vmatprep.subr.mxu0 0.0
    %4675 = vmatpush1.msra.mxu0 0.0
    %4676 = vmatprep.subr.mxu0 0.0
    %4677 = vmatpush1.msra.mxu0 0.0
    %4678 = vmatprep.subr.mxu0 0.0
    %4679 = vmatpush1.msra.mxu0 0.0
    %4680 = vmatprep.subr.mxu0 0.0
    %4681 = vmatpush1.msra.mxu0 0.0
    %4682 = vmatprep.subr.mxu0 0.0
    %4683 = vmatpush1.msra.mxu0 0.0
    %4684 = vmatprep.subr.mxu0 0.0
    %4685 = vmatpush1.msra.mxu0 0.0
    %4686 = vmatprep.subr.mxu0 0.0
    %4687 = vmatpush1.msra.mxu0 0.0
    %4688 = vmatprep.subr.mxu0 0.0
    %4689 = vmatpush1.msra.mxu0 0.0
    %4690 = vmatprep.mubr.f32.mxu0 0.0
    %4691 = vmatmul.mubr.f32.gmra.mrb[0].mxu0 %v4624
    %v4692 = vpop.f32.mrb[0].mxu0
    %v4693 = vadd.f32 %v1476, %v4692
    %v4694 = vpop.f32.mrb[0].mxu0
    %4695 = vdwg.mxu0
    %v4696 = vsel %vm408, %v4339, 0
    %4698 = vmatprep.subr.mxu0 0.0
    %4699 = vmatpush1.msra.mxu0 %v4464
    %4700 = vmatprep.subr.mxu0 0.0
    %4701 = vmatpush1.msra.mxu0 0.0
    %4702 = vmatprep.subr.mxu0 0.0
    %4703 = vmatpush1.msra.mxu0 0.0
    %4704 = vmatprep.subr.mxu0 0.0
    %4705 = vmatpush1.msra.mxu0 0.0
    %4706 = vmatprep.subr.mxu0 0.0
    %4707 = vmatpush1.msra.mxu0 0.0
    %4708 = vmatprep.subr.mxu0 0.0
    %4709 = vmatpush1.msra.mxu0 0.0
    %4710 = vmatprep.subr.mxu0 0.0
    %4711 = vmatpush1.msra.mxu0 0.0
    %4712 = vmatprep.subr.mxu0 0.0
    %4713 = vmatpush1.msra.mxu0 0.0
    %4714 = vmatprep.subr.mxu0 0.0
    %4715 = vmatpush1.msra.mxu0 0.0
    %4716 = vmatprep.subr.mxu0 0.0
    %4717 = vmatpush1.msra.mxu0 0.0
    %4718 = vmatprep.subr.mxu0 0.0
    %4719 = vmatpush1.msra.mxu0 0.0
    %4720 = vmatprep.subr.mxu0 0.0
    %4721 = vmatpush1.msra.mxu0 0.0
    %4722 = vmatprep.subr.mxu0 0.0
    %4723 = vmatpush1.msra.mxu0 0.0
    %4724 = vmatprep.subr.mxu0 0.0
    %4725 = vmatpush1.msra.mxu0 0.0
    %4726 = vmatprep.subr.mxu0 0.0
    %4727 = vmatpush1.msra.mxu0 0.0
    %4728 = vmatprep.subr.mxu0 0.0
    %4729 = vmatpush1.msra.mxu0 0.0
    %4730 = vmatprep.subr.mxu0 0.0
    %4731 = vmatpush1.msra.mxu0 0.0
    %4732 = vmatprep.subr.mxu0 0.0
    %4733 = vmatpush1.msra.mxu0 0.0
    %4734 = vmatprep.subr.mxu0 0.0
    %4735 = vmatpush1.msra.mxu0 0.0
    %4736 = vmatprep.subr.mxu0 0.0
    %4737 = vmatpush1.msra.mxu0 0.0
    %4738 = vmatprep.subr.mxu0 0.0
    %4739 = vmatpush1.msra.mxu0 0.0
    %4740 = vmatprep.subr.mxu0 0.0
    %4741 = vmatpush1.msra.mxu0 0.0
    %4742 = vmatprep.subr.mxu0 0.0
    %4743 = vmatpush1.msra.mxu0 0.0
    %4744 = vmatprep.subr.mxu0 0.0
    %4745 = vmatpush1.msra.mxu0 0.0
    %4746 = vmatprep.subr.mxu0 0.0
    %4747 = vmatpush1.msra.mxu0 0.0
    %4748 = vmatprep.subr.mxu0 0.0
    %4749 = vmatpush1.msra.mxu0 0.0
    %4750 = vmatprep.subr.mxu0 0.0
    %4751 = vmatpush1.msra.mxu0 0.0
    %4752 = vmatprep.subr.mxu0 0.0
    %4753 = vmatpush1.msra.mxu0 0.0
    %4754 = vmatprep.subr.mxu0 0.0
    %4755 = vmatpush1.msra.mxu0 0.0
    %4756 = vmatprep.subr.mxu0 0.0
    %4757 = vmatpush1.msra.mxu0 0.0
    %4758 = vmatprep.subr.mxu0 0.0
    %4759 = vmatpush1.msra.mxu0 0.0
    %4760 = vmatprep.subr.mxu0 0.0
    %4761 = vmatpush1.msra.mxu0 0.0
    %4762 = vmatprep.mubr.f32.mxu0 0.0
    %4763 = vmatmul.mubr.f32.gmra.mrb[0].mxu0 %v4696
    %v4764 = vpop.f32.mrb[0].mxu0
    %v4765 = vadd.f32 %v1476, %v4764
    %v4766 = vpop.f32.mrb[0].mxu0
    %4767 = vdwg.mxu0
    %v4768 = vsel %vm408, %v4549, -inf
    %4769 = vmax.xlane.f32.xlu0 %v4768
    %v4770 = vpop.xlane.xlu0 %4769
    %v4771 = vsel %vm408, %v4621, -inf
    %4772 = vmax.xlane.f32.xlu0 %v4771
    %v4773 = vpop.xlane.xlu0 %4772
    %v4774 = vsel %vm408, %v4693, -inf
    %4775 = vmax.xlane.f32.xlu0 %v4774
    %v4776 = vpop.xlane.xlu0 %4775
    %v4777 = vsel %vm408, %v4765, -inf
    %4778 = vmax.xlane.f32.xlu0 %v4777
    %v4779 = vpop.xlane.xlu0 %4778
    %v4780 = vsub.f32 %v4549, %v4770
    %v4781 = vsub.f32 %v4621, %v4773
    %v4782 = vsub.f32 %v4693, %v4776
    %v4783 = vsub.f32 %v4765, %v4779
    %v4784 = vmul.f32 %v4780, 1.442695
    %v4785 = vpow.pop %v4784
    %v4786 = vmul.f32 %v4781, 1.442695
    %v4787 = vpow.pop %v4786
    %v4788 = vmul.f32 %v4782, 1.442695
    %v4789 = vpow.pop %v4788
    %v4790 = vmul.f32 %v4783, 1.442695
    %v4791 = vpow.pop %v4790
    %v4792 = vsel %vm408, %v4785, 0.0
    %4793 = vadd.xlane.f32.xlu0 %v4792
    %v4794 = vpop.xlane.xlu0 %4793
    %v4795 = vsel %vm408, %v4787, 0.0
    %4796 = vadd.xlane.f32.xlu0 %v4795
    %v4797 = vpop.xlane.xlu0 %4796
    %v4798 = vsel %vm408, %v4789, 0.0
    %4799 = vadd.xlane.f32.xlu0 %v4798
    %v4800 = vpop.xlane.xlu0 %4799
    %v4801 = vsel %vm408, %v4791, 0.0
    %4802 = vadd.xlane.f32.xlu0 %v4801
    %v4803 = vpop.xlane.xlu0 %4802
    %v4804 = vrcp.pop %v4794
    %v4805 = vrcp.pop %v4797
    %v4806 = vrcp.pop %v4800
    %v4807 = vrcp.pop %v4803
    %v4808 = vmul.f32 %v4785, %v4804
    %v4809 = vmul.f32 %v4787, %v4805
    %v4810 = vmul.f32 %v4789, %v4806
    %v4811 = vmul.f32 %v4791, %v4807
    %4812 = vrot.lane.b32.xlu0 %v3128, 64
    %v4813 = vpop.permute.xlu0 %4812
    %4814 = vrot.lane.b32.xlu0 %v4335, 64
    %v4815 = vpop.permute.xlu0 %4814
    %4816 = vrot.lane.b32.xlu0 %v4337, 64
    %v4817 = vpop.permute.xlu0 %4816
    %4818 = vrot.lane.b32.xlu0 %v4339, 64
    %v4819 = vpop.permute.xlu0 %4818
    %4824 = vxpose.xlu0.b32.start [1/16] %v4813, 128
    %4825 = vxpose.xlu0.b32.cont [2/16] 0.0, 128
    %4826 = vxpose.xlu0.b32.cont [3/16] 0.0, 128
    %4827 = vxpose.xlu0.b32.cont [4/16] 0.0, 128
    %4828 = vxpose.xlu0.b32.cont [5/16] 0.0, 128
    %4829 = vxpose.xlu0.b32.cont [6/16] 0.0, 128
    %4830 = vxpose.xlu0.b32.cont [7/16] 0.0, 128
    %4831 = vxpose.xlu0.b32.cont [8/16] 0.0, 128
    %4832 = vxpose.xlu0.b32.cont [9/16] 0.0, 128
    %4833 = vxpose.xlu0.b32.cont [10/16] 0.0, 128
    %4834 = vxpose.xlu0.b32.cont [11/16] 0.0, 128
    %4835 = vxpose.xlu0.b32.cont [12/16] 0.0, 128
    %4836 = vxpose.xlu0.b32.cont [13/16] 0.0, 128
    %4837 = vxpose.xlu0.b32.cont [14/16] 0.0, 128
    %4838 = vxpose.xlu0.b32.cont [15/16] 0.0, 128
    %4839 = vxpose.xlu0.b32.end [16/16] 0.0, 128
    %v4840 = vpop.trf.xlu0
    %v4841 = vpop.trf.xlu0
    %v4842 = vpop.trf.xlu0
    %v4843 = vpop.trf.xlu0
    %v4844 = vpop.trf.xlu0
    %v4845 = vpop.trf.xlu0
    %v4846 = vpop.trf.xlu0
    %v4847 = vpop.trf.xlu0
    %v4848 = vpop.trf.xlu0
    %v4849 = vpop.trf.xlu0
    %v4850 = vpop.trf.xlu0
    %v4851 = vpop.trf.xlu0
    %v4852 = vpop.trf.xlu0
    %v4853 = vpop.trf.xlu0
    %v4854 = vpop.trf.xlu0
    %v4855 = vpop.trf.xlu0
    %4856 = vxpose.xlu0.b32.start [1/16] %v4815, 128
    %4857 = vxpose.xlu0.b32.cont [2/16] 0.0, 128
    %4858 = vxpose.xlu0.b32.cont [3/16] 0.0, 128
    %4859 = vxpose.xlu0.b32.cont [4/16] 0.0, 128
    %4860 = vxpose.xlu0.b32.cont [5/16] 0.0, 128
    %4861 = vxpose.xlu0.b32.cont [6/16] 0.0, 128
    %4862 = vxpose.xlu0.b32.cont [7/16] 0.0, 128
    %4863 = vxpose.xlu0.b32.cont [8/16] 0.0, 128
    %4864 = vxpose.xlu0.b32.cont [9/16] 0.0, 128
    %4865 = vxpose.xlu0.b32.cont [10/16] 0.0, 128
    %4866 = vxpose.xlu0.b32.cont [11/16] 0.0, 128
    %4867 = vxpose.xlu0.b32.cont [12/16] 0.0, 128
    %4868 = vxpose.xlu0.b32.cont [13/16] 0.0, 128
    %4869 = vxpose.xlu0.b32.cont [14/16] 0.0, 128
    %4870 = vxpose.xlu0.b32.cont [15/16] 0.0, 128
    %4871 = vxpose.xlu0.b32.end [16/16] 0.0, 128
    %v4872 = vpop.trf.xlu0
    %v4873 = vpop.trf.xlu0
    %v4874 = vpop.trf.xlu0
    %v4875 = vpop.trf.xlu0
    %v4876 = vpop.trf.xlu0
    %v4877 = vpop.trf.xlu0
    %v4878 = vpop.trf.xlu0
    %v4879 = vpop.trf.xlu0
    %v4880 = vpop.trf.xlu0
    %v4881 = vpop.trf.xlu0
    %v4882 = vpop.trf.xlu0
    %v4883 = vpop.trf.xlu0
    %v4884 = vpop.trf.xlu0
    %v4885 = vpop.trf.xlu0
    %v4886 = vpop.trf.xlu0
    %v4887 = vpop.trf.xlu0
    %4888 = vxpose.xlu0.b32.start [1/16] %v4817, 128
    %4889 = vxpose.xlu0.b32.cont [2/16] 0.0, 128
    %4890 = vxpose.xlu0.b32.cont [3/16] 0.0, 128
    %4891 = vxpose.xlu0.b32.cont [4/16] 0.0, 128
    %4892 = vxpose.xlu0.b32.cont [5/16] 0.0, 128
    %4893 = vxpose.xlu0.b32.cont [6/16] 0.0, 128
    %4894 = vxpose.xlu0.b32.cont [7/16] 0.0, 128
    %4895 = vxpose.xlu0.b32.cont [8/16] 0.0, 128
    %4896 = vxpose.xlu0.b32.cont [9/16] 0.0, 128
    %4897 = vxpose.xlu0.b32.cont [10/16] 0.0, 128
    %4898 = vxpose.xlu0.b32.cont [11/16] 0.0, 128
    %4899 = vxpose.xlu0.b32.cont [12/16] 0.0, 128
    %4900 = vxpose.xlu0.b32.cont [13/16] 0.0, 128
    %4901 = vxpose.xlu0.b32.cont [14/16] 0.0, 128
    %4902 = vxpose.xlu0.b32.cont [15/16] 0.0, 128
    %4903 = vxpose.xlu0.b32.end [16/16] 0.0, 128
    %v4904 = vpop.trf.xlu0
    %v4905 = vpop.trf.xlu0
    %v4906 = vpop.trf.xlu0
    %v4907 = vpop.trf.xlu0
    %v4908 = vpop.trf.xlu0
    %v4909 = vpop.trf.xlu0
    %v4910 = vpop.trf.xlu0
    %v4911 = vpop.trf.xlu0
    %v4912 = vpop.trf.xlu0
    %v4913 = vpop.trf.xlu0
    %v4914 = vpop.trf.xlu0
    %v4915 = vpop.trf.xlu0
    %v4916 = vpop.trf.xlu0
    %v4917 = vpop.trf.xlu0
    %v4918 = vpop.trf.xlu0
    %v4919 = vpop.trf.xlu0
    %4920 = vxpose.xlu0.b32.start [1/16] %v4819, 128
    %4921 = vxpose.xlu0.b32.cont [2/16] 0.0, 128
    %4922 = vxpose.xlu0.b32.cont [3/16] 0.0, 128
    %4923 = vxpose.xlu0.b32.cont [4/16] 0.0, 128
    %4924 = vxpose.xlu0.b32.cont [5/16] 0.0, 128
    %4925 = vxpose.xlu0.b32.cont [6/16] 0.0, 128
    %4926 = vxpose.xlu0.b32.cont [7/16] 0.0, 128
    %4927 = vxpose.xlu0.b32.cont [8/16] 0.0, 128
    %4928 = vxpose.xlu0.b32.cont [9/16] 0.0, 128
    %4929 = vxpose.xlu0.b32.cont [10/16] 0.0, 128
    %4930 = vxpose.xlu0.b32.cont [11/16] 0.0, 128
    %4931 = vxpose.xlu0.b32.cont [12/16] 0.0, 128
    %4932 = vxpose.xlu0.b32.cont [13/16] 0.0, 128
    %4933 = vxpose.xlu0.b32.cont [14/16] 0.0, 128
    %4934 = vxpose.xlu0.b32.cont [15/16] 0.0, 128
    %4935 = vxpose.xlu0.b32.end [16/16] 0.0, 128
    %v4936 = vpop.trf.xlu0
    %v4937 = vpop.trf.xlu0
    %v4938 = vpop.trf.xlu0
    %v4939 = vpop.trf.xlu0
    %v4940 = vpop.trf.xlu0
    %v4941 = vpop.trf.xlu0
    %v4942 = vpop.trf.xlu0
    %v4943 = vpop.trf.xlu0
    %v4944 = vpop.trf.xlu0
    %v4945 = vpop.trf.xlu0
    %v4946 = vpop.trf.xlu0
    %v4947 = vpop.trf.xlu0
    %v4948 = vpop.trf.xlu0
    %v4949 = vpop.trf.xlu0
    %v4950 = vpop.trf.xlu0
    %v4951 = vpop.trf.xlu0
    %v4953 = vsel %vm408, %v4840, 0
    %v4956 = vsel %vm408, %v4808, 0
    %4958 = vmatprep.subr.mxu0 0.0
    %4959 = vmatpush1.xpose.msra.mxu0 %v4956
    %4960 = vmatprep.subr.mxu0 0.0
    %4961 = vmatpush1.xpose.msra.mxu0 0.0
    %4962 = vmatprep.subr.mxu0 0.0
    %4963 = vmatpush1.xpose.msra.mxu0 0.0
    %4964 = vmatprep.subr.mxu0 0.0
    %4965 = vmatpush1.xpose.msra.mxu0 0.0
    %4966 = vmatprep.subr.mxu0 0.0
    %4967 = vmatpush1.xpose.msra.mxu0 0.0
    %4968 = vmatprep.subr.mxu0 0.0
    %4969 = vmatpush1.xpose.msra.mxu0 0.0
    %4970 = vmatprep.subr.mxu0 0.0
    %4971 = vmatpush1.xpose.msra.mxu0 0.0
    %4972 = vmatprep.subr.mxu0 0.0
    %4973 = vmatpush1.xpose.msra.mxu0 0.0
    %4974 = vmatprep.subr.mxu0 0.0
    %4975 = vmatpush1.xpose.msra.mxu0 0.0
    %4976 = vmatprep.subr.mxu0 0.0
    %4977 = vmatpush1.xpose.msra.mxu0 0.0
    %4978 = vmatprep.subr.mxu0 0.0
    %4979 = vmatpush1.xpose.msra.mxu0 0.0
    %4980 = vmatprep.subr.mxu0 0.0
    %4981 = vmatpush1.xpose.msra.mxu0 0.0
    %4982 = vmatprep.subr.mxu0 0.0
    %4983 = vmatpush1.xpose.msra.mxu0 0.0
    %4984 = vmatprep.subr.mxu0 0.0
    %4985 = vmatpush1.xpose.msra.mxu0 0.0
    %4986 = vmatprep.subr.mxu0 0.0
    %4987 = vmatpush1.xpose.msra.mxu0 0.0
    %4988 = vmatprep.subr.mxu0 0.0
    %4989 = vmatpush1.xpose.msra.mxu0 0.0
    %4990 = vmatprep.subr.mxu0 0.0
    %4991 = vmatpush1.xpose.msra.mxu0 0.0
    %4992 = vmatprep.subr.mxu0 0.0
    %4993 = vmatpush1.xpose.msra.mxu0 0.0
    %4994 = vmatprep.subr.mxu0 0.0
    %4995 = vmatpush1.xpose.msra.mxu0 0.0
    %4996 = vmatprep.subr.mxu0 0.0
    %4997 = vmatpush1.xpose.msra.mxu0 0.0
    %4998 = vmatprep.subr.mxu0 0.0
    %4999 = vmatpush1.xpose.msra.mxu0 0.0
    %5000 = vmatprep.subr.mxu0 0.0
    %5001 = vmatpush1.xpose.msra.mxu0 0.0
    %5002 = vmatprep.subr.mxu0 0.0
    %5003 = vmatpush1.xpose.msra.mxu0 0.0
    %5004 = vmatprep.subr.mxu0 0.0
    %5005 = vmatpush1.xpose.msra.mxu0 0.0
    %5006 = vmatprep.subr.mxu0 0.0
    %5007 = vmatpush1.xpose.msra.mxu0 0.0
    %5008 = vmatprep.subr.mxu0 0.0
    %5009 = vmatpush1.xpose.msra.mxu0 0.0
    %5010 = vmatprep.subr.mxu0 0.0
    %5011 = vmatpush1.xpose.msra.mxu0 0.0
    %5012 = vmatprep.subr.mxu0 0.0
    %5013 = vmatpush1.xpose.msra.mxu0 0.0
    %5014 = vmatprep.subr.mxu0 0.0
    %5015 = vmatpush1.xpose.msra.mxu0 0.0
    %5016 = vmatprep.subr.mxu0 0.0
    %5017 = vmatpush1.xpose.msra.mxu0 0.0
    %5018 = vmatprep.subr.mxu0 0.0
    %5019 = vmatpush1.xpose.msra.mxu0 0.0
    %5020 = vmatprep.subr.mxu0 0.0
    %5021 = vmatpush1.xpose.msra.mxu0 0.0
    %5022 = vmatprep.mubr.f32.mxu0 0.0
    %5023 = vmatmul.mubr.f32.gmra.mrb[0].mxu0 %v4953
    %v5024 = vpop.f32.mrb[0].mxu0
    %v5025 = vadd.f32 0.0, %v5024
    %v5026 = vpop.f32.mrb[0].mxu0
    %5027 = vdwg.mxu0
    %v5029 = vsel %vm408, %v4872, 0
    %v5032 = vsel %vm408, %v4809, 0
    %5034 = vmatprep.subr.mxu0 0.0
    %5035 = vmatpush1.xpose.msra.mxu0 %v5032
    %5036 = vmatprep.subr.mxu0 0.0
    %5037 = vmatpush1.xpose.msra.mxu0 0.0
    %5038 = vmatprep.subr.mxu0 0.0
    %5039 = vmatpush1.xpose.msra.mxu0 0.0
    %5040 = vmatprep.subr.mxu0 0.0
    %5041 = vmatpush1.xpose.msra.mxu0 0.0
    %5042 = vmatprep.subr.mxu0 0.0
    %5043 = vmatpush1.xpose.msra.mxu0 0.0
    %5044 = vmatprep.subr.mxu0 0.0
    %5045 = vmatpush1.xpose.msra.mxu0 0.0
    %5046 = vmatprep.subr.mxu0 0.0
    %5047 = vmatpush1.xpose.msra.mxu0 0.0
    %5048 = vmatprep.subr.mxu0 0.0
    %5049 = vmatpush1.xpose.msra.mxu0 0.0
    %5050 = vmatprep.subr.mxu0 0.0
    %5051 = vmatpush1.xpose.msra.mxu0 0.0
    %5052 = vmatprep.subr.mxu0 0.0
    %5053 = vmatpush1.xpose.msra.mxu0 0.0
    %5054 = vmatprep.subr.mxu0 0.0
    %5055 = vmatpush1.xpose.msra.mxu0 0.0
    %5056 = vmatprep.subr.mxu0 0.0
    %5057 = vmatpush1.xpose.msra.mxu0 0.0
    %5058 = vmatprep.subr.mxu0 0.0
    %5059 = vmatpush1.xpose.msra.mxu0 0.0
    %5060 = vmatprep.subr.mxu0 0.0
    %5061 = vmatpush1.xpose.msra.mxu0 0.0
    %5062 = vmatprep.subr.mxu0 0.0
    %5063 = vmatpush1.xpose.msra.mxu0 0.0
    %5064 = vmatprep.subr.mxu0 0.0
    %5065 = vmatpush1.xpose.msra.mxu0 0.0
    %5066 = vmatprep.subr.mxu0 0.0
    %5067 = vmatpush1.xpose.msra.mxu0 0.0
    %5068 = vmatprep.subr.mxu0 0.0
    %5069 = vmatpush1.xpose.msra.mxu0 0.0
    %5070 = vmatprep.subr.mxu0 0.0
    %5071 = vmatpush1.xpose.msra.mxu0 0.0
    %5072 = vmatprep.subr.mxu0 0.0
    %5073 = vmatpush1.xpose.msra.mxu0 0.0
    %5074 = vmatprep.subr.mxu0 0.0
    %5075 = vmatpush1.xpose.msra.mxu0 0.0
    %5076 = vmatprep.subr.mxu0 0.0
    %5077 = vmatpush1.xpose.msra.mxu0 0.0
    %5078 = vmatprep.subr.mxu0 0.0
    %5079 = vmatpush1.xpose.msra.mxu0 0.0
    %5080 = vmatprep.subr.mxu0 0.0
    %5081 = vmatpush1.xpose.msra.mxu0 0.0
    %5082 = vmatprep.subr.mxu0 0.0
    %5083 = vmatpush1.xpose.msra.mxu0 0.0
    %5084 = vmatprep.subr.mxu0 0.0
    %5085 = vmatpush1.xpose.msra.mxu0 0.0
    %5086 = vmatprep.subr.mxu0 0.0
    %5087 = vmatpush1.xpose.msra.mxu0 0.0
    %5088 = vmatprep.subr.mxu0 0.0
    %5089 = vmatpush1.xpose.msra.mxu0 0.0
    %5090 = vmatprep.subr.mxu0 0.0
    %5091 = vmatpush1.xpose.msra.mxu0 0.0
    %5092 = vmatprep.subr.mxu0 0.0
    %5093 = vmatpush1.xpose.msra.mxu0 0.0
    %5094 = vmatprep.subr.mxu0 0.0
    %5095 = vmatpush1.xpose.msra.mxu0 0.0
    %5096 = vmatprep.subr.mxu0 0.0
    %5097 = vmatpush1.xpose.msra.mxu0 0.0
    %5098 = vmatprep.mubr.f32.mxu0 0.0
    %5099 = vmatmul.mubr.f32.gmra.mrb[0].mxu0 %v5029
    %v5100 = vpop.f32.mrb[0].mxu0
    %v5101 = vadd.f32 0.0, %v5100
    %v5102 = vpop.f32.mrb[0].mxu0
    %5103 = vdwg.mxu0
    %v5105 = vsel %vm408, %v4904, 0
    %v5108 = vsel %vm408, %v4810, 0
    %5110 = vmatprep.subr.mxu0 0.0
    %5111 = vmatpush1.xpose.msra.mxu0 %v5108
    %5112 = vmatprep.subr.mxu0 0.0
    %5113 = vmatpush1.xpose.msra.mxu0 0.0
    %5114 = vmatprep.subr.mxu0 0.0
    %5115 = vmatpush1.xpose.msra.mxu0 0.0
    %5116 = vmatprep.subr.mxu0 0.0
    %5117 = vmatpush1.xpose.msra.mxu0 0.0
    %5118 = vmatprep.subr.mxu0 0.0
    %5119 = vmatpush1.xpose.msra.mxu0 0.0
    %5120 = vmatprep.subr.mxu0 0.0
    %5121 = vmatpush1.xpose.msra.mxu0 0.0
    %5122 = vmatprep.subr.mxu0 0.0
    %5123 = vmatpush1.xpose.msra.mxu0 0.0
    %5124 = vmatprep.subr.mxu0 0.0
    %5125 = vmatpush1.xpose.msra.mxu0 0.0
    %5126 = vmatprep.subr.mxu0 0.0
    %5127 = vmatpush1.xpose.msra.mxu0 0.0
    %5128 = vmatprep.subr.mxu0 0.0
    %5129 = vmatpush1.xpose.msra.mxu0 0.0
    %5130 = vmatprep.subr.mxu0 0.0
    %5131 = vmatpush1.xpose.msra.mxu0 0.0
    %5132 = vmatprep.subr.mxu0 0.0
    %5133 = vmatpush1.xpose.msra.mxu0 0.0
    %5134 = vmatprep.subr.mxu0 0.0
    %5135 = vmatpush1.xpose.msra.mxu0 0.0
    %5136 = vmatprep.subr.mxu0 0.0
    %5137 = vmatpush1.xpose.msra.mxu0 0.0
    %5138 = vmatprep.subr.mxu0 0.0
    %5139 = vmatpush1.xpose.msra.mxu0 0.0
    %5140 = vmatprep.subr.mxu0 0.0
    %5141 = vmatpush1.xpose.msra.mxu0 0.0
    %5142 = vmatprep.subr.mxu0 0.0
    %5143 = vmatpush1.xpose.msra.mxu0 0.0
    %5144 = vmatprep.subr.mxu0 0.0
    %5145 = vmatpush1.xpose.msra.mxu0 0.0
    %5146 = vmatprep.subr.mxu0 0.0
    %5147 = vmatpush1.xpose.msra.mxu0 0.0
    %5148 = vmatprep.subr.mxu0 0.0
    %5149 = vmatpush1.xpose.msra.mxu0 0.0
    %5150 = vmatprep.subr.mxu0 0.0
    %5151 = vmatpush1.xpose.msra.mxu0 0.0
    %5152 = vmatprep.subr.mxu0 0.0
    %5153 = vmatpush1.xpose.msra.mxu0 0.0
    %5154 = vmatprep.subr.mxu0 0.0
    %5155 = vmatpush1.xpose.msra.mxu0 0.0
    %5156 = vmatprep.subr.mxu0 0.0
    %5157 = vmatpush1.xpose.msra.mxu0 0.0
    %5158 = vmatprep.subr.mxu0 0.0
    %5159 = vmatpush1.xpose.msra.mxu0 0.0
    %5160 = vmatprep.subr.mxu0 0.0
    %5161 = vmatpush1.xpose.msra.mxu0 0.0
    %5162 = vmatprep.subr.mxu0 0.0
    %5163 = vmatpush1.xpose.msra.mxu0 0.0
    %5164 = vmatprep.subr.mxu0 0.0
    %5165 = vmatpush1.xpose.msra.mxu0 0.0
    %5166 = vmatprep.subr.mxu0 0.0
    %5167 = vmatpush1.xpose.msra.mxu0 0.0
    %5168 = vmatprep.subr.mxu0 0.0
    %5169 = vmatpush1.xpose.msra.mxu0 0.0
    %5170 = vmatprep.subr.mxu0 0.0
    %5171 = vmatpush1.xpose.msra.mxu0 0.0
    %5172 = vmatprep.subr.mxu0 0.0
    %5173 = vmatpush1.xpose.msra.mxu0 0.0
    %5174 = vmatprep.mubr.f32.mxu0 0.0
    %5175 = vmatmul.mubr.f32.gmra.mrb[0].mxu0 %v5105
    %v5176 = vpop.f32.mrb[0].mxu0
    %v5177 = vadd.f32 0.0, %v5176
    %v5178 = vpop.f32.mrb[0].mxu0
    %5179 = vdwg.mxu0
    %v5181 = vsel %vm408, %v4936, 0
    %v5184 = vsel %vm408, %v4811, 0
    %5186 = vmatprep.subr.mxu0 0.0
    %5187 = vmatpush1.xpose.msra.mxu0 %v5184
    %5188 = vmatprep.subr.mxu0 0.0
    %5189 = vmatpush1.xpose.msra.mxu0 0.0
    %5190 = vmatprep.subr.mxu0 0.0
    %5191 = vmatpush1.xpose.msra.mxu0 0.0
    %5192 = vmatprep.subr.mxu0 0.0
    %5193 = vmatpush1.xpose.msra.mxu0 0.0
    %5194 = vmatprep.subr.mxu0 0.0
    %5195 = vmatpush1.xpose.msra.mxu0 0.0
    %5196 = vmatprep.subr.mxu0 0.0
    %5197 = vmatpush1.xpose.msra.mxu0 0.0
    %5198 = vmatprep.subr.mxu0 0.0
    %5199 = vmatpush1.xpose.msra.mxu0 0.0
    %5200 = vmatprep.subr.mxu0 0.0
    %5201 = vmatpush1.xpose.msra.mxu0 0.0
    %5202 = vmatprep.subr.mxu0 0.0
    %5203 = vmatpush1.xpose.msra.mxu0 0.0
    %5204 = vmatprep.subr.mxu0 0.0
    %5205 = vmatpush1.xpose.msra.mxu0 0.0
    %5206 = vmatprep.subr.mxu0 0.0
    %5207 = vmatpush1.xpose.msra.mxu0 0.0
    %5208 = vmatprep.subr.mxu0 0.0
    %5209 = vmatpush1.xpose.msra.mxu0 0.0
    %5210 = vmatprep.subr.mxu0 0.0
    %5211 = vmatpush1.xpose.msra.mxu0 0.0
    %5212 = vmatprep.subr.mxu0 0.0
    %5213 = vmatpush1.xpose.msra.mxu0 0.0
    %5214 = vmatprep.subr.mxu0 0.0
    %5215 = vmatpush1.xpose.msra.mxu0 0.0
    %5216 = vmatprep.subr.mxu0 0.0
    %5217 = vmatpush1.xpose.msra.mxu0 0.0
    %5218 = vmatprep.subr.mxu0 0.0
    %5219 = vmatpush1.xpose.msra.mxu0 0.0
    %5220 = vmatprep.subr.mxu0 0.0
    %5221 = vmatpush1.xpose.msra.mxu0 0.0
    %5222 = vmatprep.subr.mxu0 0.0
    %5223 = vmatpush1.xpose.msra.mxu0 0.0
    %5224 = vmatprep.subr.mxu0 0.0
    %5225 = vmatpush1.xpose.msra.mxu0 0.0
    %5226 = vmatprep.subr.mxu0 0.0
    %5227 = vmatpush1.xpose.msra.mxu0 0.0
    %5228 = vmatprep.subr.mxu0 0.0
    %5229 = vmatpush1.xpose.msra.mxu0 0.0
    %5230 = vmatprep.subr.mxu0 0.0
    %5231 = vmatpush1.xpose.msra.mxu0 0.0
    %5232 = vmatprep.subr.mxu0 0.0
    %5233 = vmatpush1.xpose.msra.mxu0 0.0
    %5234 = vmatprep.subr.mxu0 0.0
    %5235 = vmatpush1.xpose.msra.mxu0 0.0
    %5236 = vmatprep.subr.mxu0 0.0
    %5237 = vmatpush1.xpose.msra.mxu0 0.0
    %5238 = vmatprep.subr.mxu0 0.0
    %5239 = vmatpush1.xpose.msra.mxu0 0.0
    %5240 = vmatprep.subr.mxu0 0.0
    %5241 = vmatpush1.xpose.msra.mxu0 0.0
    %5242 = vmatprep.subr.mxu0 0.0
    %5243 = vmatpush1.xpose.msra.mxu0 0.0
    %5244 = vmatprep.subr.mxu0 0.0
    %5245 = vmatpush1.xpose.msra.mxu0 0.0
    %5246 = vmatprep.subr.mxu0 0.0
    %5247 = vmatpush1.xpose.msra.mxu0 0.0
    %5248 = vmatprep.subr.mxu0 0.0
    %5249 = vmatpush1.xpose.msra.mxu0 0.0
    %5250 = vmatprep.mubr.f32.mxu0 0.0
    %5251 = vmatmul.mubr.f32.gmra.mrb[0].mxu0 %v5181
    %v5252 = vpop.f32.mrb[0].mxu0
    %v5253 = vadd.f32 0.0, %v5252
    %v5254 = vpop.f32.mrb[0].mxu0
    %5255 = vdwg.mxu0
    %5256 = vxpose.xlu0.b32.start [1/16] %v5025, 128
    %5257 = vxpose.xlu0.b32.cont [2/16] 0.0, 128
    %5258 = vxpose.xlu0.b32.cont [3/16] 0.0, 128
    %5259 = vxpose.xlu0.b32.cont [4/16] 0.0, 128
    %5260 = vxpose.xlu0.b32.cont [5/16] 0.0, 128
    %5261 = vxpose.xlu0.b32.cont [6/16] 0.0, 128
    %5262 = vxpose.xlu0.b32.cont [7/16] 0.0, 128
    %5263 = vxpose.xlu0.b32.cont [8/16] 0.0, 128
    %5264 = vxpose.xlu0.b32.cont [9/16] 0.0, 128
    %5265 = vxpose.xlu0.b32.cont [10/16] 0.0, 128
    %5266 = vxpose.xlu0.b32.cont [11/16] 0.0, 128
    %5267 = vxpose.xlu0.b32.cont [12/16] 0.0, 128
    %5268 = vxpose.xlu0.b32.cont [13/16] 0.0, 128
    %5269 = vxpose.xlu0.b32.cont [14/16] 0.0, 128
    %5270 = vxpose.xlu0.b32.cont [15/16] 0.0, 128
    %5271 = vxpose.xlu0.b32.end [16/16] 0.0, 128
    %v5272 = vpop.trf.xlu0
    %v5273 = vpop.trf.xlu0
    %v5274 = vpop.trf.xlu0
    %v5275 = vpop.trf.xlu0
    %v5276 = vpop.trf.xlu0
    %v5277 = vpop.trf.xlu0
    %v5278 = vpop.trf.xlu0
    %v5279 = vpop.trf.xlu0
    %v5280 = vpop.trf.xlu0
    %v5281 = vpop.trf.xlu0
    %v5282 = vpop.trf.xlu0
    %v5283 = vpop.trf.xlu0
    %v5284 = vpop.trf.xlu0
    %v5285 = vpop.trf.xlu0
    %v5286 = vpop.trf.xlu0
    %v5287 = vpop.trf.xlu0
    %5288 = vxpose.xlu0.b32.start [1/16] %v5101, 128
    %5289 = vxpose.xlu0.b32.cont [2/16] 0.0, 128
    %5290 = vxpose.xlu0.b32.cont [3/16] 0.0, 128
    %5291 = vxpose.xlu0.b32.cont [4/16] 0.0, 128
    %5292 = vxpose.xlu0.b32.cont [5/16] 0.0, 128
    %5293 = vxpose.xlu0.b32.cont [6/16] 0.0, 128
    %5294 = vxpose.xlu0.b32.cont [7/16] 0.0, 128
    %5295 = vxpose.xlu0.b32.cont [8/16] 0.0, 128
    %5296 = vxpose.xlu0.b32.cont [9/16] 0.0, 128
    %5297 = vxpose.xlu0.b32.cont [10/16] 0.0, 128
    %5298 = vxpose.xlu0.b32.cont [11/16] 0.0, 128
    %5299 = vxpose.xlu0.b32.cont [12/16] 0.0, 128
    %5300 = vxpose.xlu0.b32.cont [13/16] 0.0, 128
    %5301 = vxpose.xlu0.b32.cont [14/16] 0.0, 128
    %5302 = vxpose.xlu0.b32.cont [15/16] 0.0, 128
    %5303 = vxpose.xlu0.b32.end [16/16] 0.0, 128
    %v5304 = vpop.trf.xlu0
    %v5305 = vpop.trf.xlu0
    %v5306 = vpop.trf.xlu0
    %v5307 = vpop.trf.xlu0
    %v5308 = vpop.trf.xlu0
    %v5309 = vpop.trf.xlu0
    %v5310 = vpop.trf.xlu0
    %v5311 = vpop.trf.xlu0
    %v5312 = vpop.trf.xlu0
    %v5313 = vpop.trf.xlu0
    %v5314 = vpop.trf.xlu0
    %v5315 = vpop.trf.xlu0
    %v5316 = vpop.trf.xlu0
    %v5317 = vpop.trf.xlu0
    %v5318 = vpop.trf.xlu0
    %v5319 = vpop.trf.xlu0
    %5320 = vxpose.xlu0.b32.start [1/16] %v5177, 128
    %5321 = vxpose.xlu0.b32.cont [2/16] 0.0, 128
    %5322 = vxpose.xlu0.b32.cont [3/16] 0.0, 128
    %5323 = vxpose.xlu0.b32.cont [4/16] 0.0, 128
    %5324 = vxpose.xlu0.b32.cont [5/16] 0.0, 128
    %5325 = vxpose.xlu0.b32.cont [6/16] 0.0, 128
    %5326 = vxpose.xlu0.b32.cont [7/16] 0.0, 128
    %5327 = vxpose.xlu0.b32.cont [8/16] 0.0, 128
    %5328 = vxpose.xlu0.b32.cont [9/16] 0.0, 128
    %5329 = vxpose.xlu0.b32.cont [10/16] 0.0, 128
    %5330 = vxpose.xlu0.b32.cont [11/16] 0.0, 128
    %5331 = vxpose.xlu0.b32.cont [12/16] 0.0, 128
    %5332 = vxpose.xlu0.b32.cont [13/16] 0.0, 128
    %5333 = vxpose.xlu0.b32.cont [14/16] 0.0, 128
    %5334 = vxpose.xlu0.b32.cont [15/16] 0.0, 128
    %5335 = vxpose.xlu0.b32.end [16/16] 0.0, 128
    %v5336 = vpop.trf.xlu0
    %v5337 = vpop.trf.xlu0
    %v5338 = vpop.trf.xlu0
    %v5339 = vpop.trf.xlu0
    %v5340 = vpop.trf.xlu0
    %v5341 = vpop.trf.xlu0
    %v5342 = vpop.trf.xlu0
    %v5343 = vpop.trf.xlu0
    %v5344 = vpop.trf.xlu0
    %v5345 = vpop.trf.xlu0
    %v5346 = vpop.trf.xlu0
    %v5347 = vpop.trf.xlu0
    %v5348 = vpop.trf.xlu0
    %v5349 = vpop.trf.xlu0
    %v5350 = vpop.trf.xlu0
    %v5351 = vpop.trf.xlu0
    %5352 = vxpose.xlu0.b32.start [1/16] %v5253, 128
    %5353 = vxpose.xlu0.b32.cont [2/16] 0.0, 128
    %5354 = vxpose.xlu0.b32.cont [3/16] 0.0, 128
    %5355 = vxpose.xlu0.b32.cont [4/16] 0.0, 128
    %5356 = vxpose.xlu0.b32.cont [5/16] 0.0, 128
    %5357 = vxpose.xlu0.b32.cont [6/16] 0.0, 128
    %5358 = vxpose.xlu0.b32.cont [7/16] 0.0, 128
    %5359 = vxpose.xlu0.b32.cont [8/16] 0.0, 128
    %5360 = vxpose.xlu0.b32.cont [9/16] 0.0, 128
    %5361 = vxpose.xlu0.b32.cont [10/16] 0.0, 128
    %5362 = vxpose.xlu0.b32.cont [11/16] 0.0, 128
    %5363 = vxpose.xlu0.b32.cont [12/16] 0.0, 128
    %5364 = vxpose.xlu0.b32.cont [13/16] 0.0, 128
    %5365 = vxpose.xlu0.b32.cont [14/16] 0.0, 128
    %5366 = vxpose.xlu0.b32.cont [15/16] 0.0, 128
    %5367 = vxpose.xlu0.b32.end [16/16] 0.0, 128
    %v5368 = vpop.trf.xlu0
    %v5369 = vpop.trf.xlu0
    %v5370 = vpop.trf.xlu0
    %v5371 = vpop.trf.xlu0
    %v5372 = vpop.trf.xlu0
    %v5373 = vpop.trf.xlu0
    %v5374 = vpop.trf.xlu0
    %v5375 = vpop.trf.xlu0
    %v5376 = vpop.trf.xlu0
    %v5377 = vpop.trf.xlu0
    %v5378 = vpop.trf.xlu0
    %v5379 = vpop.trf.xlu0
    %v5380 = vpop.trf.xlu0
    %v5381 = vpop.trf.xlu0
    %v5382 = vpop.trf.xlu0
    %v5383 = vpop.trf.xlu0
    %v5384 = vcombine.low %v5272, %v5336
    %v5385 = vcombine.high %v5272, %v5336
    %v5387 = vunpack.c.l.s4 1983009808
    %v5388 = vunpack.c.0.s8 %v5387
    %v5389 = vlaneseq
    %v5390 = vshrl.u32 %v5389, 7
    %v5391 = vsub.s32 %v5388, %v5390
    %v5392 = vrot.slane %v5384, %v5391
    %v5394 = vunpack.c.l.s4 1983009808
    %v5395 = vunpack.c.0.s8 %v5394
    %v5396 = vlaneseq
    %v5397 = vshrl.u32 %v5396, 7
    %v5398 = vsub.s32 %v5395, %v5397
    %v5399 = vrot.slane %v5385, %v5398
    %v5400 = vcombine.low %v5304, %v5368
    %v5401 = vcombine.high %v5304, %v5368
    %v5403 = vunpack.c.l.s4 1983009808
    %v5404 = vunpack.c.0.s8 %v5403
    %v5405 = vlaneseq
    %v5406 = vshrl.u32 %v5405, 7
    %v5407 = vsub.s32 %v5404, %v5406
    %v5408 = vrot.slane %v5400, %v5407
    %v5410 = vunpack.c.l.s4 1983009808
    %v5411 = vunpack.c.0.s8 %v5410
    %v5412 = vlaneseq
    %v5413 = vshrl.u32 %v5412, 7
    %v5414 = vsub.s32 %v5411, %v5413
    %v5415 = vrot.slane %v5401, %v5414
    %v5416 = vcombine.low %v5392, %v5408
    %v5417 = vcombine.high %v5392, %v5408
    %v5419 = vunpack.c.l.s4 1934713408
    %v5420 = vunpack.c.0.s8 %v5419
    %v5421 = vlaneseq
    %v5422 = vshrl.u32 %v5421, 7
    %v5423 = vsub.s32 %v5420, %v5422
    %v5424 = vrot.slane %v5416, %v5423
    %v5426 = vunpack.c.l.s4 1934713408
    %v5427 = vunpack.c.0.s8 %v5426
    %v5428 = vlaneseq
    %v5429 = vshrl.u32 %v5428, 7
    %v5430 = vsub.s32 %v5427, %v5429
    %v5431 = vrot.slane %v5417, %v5430
    %v5432 = vcombine.low %v5399, %v5415
    %v5433 = vcombine.high %v5399, %v5415
    %v5435 = vunpack.c.l.s4 1934713408
    %v5436 = vunpack.c.0.s8 %v5435
    %v5437 = vlaneseq
    %v5438 = vshrl.u32 %v5437, 7
    %v5439 = vsub.s32 %v5436, %v5438
    %v5440 = vrot.slane %v5432, %v5439
    %v5442 = vunpack.c.l.s4 1934713408
    %v5443 = vunpack.c.0.s8 %v5442
    %v5444 = vlaneseq
    %v5445 = vshrl.u32 %v5444, 7
    %v5446 = vsub.s32 %v5443, %v5445
    %v5447 = vrot.slane %v5433, %v5446
    %v5448 = vcombine.high %v5424, 0.0
    %v5449 = vcombine.high %v5431, 0.0
    %v5450 = vcombine.high %v5440, 0.0
    %v5451 = vcombine.high %v5447, 0.0
    %v5452 = vcombine.low %v5424, %v5431
    %v5454 = vunpack.c.l.s4 1983009808
    %v5455 = vunpack.c.0.s8 %v5454
    %v5456 = vlaneseq
    %v5457 = vshrl.u32 %v5456, 7
    %v5458 = vsub.s32 %v5455, %v5457
    %v5459 = vrot.slane %v5452, %v5458
    %v5460 = vcombine.low %v5448, %v5449
    %v5462 = vunpack.c.l.s4 1983009808
    %v5463 = vunpack.c.0.s8 %v5462
    %v5464 = vlaneseq
    %v5465 = vshrl.u32 %v5464, 7
    %v5466 = vsub.s32 %v5463, %v5465
    %v5467 = vrot.slane %v5460, %v5466
    %v5468 = vcombine.low %v5440, %v5447
    %v5470 = vunpack.c.l.s4 1983009808
    %v5471 = vunpack.c.0.s8 %v5470
    %v5472 = vlaneseq
    %v5473 = vshrl.u32 %v5472, 7
    %v5474 = vsub.s32 %v5471, %v5473
    %v5475 = vrot.slane %v5468, %v5474
    %v5476 = vcombine.low %v5450, %v5451
    %v5478 = vunpack.c.l.s4 1983009808
    %v5479 = vunpack.c.0.s8 %v5478
    %v5480 = vlaneseq
    %v5481 = vshrl.u32 %v5480, 7
    %v5482 = vsub.s32 %v5479, %v5481
    %v5483 = vrot.slane %v5476, %v5482
    %v5484 = vcombine.low %v5459, %v5467
    %v5485 = vcombine.high %v5459, %v5467
    %v5487 = vunpack.c.l.s4 1934713408
    %v5488 = vunpack.c.0.s8 %v5487
    %v5489 = vlaneseq
    %v5490 = vshrl.u32 %v5489, 7
    %v5491 = vsub.s32 %v5488, %v5490
    %v5492 = vrot.slane %v5484, %v5491
    %v5494 = vunpack.c.l.s4 1934713408
    %v5495 = vunpack.c.0.s8 %v5494
    %v5496 = vlaneseq
    %v5497 = vshrl.u32 %v5496, 7
    %v5498 = vsub.s32 %v5495, %v5497
    %v5499 = vrot.slane %v5485, %v5498
    %v5500 = vcombine.low %v5475, %v5483
    %v5501 = vcombine.high %v5475, %v5483
    %v5503 = vunpack.c.l.s4 1934713408
    %v5504 = vunpack.c.0.s8 %v5503
    %v5505 = vlaneseq
    %v5506 = vshrl.u32 %v5505, 7
    %v5507 = vsub.s32 %v5504, %v5506
    %v5508 = vrot.slane %v5500, %v5507
    %v5510 = vunpack.c.l.s4 1934713408
    %v5511 = vunpack.c.0.s8 %v5510
    %v5512 = vlaneseq
    %v5513 = vshrl.u32 %v5512, 7
    %v5514 = vsub.s32 %v5511, %v5513
    %v5515 = vrot.slane %v5501, %v5514
    %v5516 = vcombine.low %v5492, %v5508
    %v5517 = vcombine.high %v5492, %v5508
    %v5518 = vcombine.low %v5499, %v5515
    %v5519 = vcombine.high %v5499, %v5515
    %5521 = vrot.lane.b32.xlu0 %v5517, 8
    %v5522 = vpop.permute.xlu0 %5521
    %5525 = vrot.lane.b32.xlu0 %v5518, 16
    %v5526 = vpop.permute.xlu0 %5525
    %5529 = vrot.lane.b32.xlu0 %v5519, 24
    %v5530 = vpop.permute.xlu0 %5529
    %v5532 = vsel %vm408, %v5516, %v5522
    %v5533 = vsel %vm1462, %v5532, %v5526
    %v5534 = vsel %vm1464, %v5533, %v5530
    %v5535 = vlaneseq
    %v5536 = vshrl.u32 %v5535, 7
    %v5537 = vsub.s32 1, %v5536
    %v5538 = vrot.slane %v141, %v5537
    %5543 = vrot.lane.b32.xlu0 %v3021, 32
    %v5544 = vpop.permute.xlu0 %5543
    %5545 = vrot.lane.b32.xlu0 %v3023, 32
    %v5546 = vpop.permute.xlu0 %5545
    %5547 = vrot.lane.b32.xlu0 %v3025, 32
    %v5548 = vpop.permute.xlu0 %5547
    %5549 = vrot.lane.b32.xlu0 %v3027, 32
    %v5550 = vpop.permute.xlu0 %5549
    %v5556 = vsel %vm175, %v4332, 0
    %v5559 = vsel %vm175, %v5534, 0
    %5561 = vmatprep.subr.mxu0 0.0
    %5562 = vmatpush1.msra.mxu0 %v5544
    %5563 = vmatprep.subr.mxu0 0.0
    %5564 = vmatpush1.msra.mxu0 %v5546
    %5565 = vmatprep.subr.mxu0 0.0
    %5566 = vmatpush1.msra.mxu0 %v5548
    %5567 = vmatprep.subr.mxu0 0.0
    %5568 = vmatpush1.msra.mxu0 %v5550
    %5569 = vmatprep.subr.mxu0 0.0
    %5570 = vmatpush1.msra.mxu0 0.0
    %5571 = vmatprep.subr.mxu0 0.0
    %5572 = vmatpush1.msra.mxu0 0.0
    %5573 = vmatprep.subr.mxu0 0.0
    %5574 = vmatpush1.msra.mxu0 0.0
    %5575 = vmatprep.subr.mxu0 0.0
    %5576 = vmatpush1.msra.mxu0 0.0
    %5577 = vmatprep.subr.mxu0 0.0
    %5578 = vmatpush1.msra.mxu0 0.0
    %5579 = vmatprep.subr.mxu0 0.0
    %5580 = vmatpush1.msra.mxu0 0.0
    %5581 = vmatprep.subr.mxu0 0.0
    %5582 = vmatpush1.msra.mxu0 0.0
    %5583 = vmatprep.subr.mxu0 0.0
    %5584 = vmatpush1.msra.mxu0 0.0
    %5585 = vmatprep.subr.mxu0 0.0
    %5586 = vmatpush1.msra.mxu0 0.0
    %5587 = vmatprep.subr.mxu0 0.0
    %5588 = vmatpush1.msra.mxu0 0.0
    %5589 = vmatprep.subr.mxu0 0.0
    %5590 = vmatpush1.msra.mxu0 0.0
    %5591 = vmatprep.subr.mxu0 0.0
    %5592 = vmatpush1.msra.mxu0 0.0
    %5593 = vmatprep.subr.mxu0 0.0
    %5594 = vmatpush1.msra.mxu0 0.0
    %5595 = vmatprep.subr.mxu0 0.0
    %5596 = vmatpush1.msra.mxu0 0.0
    %5597 = vmatprep.subr.mxu0 0.0
    %5598 = vmatpush1.msra.mxu0 0.0
    %5599 = vmatprep.subr.mxu0 0.0
    %5600 = vmatpush1.msra.mxu0 0.0
    %5601 = vmatprep.subr.mxu0 0.0
    %5602 = vmatpush1.msra.mxu0 0.0
    %5603 = vmatprep.subr.mxu0 0.0
    %5604 = vmatpush1.msra.mxu0 0.0
    %5605 = vmatprep.subr.mxu0 0.0
    %5606 = vmatpush1.msra.mxu0 0.0
    %5607 = vmatprep.subr.mxu0 0.0
    %5608 = vmatpush1.msra.mxu0 0.0
    %5609 = vmatprep.subr.mxu0 0.0
    %5610 = vmatpush1.msra.mxu0 0.0
    %5611 = vmatprep.subr.mxu0 0.0
    %5612 = vmatpush1.msra.mxu0 0.0
    %5613 = vmatprep.subr.mxu0 0.0
    %5614 = vmatpush1.msra.mxu0 0.0
    %5615 = vmatprep.subr.mxu0 0.0
    %5616 = vmatpush1.msra.mxu0 0.0
    %5617 = vmatprep.subr.mxu0 0.0
    %5618 = vmatpush1.msra.mxu0 0.0
    %5619 = vmatprep.subr.mxu0 0.0
    %5620 = vmatpush1.msra.mxu0 0.0
    %5621 = vmatprep.subr.mxu0 0.0
    %5622 = vmatpush1.msra.mxu0 0.0
    %5623 = vmatprep.subr.mxu0 0.0
    %5624 = vmatpush1.msra.mxu0 0.0
    %5625 = vmatprep.mubr.f32.mxu0 0.0
    %5626 = vmatmul.mubr.f32.gmra.mrb[0].mxu0 %v5556
    %v5627 = vpop.f32.mrb[0].mxu0
    %v5628 = vadd.f32 %v5538, %v5627
    %v5629 = vpop.f32.mrb[0].mxu0
    %5630 = vmatprep.mubr.f32.mxu0 0.0
    %5631 = vmatmul.mubr.f32.gmra.mrb[0].mxu0 %v5559
    %v5632 = vpop.f32.mrb[0].mxu0
    %v5633 = vadd.f32 %v5538, %v5632
    %v5634 = vpop.f32.mrb[0].mxu0
    %5635 = vdwg.mxu0
    %v5636 = vadd.f32 %v3018, %v5628
    %v5637 = vadd.f32 %v3019, %v5633
    %v5638 = vsel %vm175, %v5636, 0.0
    %5639 = vadd.xlane.f32.xlu0 %v5638
    %v5640 = vpop.xlane.xlu0 %5639
    %v5641 = vsel %vm175, %v5637, 0.0
    %5642 = vadd.xlane.f32.xlu0 %v5641
    %v5643 = vpop.xlane.xlu0 %5642
    %v5644 = vmul.f32 %v5640, %v2781
    %v5645 = vmul.f32 %v5643, %v2781
    %v5646 = vsub.f32 %v5636, %v5644
    %v5647 = vsub.f32 %v5637, %v5645
    %v5648 = vmul.f32 %v5646, %v5646
    %v5649 = vmul.f32 %v5647, %v5647
    %v5650 = vsel %vm175, %v5648, 0.0
    %5651 = vadd.xlane.f32.xlu0 %v5650
    %v5652 = vpop.xlane.xlu0 %5651
    %v5653 = vsel %vm175, %v5649, 0.0
    %5654 = vadd.xlane.f32.xlu0 %v5653
    %v5655 = vpop.xlane.xlu0 %5654
    %v5656 = vmul.f32 %v5652, %v2781
    %v5657 = vmul.f32 %v5655, %v2781
    %v5658 = vadd.f32 %v5656, 1e-05
    %v5659 = vadd.f32 %v5657, 1e-05
    %v5660 = vrsqrt.pop %v5658
    %v5661 = vrsqrt.pop %v5659
    %v5662 = vmul.f32 %v5646, %v5660
    %v5663 = vmul.f32 %v5647, %v5661
    %v5664 = vlaneseq
    %v5665 = vshrl.u32 %v5664, 7
    %v5666 = vsub.s32 4, %v5665
    %v5667 = vrot.slane %v141, %v5666
    %v5668 = vmul.f32 %v5662, %v5667
    %v5669 = vmul.f32 %v5663, %v5667
    %v5670 = vlaneseq
    %v5671 = vshrl.u32 %v5670, 7
    %v5672 = vsub.s32 5, %v5671
    %v5673 = vrot.slane %v141, %v5672
    %v5674 = vadd.f32 %v5668, %v5673
    %v5675 = vadd.f32 %v5669, %v5673
    %v5676 = vlaneseq
    %v5677 = vshrl.u32 %v5676, 7
    %v5678 = vsub.s32 2, %v5677
    %v5679 = vrot.slane %v141, %v5678
    %v5681 = vsel %vm175, %v5674, 0
    %v5684 = vsel %vm175, %v5675, 0
    %5686 = vmatprep.subr.mxu0 0.0
    %5687 = vmatpush1.msra.mxu0 %v3022
    %5688 = vmatprep.subr.mxu0 0.0
    %5689 = vmatpush1.msra.mxu0 %v3024
    %5690 = vmatprep.subr.mxu0 0.0
    %5691 = vmatpush1.msra.mxu0 %v3026
    %5692 = vmatprep.subr.mxu0 0.0
    %5693 = vmatpush1.msra.mxu0 %v3028
    %5694 = vmatprep.subr.mxu0 0.0
    %5695 = vmatpush1.msra.mxu0 0.0
    %5696 = vmatprep.subr.mxu0 0.0
    %5697 = vmatpush1.msra.mxu0 0.0
    %5698 = vmatprep.subr.mxu0 0.0
    %5699 = vmatpush1.msra.mxu0 0.0
    %5700 = vmatprep.subr.mxu0 0.0
    %5701 = vmatpush1.msra.mxu0 0.0
    %5702 = vmatprep.subr.mxu0 0.0
    %5703 = vmatpush1.msra.mxu0 0.0
    %5704 = vmatprep.subr.mxu0 0.0
    %5705 = vmatpush1.msra.mxu0 0.0
    %5706 = vmatprep.subr.mxu0 0.0
    %5707 = vmatpush1.msra.mxu0 0.0
    %5708 = vmatprep.subr.mxu0 0.0
    %5709 = vmatpush1.msra.mxu0 0.0
    %5710 = vmatprep.subr.mxu0 0.0
    %5711 = vmatpush1.msra.mxu0 0.0
    %5712 = vmatprep.subr.mxu0 0.0
    %5713 = vmatpush1.msra.mxu0 0.0
    %5714 = vmatprep.subr.mxu0 0.0
    %5715 = vmatpush1.msra.mxu0 0.0
    %5716 = vmatprep.subr.mxu0 0.0
    %5717 = vmatpush1.msra.mxu0 0.0
    %5718 = vmatprep.subr.mxu0 0.0
    %5719 = vmatpush1.msra.mxu0 0.0
    %5720 = vmatprep.subr.mxu0 0.0
    %5721 = vmatpush1.msra.mxu0 0.0
    %5722 = vmatprep.subr.mxu0 0.0
    %5723 = vmatpush1.msra.mxu0 0.0
    %5724 = vmatprep.subr.mxu0 0.0
    %5725 = vmatpush1.msra.mxu0 0.0
    %5726 = vmatprep.subr.mxu0 0.0
    %5727 = vmatpush1.msra.mxu0 0.0
    %5728 = vmatprep.subr.mxu0 0.0
    %5729 = vmatpush1.msra.mxu0 0.0
    %5730 = vmatprep.subr.mxu0 0.0
    %5731 = vmatpush1.msra.mxu0 0.0
    %5732 = vmatprep.subr.mxu0 0.0
    %5733 = vmatpush1.msra.mxu0 0.0
    %5734 = vmatprep.subr.mxu0 0.0
    %5735 = vmatpush1.msra.mxu0 0.0
    %5736 = vmatprep.subr.mxu0 0.0
    %5737 = vmatpush1.msra.mxu0 0.0
    %5738 = vmatprep.subr.mxu0 0.0
    %5739 = vmatpush1.msra.mxu0 0.0
    %5740 = vmatprep.subr.mxu0 0.0
    %5741 = vmatpush1.msra.mxu0 0.0
    %5742 = vmatprep.subr.mxu0 0.0
    %5743 = vmatpush1.msra.mxu0 0.0
    %5744 = vmatprep.subr.mxu0 0.0
    %5745 = vmatpush1.msra.mxu0 0.0
    %5746 = vmatprep.subr.mxu0 0.0
    %5747 = vmatpush1.msra.mxu0 0.0
    %5748 = vmatprep.subr.mxu0 0.0
    %5749 = vmatpush1.msra.mxu0 0.0
    %5750 = vmatprep.mubr.f32.mxu0 0.0
    %5751 = vmatmul.mubr.f32.gmra.mrb[0].mxu0 %v5681
    %v5752 = vpop.f32.mrb[0].mxu0
    %v5753 = vadd.f32 %v5679, %v5752
    %v5754 = vpop.f32.mrb[0].mxu0
    %5755 = vmatprep.mubr.f32.mxu0 0.0
    %5756 = vmatmul.mubr.f32.gmra.mrb[0].mxu0 %v5684
    %v5757 = vpop.f32.mrb[0].mxu0
    %v5758 = vadd.f32 %v5679, %v5757
    %v5759 = vpop.f32.mrb[0].mxu0
    %5760 = vdwg.mxu0
    %v5761 = vmax.f32 %v5753, 0.0
    %v5762 = vmax.f32 %v5758, 0.0
    %v5763 = vlaneseq
    %v5764 = vshrl.u32 %v5763, 7
    %v5765 = vsub.s32 3, %v5764
    %v5766 = vrot.slane %v141, %v5765
    %5767 = vmatprep.subr.mxu0 0.0
    %5768 = vmatpush1.msra.mxu0 %v3030
    %5769 = vmatprep.subr.mxu0 0.0
    %5770 = vmatpush1.msra.mxu0 %v3031
    %5771 = vmatprep.subr.mxu0 0.0
    %5772 = vmatpush1.msra.mxu0 %v3032
    %5773 = vmatprep.subr.mxu0 0.0
    %5774 = vmatpush1.msra.mxu0 %v3033
    %5775 = vmatprep.subr.mxu0 0.0
    %5776 = vmatpush1.msra.mxu0 %v3034
    %5777 = vmatprep.subr.mxu0 0.0
    %5778 = vmatpush1.msra.mxu0 %v3035
    %5779 = vmatprep.subr.mxu0 0.0
    %5780 = vmatpush1.msra.mxu0 %v3036
    %5781 = vmatprep.subr.mxu0 0.0
    %5782 = vmatpush1.msra.mxu0 %v3037
    %5783 = vmatprep.subr.mxu0 0.0
    %5784 = vmatpush1.msra.mxu0 %v3038
    %5785 = vmatprep.subr.mxu0 0.0
    %5786 = vmatpush1.msra.mxu0 %v3039
    %5787 = vmatprep.subr.mxu0 0.0
    %5788 = vmatpush1.msra.mxu0 %v3040
    %5789 = vmatprep.subr.mxu0 0.0
    %5790 = vmatpush1.msra.mxu0 %v3041
    %5791 = vmatprep.subr.mxu0 0.0
    %5792 = vmatpush1.msra.mxu0 %v3042
    %5793 = vmatprep.subr.mxu0 0.0
    %5794 = vmatpush1.msra.mxu0 %v3043
    %5795 = vmatprep.subr.mxu0 0.0
    %5796 = vmatpush1.msra.mxu0 %v3044
    %5797 = vmatprep.subr.mxu0 0.0
    %5798 = vmatpush1.msra.mxu0 %v3045
    %5799 = vmatprep.subr.mxu0 0.0
    %5800 = vmatpush1.msra.mxu0 0.0
    %5801 = vmatprep.subr.mxu0 0.0
    %5802 = vmatpush1.msra.mxu0 0.0
    %5803 = vmatprep.subr.mxu0 0.0
    %5804 = vmatpush1.msra.mxu0 0.0
    %5805 = vmatprep.subr.mxu0 0.0
    %5806 = vmatpush1.msra.mxu0 0.0
    %5807 = vmatprep.subr.mxu0 0.0
    %5808 = vmatpush1.msra.mxu0 0.0
    %5809 = vmatprep.subr.mxu0 0.0
    %5810 = vmatpush1.msra.mxu0 0.0
    %5811 = vmatprep.subr.mxu0 0.0
    %5812 = vmatpush1.msra.mxu0 0.0
    %5813 = vmatprep.subr.mxu0 0.0
    %5814 = vmatpush1.msra.mxu0 0.0
    %5815 = vmatprep.subr.mxu0 0.0
    %5816 = vmatpush1.msra.mxu0 0.0
    %5817 = vmatprep.subr.mxu0 0.0
    %5818 = vmatpush1.msra.mxu0 0.0
    %5819 = vmatprep.subr.mxu0 0.0
    %5820 = vmatpush1.msra.mxu0 0.0
    %5821 = vmatprep.subr.mxu0 0.0
    %5822 = vmatpush1.msra.mxu0 0.0
    %5823 = vmatprep.subr.mxu0 0.0
    %5824 = vmatpush1.msra.mxu0 0.0
    %5825 = vmatprep.subr.mxu0 0.0
    %5826 = vmatpush1.msra.mxu0 0.0
    %5827 = vmatprep.subr.mxu0 0.0
    %5828 = vmatpush1.msra.mxu0 0.0
    %5829 = vmatprep.subr.mxu0 0.0
    %5830 = vmatpush1.msra.mxu0 0.0
    %5831 = vmatprep.mubr.f32.mxu0 0.0
    %5832 = vmatmul.mubr.f32.gmra.mrb[0].mxu0 %v5761
    %v5833 = vpop.f32.mrb[0].mxu0
    %v5834 = vadd.f32 %v5766, %v5833
    %v5835 = vpop.f32.mrb[0].mxu0
    %5836 = vmatprep.mubr.f32.mxu0 0.0
    %5837 = vmatmul.mubr.f32.gmra.mrb[0].mxu0 %v5762
    %v5838 = vpop.f32.mrb[0].mxu0
    %v5839 = vadd.f32 %v5766, %v5838
    %v5840 = vpop.f32.mrb[0].mxu0
    %5841 = vdwg.mxu0
    %v5842 = vadd.f32 %v5674, %v5834
    %v5843 = vadd.f32 %v5675, %v5839
    %v5844 = vsel %vm175, %v5842, 0.0
    %5845 = vadd.xlane.f32.xlu0 %v5844
    %v5846 = vpop.xlane.xlu0 %5845
    %v5847 = vsel %vm175, %v5843, 0.0
    %5848 = vadd.xlane.f32.xlu0 %v5847
    %v5849 = vpop.xlane.xlu0 %5848
    %v5850 = vmul.f32 %v5846, %v2781
    %v5851 = vmul.f32 %v5849, %v2781
    %v5852 = vsub.f32 %v5842, %v5850
    %v5853 = vsub.f32 %v5843, %v5851
    %v5854 = vmul.f32 %v5852, %v5852
    %v5855 = vmul.f32 %v5853, %v5853
    %v5856 = vsel %vm175, %v5854, 0.0
    %5857 = vadd.xlane.f32.xlu0 %v5856
    %v5858 = vpop.xlane.xlu0 %5857
    %v5859 = vsel %vm175, %v5855, 0.0
    %5860 = vadd.xlane.f32.xlu0 %v5859
    %v5861 = vpop.xlane.xlu0 %5860
    %v5862 = vmul.f32 %v5858, %v2781
    %v5863 = vmul.f32 %v5861, %v2781
    %v5864 = vadd.f32 %v5862, 1e-05
    %v5865 = vadd.f32 %v5863, 1e-05
    %v5866 = vrsqrt.pop %v5864
    %v5867 = vrsqrt.pop %v5865
    %v5868 = vmul.f32 %v5852, %v5866
    %v5869 = vmul.f32 %v5853, %v5867
    %v5870 = vlaneseq
    %v5871 = vshrl.u32 %v5870, 7
    %v5872 = vsub.s32 6, %v5871
    %v5873 = vrot.slane %v141, %v5872
    %v5874 = vmul.f32 %v5868, %v5873
    %v5875 = vmul.f32 %v5869, %v5873
    %v5876 = vlaneseq
    %v5877 = vshrl.u32 %v5876, 7
    %v5878 = vsub.s32 7, %v5877
    %v5879 = vrot.slane %v141, %v5878
    %v5880 = vadd.f32 %v5874, %v5879
    %v5881 = vadd.f32 %v5875, %v5879
    %v5882 = vsel %vm175, %v5880, 0.0
    %v5883 = vrot.slane %v5882, 4
    %v5884 = vadd.f32 %v5882, %v5883
    %v5885 = vrot.slane %v5884, 2
    %v5886 = vadd.f32 %v5884, %v5885
    %v5887 = vrot.slane %v5886, 1
    %v5888 = vadd.f32 %v5886, %v5887
    %v5889 = vsel %vm175, %v5881, 0.0
    %v5890 = vrot.slane %v5889, 4
    %v5891 = vadd.f32 %v5889, %v5890
    %v5892 = vrot.slane %v5891, 2
    %v5893 = vadd.f32 %v5891, %v5892
    %v5894 = vrot.slane %v5893, 1
    %v5895 = vadd.f32 %v5893, %v5894
    %vm5896 = vcmask 1040384
    %v5897 = vsel %vm5896, %v5888, %v5895
    %v5898 = vmul.f32 %v5897, 0.125
    %v5899 = vlaneseq
    %v5900 = vshrl.u32 %v5899, 7
    %v5901 = vsub.s32 0, %v5900
    %v5902 = vrot.slane %v146, %v5901
    %v5904 = vsel %vm175, %v5898, 0
    %5906 = vmatprep.subr.mxu0 0.0
    %5907 = vmatpush1.msra.mxu0 %v142
    %5908 = vmatprep.subr.mxu0 0.0
    %5909 = vmatpush1.msra.mxu0 %v143
    %5910 = vmatprep.subr.mxu0 0.0
    %5911 = vmatpush1.msra.mxu0 %v144
    %5912 = vmatprep.subr.mxu0 0.0
    %5913 = vmatpush1.msra.mxu0 %v145
    %5914 = vmatprep.subr.mxu0 0.0
    %5915 = vmatpush1.msra.mxu0 0.0
    %5916 = vmatprep.subr.mxu0 0.0
    %5917 = vmatpush1.msra.mxu0 0.0
    %5918 = vmatprep.subr.mxu0 0.0
    %5919 = vmatpush1.msra.mxu0 0.0
    %5920 = vmatprep.subr.mxu0 0.0
    %5921 = vmatpush1.msra.mxu0 0.0
    %5922 = vmatprep.subr.mxu0 0.0
    %5923 = vmatpush1.msra.mxu0 0.0
    %5924 = vmatprep.subr.mxu0 0.0
    %5925 = vmatpush1.msra.mxu0 0.0
    %5926 = vmatprep.subr.mxu0 0.0
    %5927 = vmatpush1.msra.mxu0 0.0
    %5928 = vmatprep.subr.mxu0 0.0
    %5929 = vmatpush1.msra.mxu0 0.0
    %5930 = vmatprep.subr.mxu0 0.0
    %5931 = vmatpush1.msra.mxu0 0.0
    %5932 = vmatprep.subr.mxu0 0.0
    %5933 = vmatpush1.msra.mxu0 0.0
    %5934 = vmatprep.subr.mxu0 0.0
    %5935 = vmatpush1.msra.mxu0 0.0
    %5936 = vmatprep.subr.mxu0 0.0
    %5937 = vmatpush1.msra.mxu0 0.0
    %5938 = vmatprep.subr.mxu0 0.0
    %5939 = vmatpush1.msra.mxu0 0.0
    %5940 = vmatprep.subr.mxu0 0.0
    %5941 = vmatpush1.msra.mxu0 0.0
    %5942 = vmatprep.subr.mxu0 0.0
    %5943 = vmatpush1.msra.mxu0 0.0
    %5944 = vmatprep.subr.mxu0 0.0
    %5945 = vmatpush1.msra.mxu0 0.0
    %5946 = vmatprep.subr.mxu0 0.0
    %5947 = vmatpush1.msra.mxu0 0.0
    %5948 = vmatprep.subr.mxu0 0.0
    %5949 = vmatpush1.msra.mxu0 0.0
    %5950 = vmatprep.subr.mxu0 0.0
    %5951 = vmatpush1.msra.mxu0 0.0
    %5952 = vmatprep.subr.mxu0 0.0
    %5953 = vmatpush1.msra.mxu0 0.0
    %5954 = vmatprep.subr.mxu0 0.0
    %5955 = vmatpush1.msra.mxu0 0.0
    %5956 = vmatprep.subr.mxu0 0.0
    %5957 = vmatpush1.msra.mxu0 0.0
    %5958 = vmatprep.subr.mxu0 0.0
    %5959 = vmatpush1.msra.mxu0 0.0
    %5960 = vmatprep.subr.mxu0 0.0
    %5961 = vmatpush1.msra.mxu0 0.0
    %5962 = vmatprep.subr.mxu0 0.0
    %5963 = vmatpush1.msra.mxu0 0.0
    %5964 = vmatprep.subr.mxu0 0.0
    %5965 = vmatpush1.msra.mxu0 0.0
    %5966 = vmatprep.subr.mxu0 0.0
    %5967 = vmatpush1.msra.mxu0 0.0
    %5968 = vmatprep.subr.mxu0 0.0
    %5969 = vmatpush1.msra.mxu0 0.0
    %5970 = vmatprep.mubr.f32.mxu0 0.0
    %5971 = vmatmul.mubr.f32.gmra.mrb[0].mxu0 %v5904
    %v5972 = vpop.f32.mrb[0].mxu0
    %v5973 = vadd.f32 %v5902, %v5972
    %v5974 = vpop.f32.mrb[0].mxu0
    %5975 = vdwg.mxu0
    %5976 = vst [vmem:[#allocation2] sm:$0x3] %v5973
    // Predicated region
    $region26: #{forward.1} parent=1 // pred_check
      _
    $region27: #{forward.1} parent=1 // pred_check_branch
      %5978 = sbr.rel (0) target = $region29
    $region28: #{forward.1} parent=1 // pred_region
      %s5980 = ssub.s32 32, 32
      %5981 = vsyncadd [#allocation3], %s5980
      %s5983 = sshll.u32 [#allocation2], 4
      %s5984 = int_to_ptr.vmem [resolvable:$true] %s5983
      %5986 = dma.vmem_to_hbm [thread:$0]  %s5984, 32, %s6, [#allocation3]
    $region29: #{forward.1} parent=1 // pred_fallthru
      _
    // Predicated region
    $region30: #{forward.1} parent=1 // pred_check
      _
    $region31: #{forward.1} parent=1 // pred_check_branch
      %5988 = sbr.rel (0) target = $region33
    $region32: #{forward.1} parent=1 // pred_region
      %5989 = dma.done [#allocation3], 32
    $region33: #{forward.1} parent=1 // pred_fallthru
      _
    %5990 = vsyncpa [#allocation3], 1

</llo_original>
